<compile_context>
chip_gen: v7x
topology: tpu7x:2x2x1
jax: 0.10.0
libtpu: 0.0.40
codegen_flags: <defaults>
</compile_context>

<pallas_src>
import numpy as np
import jax
import jax.numpy as jnp
from jax.experimental import pallas as pl
from jax.experimental.pallas import tpu as pltpu

_BN_EPS = 1e-5
_LANE = 128
_SUB = 8


# ----------------------------------------------------------------------------
# One-time host-side packing: Conv1d -> dense matmul operand (+ padding).
# ----------------------------------------------------------------------------
def _conv1d_as_matrix(w, l_in, stride, padding):
    """Dense M s.t. y_flat = x_flat @ M reproduces Conv1d (bias=False).

    w: (C_out, C_in, K) numpy.  Flattening is PyTorch channel-major
    (flat = c * L + l).  Returns (M of shape (C_in*L_in, C_out*L_out), L_out).
    """
    c_out, c_in, k = w.shape
    l_out = (l_in + 2 * padding - k) // stride + 1
    m = np.zeros((c_in, l_in, c_out, l_out), np.float32)
    for t in range(l_out):
        for kk in range(k):
            s = t * stride + kk - padding
            if 0 <= s < l_in:
                m[:, s, :, t] += w[:, :, kk].T
    return m.reshape(c_in * l_in, c_out * l_out), l_out


def _pad2(a, rows, cols):
    out = np.zeros((rows, cols), np.float32)
    out[: a.shape[0], : a.shape[1]] = a
    return out


def _channel_fold(c, l, w_pad):
    """(w_pad, 128) 0/1 indicator: flat index c*l + ll -> channel column c."""
    g = np.zeros((w_pad, _LANE), np.float32)
    for cc in range(c):
        g[cc * l:(cc + 1) * l, cc] = 1.0
    return g


def init_raw_params(key, nz):
    """PyTorch-module-shaped parameters (Conv1d weights, BN gamma/beta)."""
    ks = jax.random.split(key, 10)

    def w(k, shape):
        fan_in = shape[1] * shape[2]
        return jax.random.normal(k, shape, jnp.float32) / np.sqrt(fan_in)

    w1 = w(ks[0], (8, 2, 4))
    g1 = 1.0 + 0.1 * jax.random.normal(ks[1], (8,), jnp.float32)
    b1 = 0.1 * jax.random.normal(ks[2], (8,), jnp.float32)
    w2 = w(ks[3], (32, 8, 4))
    g2 = 1.0 + 0.1 * jax.random.normal(ks[4], (32,), jnp.float32)
    b2 = 0.1 * jax.random.normal(ks[5], (32,), jnp.float32)
    w3 = w(ks[6], (128, 32, 3))
    g3 = 1.0 + 0.1 * jax.random.normal(ks[7], (128,), jnp.float32)
    b3 = 0.1 * jax.random.normal(ks[8], (128,), jnp.float32)
    w4 = w(ks[9], (nz, 128, 2))
    return (w1, g1, b1, w2, g2, b2, w3, g3, b3, w4)


def prepare_packed_params(raw, nz, l_in):
    """Pack raw params into padded, bf16 matmul operands.  Runs ONCE at init
    (perf feedback: never rebuild the conv-as-matrix operands per call)."""
    assert 3 * nz <= _LANE, "nz too large for the packed latent layout"
    w1, g1, b1, w2, g2, b2, w3, g3, b3, w4 = [np.asarray(p) for p in raw]

    m1, l1 = _conv1d_as_matrix(w1, l_in, stride=2, padding=1)   # (48,  96)
    m2, l2 = _conv1d_as_matrix(w2, l1, stride=2, padding=1)     # (96,  192)
    m3, l3 = _conv1d_as_matrix(w3, l2, stride=2, padding=1)     # (192, 384)
    m4, l4 = _conv1d_as_matrix(w4, l3, stride=1, padding=0)     # (384, 2*nz)
    assert l4 == 2, "encoder expects input length 24 -> latent length 2"

    pad_up = lambda x: ((x + _LANE - 1) // _LANE) * _LANE
    w0p, w1p, w2p, w3p = pad_up(2 * l_in), pad_up(8 * l1), pad_up(32 * l2), pad_up(128 * l3)

    m1p = _pad2(m1, w0p, w1p)
    m2p = _pad2(m2, w1p, w2p)
    m3p = _pad2(m3, w2p, w3p)

    # Final conv packed as (384, 256) with duplicated columns so the
    # reparametrization is a full-width FMA:
    #   block A (lanes [0,128)):   [0,nz)=mu  [nz,2nz)=logvar  [2nz,3nz)=mu dup
    #   block B (lanes [128,256)): [2nz,3nz)=logvar dup (exp -> std, * eps)
    m4p = np.zeros((w3p, 2 * _LANE), np.float32)
    for c in range(nz):
        mu_col, lv_col = m4[:, c * 2 + 0], m4[:, c * 2 + 1]
        m4p[:, c] = mu_col
        m4p[:, nz + c] = lv_col
        m4p[:, 2 * nz + c] = mu_col
        m4p[:, _LANE + 2 * nz + c] = lv_col

    gf1 = _channel_fold(8, l1, w1p)
    gf2 = _channel_fold(32, l2, w2p)
    gf3 = _channel_fold(128, l3, w3p)

    gb = np.zeros((_SUB, _LANE), np.float32)      # consolidated gamma/beta
    gb[0, :8] = g1;   gb[1, :8] = b1
    gb[2, :32] = g2;  gb[3, :32] = b2
    gb[4, :128] = g3; gb[5, :128] = b3

    packed = dict(
        m1=jnp.asarray(m1p, jnp.bfloat16), m2=jnp.asarray(m2p, jnp.bfloat16),
        m3=jnp.asarray(m3p, jnp.bfloat16), m4=jnp.asarray(m4p, jnp.bfloat16),
        g1=jnp.asarray(gf1), g1t=jnp.asarray(gf1.T),
        g2=jnp.asarray(gf2), g2t=jnp.asarray(gf2.T),
        g3=jnp.asarray(gf3), g3t=jnp.asarray(gf3.T),
        gb=jnp.asarray(gb),
    )
    meta = dict(l_in=l_in, lens=(l1, l2, l3), nz=nz, w0p=w0p)
    return packed, meta


# ----------------------------------------------------------------------------
# Pallas kernel (whole network fused, everything VMEM resident).
# ----------------------------------------------------------------------------
def _make_kernel(real_b, lens, nz):
    l1, l2, l3 = lens

    def _conv(h, m_ref):
        # bf16 x bf16 MXU matmul, f32 accumulation.
        return jnp.dot(h.astype(jnp.bfloat16), m_ref[...],
                       preferred_element_type=jnp.float32)

    def _bn(h, mask_row, gamma, beta, g_ref, gt_ref, n):
        # Training-mode BatchNorm1d (biased variance, batch statistics).
        # Batch (sublane) reduction on the MXU; mask_row also drops pad rows.
        s = jnp.dot(mask_row, h, preferred_element_type=jnp.float32)        # (1, W)
        sq = jnp.dot(mask_row, h * h, preferred_element_type=jnp.float32)   # (1, W)
        ch_sum = jnp.dot(s, g_ref[...], preferred_element_type=jnp.float32)   # (1, 128)
        ch_sq = jnp.dot(sq, g_ref[...], preferred_element_type=jnp.float32)   # (1, 128)
        mean = ch_sum * (1.0 / n)
        var = jnp.maximum(ch_sq * (1.0 / n) - mean * mean, 0.0)
        inv = jax.lax.rsqrt(var + _BN_EPS)
        scale = gamma * inv
        shift = beta - mean * scale
        scale_e = jnp.dot(scale, gt_ref[...], preferred_element_type=jnp.float32)
        shift_e = jnp.dot(shift, gt_ref[...], preferred_element_type=jnp.float32)
        return h * scale_e + shift_e

    def _lrelu(h):
        return jnp.where(h > 0, h, 0.2 * h)

    def kernel(x_ref, mask_ref, eps_ref, m1_ref, m2_ref, m3_ref, m4_ref,
               g1_ref, g1t_ref, g2_ref, g2t_ref, g3_ref, g3t_ref, gb_ref,
               o_ref):
        mask_row = mask_ref[...]          # (1, B_pad)
        gb = gb_ref[...]                  # (8, 128)

        # Conv1d(2,8,k4,s2,p1) + BN + LeakyReLU(0.2)
        h = _conv(x_ref[...], m1_ref)
        h = _bn(h, mask_row, gb[0:1, :], gb[1:2, :], g1_ref, g1t_ref,
                float(real_b * l1))
        h = _lrelu(h)
        # Conv1d(8,32,k4,s2,p1) + BN + LeakyReLU(0.2)
        h = _conv(h, m2_ref)
        h = _bn(h, mask_row, gb[2:3, :], gb[3:4, :], g2_ref, g2t_ref,
                float(real_b * l2))
        h = _lrelu(h)
        # Conv1d(32,128,k3,s2,p1) + BN + LeakyReLU(0.2)
        h = _conv(h, m3_ref)
        h = _bn(h, mask_row, gb[4:5, :], gb[5:6, :], g3_ref, g3t_ref,
                float(real_b * l3))
        h = _lrelu(h)
        # Conv1d(128,nz,k2,s1,p0) -> packed (B, 256)
        z2 = _conv(h, m4_ref)
        za = z2[:, :_LANE]       # mu | logvar | mu(dup) | 0...
        zb = z2[:, _LANE:]       # 0 ... logvar(dup) at [2nz,3nz) ... 0
        # Reparametrize: eps is nonzero only in lanes [2nz, 3nz), so lanes
        # [0, 2nz) keep mu|logvar and [2nz, 3nz) become mu + eps*exp(logvar/2).
        o_ref[...] = za + eps_ref[...] * jnp.exp(0.5 * zb)

    return kernel


# ----------------------------------------------------------------------------
# Forward wrapper (fully jit-able; packed params are baked constants).
# ----------------------------------------------------------------------------
def build_forward(packed, meta):
    l1, l2, l3 = meta["lens"]
    nz = meta["nz"]
    l_in = meta["l_in"]
    w0p = meta["w0p"]
    c_in = 2

    def forward(x, key):
        """x: (B, 2, l_in) float32 (NCL).  Returns (out (B,nz,1), mu, logvar)."""
        b = x.shape[0]
        b_pad = max(_SUB, ((b + _SUB - 1) // _SUB) * _SUB)

        # Channel-major flatten (== torch .reshape on NCL), pad to lane-dense.
        xf = x.reshape(b, c_in * l_in).astype(jnp.float32)
        x0 = jnp.zeros((b_pad, w0p), jnp.float32).at[:b, : c_in * l_in].set(xf)

        mask = (jnp.arange(b_pad) < b).astype(jnp.float32).reshape(1, b_pad)

        eps = jax.random.normal(key, (b, nz), jnp.float32)
        eps_slab = jnp.zeros((b_pad, _LANE), jnp.float32)
        eps_slab = eps_slab.at[:b, 2 * nz:3 * nz].set(eps)

        inputs = (x0, mask, eps_slab,
                  packed["m1"], packed["m2"], packed["m3"], packed["m4"],
                  packed["g1"], packed["g1t"], packed["g2"], packed["g2t"],
                  packed["g3"], packed["g3t"], packed["gb"])

        kernel = _make_kernel(b, (l1, l2, l3), nz)

        out_slab = pl.pallas_call(
            kernel,
            out_shape=jax.ShapeDtypeStruct((b_pad, _LANE), jnp.float32),
            grid=(1,),
            in_specs=[pl.BlockSpec(a.shape, lambda i: (0, 0)) for a in inputs],
            out_specs=pl.BlockSpec((b_pad, _LANE), lambda i: (0, 0)),
            compiler_params=pltpu.CompilerParams(
                dimension_semantics=("arbitrary",)),
        )(*inputs)

        mu = out_slab[:b, 0:nz]
        logvar = out_slab[:b, nz:2 * nz]
        out = out_slab[:b, 2 * nz:3 * nz].reshape(b, nz, 1)
        return out, mu, logvar

    return jax.jit(forward)


# ----------------------------------------------------------------------------
# Pure-JAX f32 reference (correctness check only).
# ----------------------------------------------------------------------------
def reference_forward(x, raw, key, nz):
    w1, g1, b1, w2, g2, b2, w3, g3, b3, w4 = raw
    dn = ("NCH", "OIH", "NCH")

    def conv(h, w, stride, padding):
        return jax.lax.conv_general_dilated(
            h, w, (stride,), [(padding, padding)], dimension_numbers=dn,
            precision=jax.lax.Precision.HIGHEST)

    def bn(h, gamma, beta):
        mean = jnp.mean(h, axis=(0, 2), keepdims=True)
        var = jnp.mean((h - mean) ** 2, axis=(0, 2), keepdims=True)
        hn = (h - mean) / jnp.sqrt(var + _BN_EPS)
        return hn * gamma[None, :, None] + beta[None, :, None]

    def lrelu(h):
        return jnp.where(h > 0, h, 0.2 * h)

    h = lrelu(bn(conv(x, w1, 2, 1), g1, b1))
    h = lrelu(bn(conv(h, w2, 2, 1), g2, b2))
    h = lrelu(bn(conv(h, w3, 2, 1), g3, b3))
    z = conv(h, w4, 1, 0)                      # (B, nz, 2)
    mu, logvar = z[:, :, 0], z[:, :, 1]
    eps = jax.random.normal(key, mu.shape, jnp.float32)
    out = mu + eps * jnp.exp(0.5 * logvar)
    return out.reshape(x.shape[0], nz, 1), mu, logvar


if __name__ == "__main__":
    nz = 8
    batch = 16        # small; multiple of 8 fills f32 sublanes (mask handles any B)
    l_in = 24         # -> lengths 12 -> 6 -> 3 -> 2 through the conv stack

    key = jax.random.PRNGKey(0)
    kp, kx, ke = jax.random.split(key, 3)

    raw = init_raw_params(kp, nz)
    packed, meta = prepare_packed_params(raw, nz, l_in)   # one-time packing
    forward = build_forward(packed, meta)

    x = jax.random.normal(kx, (batch, 2, l_in), jnp.float32)

    out, mu, logvar = jax.block_until_ready(forward(x, ke))
    assert out.shape == (batch, nz, 1)
    assert mu.shape == (batch, nz) and logvar.shape == (batch, nz)

    out_r, mu_r, lv_r = jax.block_until_ready(reference_forward(x, raw, ke, nz))

    # CNN outputs vs f32 reference (kernel uses bf16 MXU operands).
    np.testing.assert_allclose(np.asarray(mu), np.asarray(mu_r), rtol=3e-2, atol=3e-2)
    np.testing.assert_allclose(np.asarray(logvar), np.asarray(lv_r), rtol=3e-2, atol=3e-2)
    # In-kernel reparametrization self-consistency with the same eps draw.
    eps_chk = jax.random.normal(ke, (batch, nz), jnp.float32)
    out_chk = np.asarray(mu) + np.asarray(eps_chk) * np.exp(0.5 * np.asarray(logvar))
    np.testing.assert_allclose(np.asarray(out)[:, :, 0], out_chk, rtol=1e-3, atol=1e-3)

    print("KERNEL_OK")
</pallas_src>

<mosaic_0001>
module attributes {stable_mosaic.version = 11 : i64} {
  func.func @kernel(%arg0: i32, %arg1: memref<16x128xf32, #tpu.memory_space<vmem>>, %arg2: memref<1x16xf32, #tpu.memory_space<vmem>>, %arg3: memref<16x128xf32, #tpu.memory_space<vmem>>, %arg4: memref<128x128xbf16, #tpu.memory_space<vmem>>, %arg5: memref<128x256xbf16, #tpu.memory_space<vmem>>, %arg6: memref<256x384xbf16, #tpu.memory_space<vmem>>, %arg7: memref<384x256xbf16, #tpu.memory_space<vmem>>, %arg8: memref<128x128xf32, #tpu.memory_space<vmem>>, %arg9: memref<128x128xf32, #tpu.memory_space<vmem>>, %arg10: memref<256x128xf32, #tpu.memory_space<vmem>>, %arg11: memref<128x256xf32, #tpu.memory_space<vmem>>, %arg12: memref<384x128xf32, #tpu.memory_space<vmem>>, %arg13: memref<128x384xf32, #tpu.memory_space<vmem>>, %arg14: memref<8x128xf32, #tpu.memory_space<vmem>>, %arg15: memref<16x128xf32, #tpu.memory_space<vmem>>) attributes {dimension_semantics = [#tpu.dimension_semantics<arbitrary>], iteration_bounds = array<i64: 1>, scalar_prefetch = 0 : i64, scratch_operands = 0 : i64, tpu.core_type = #tpu.core_type<tc>, window_params = [{pipeline_mode = #tpu.pipeline_mode<synchronous>, transform_indices = @transform_0, window_bounds = array<i64: 16, 128>}, {pipeline_mode = #tpu.pipeline_mode<synchronous>, transform_indices = @transform_1, window_bounds = array<i64: 1, 16>}, {pipeline_mode = #tpu.pipeline_mode<synchronous>, transform_indices = @transform_2, window_bounds = array<i64: 16, 128>}, {pipeline_mode = #tpu.pipeline_mode<synchronous>, transform_indices = @transform_3, window_bounds = array<i64: 128, 128>}, {pipeline_mode = #tpu.pipeline_mode<synchronous>, transform_indices = @transform_4, window_bounds = array<i64: 128, 256>}, {pipeline_mode = #tpu.pipeline_mode<synchronous>, transform_indices = @transform_5, window_bounds = array<i64: 256, 384>}, {pipeline_mode = #tpu.pipeline_mode<synchronous>, transform_indices = @transform_6, window_bounds = array<i64: 384, 256>}, {pipeline_mode = #tpu.pipeline_mode<synchronous>, transform_indices = @transform_7, window_bounds = array<i64: 128, 128>}, {pipeline_mode = #tpu.pipeline_mode<synchronous>, transform_indices = @transform_8, window_bounds = array<i64: 128, 128>}, {pipeline_mode = #tpu.pipeline_mode<synchronous>, transform_indices = @transform_9, window_bounds = array<i64: 256, 128>}, {pipeline_mode = #tpu.pipeline_mode<synchronous>, transform_indices = @transform_10, window_bounds = array<i64: 128, 256>}, {pipeline_mode = #tpu.pipeline_mode<synchronous>, transform_indices = @transform_11, window_bounds = array<i64: 384, 128>}, {pipeline_mode = #tpu.pipeline_mode<synchronous>, transform_indices = @transform_12, window_bounds = array<i64: 128, 384>}, {pipeline_mode = #tpu.pipeline_mode<synchronous>, transform_indices = @transform_13, window_bounds = array<i64: 8, 128>}, {pipeline_mode = #tpu.pipeline_mode<synchronous>, transform_indices = @transform_14, window_bounds = array<i64: 16, 128>}]} {
    %c0 = arith.constant 0 : index
    %c0_0 = arith.constant 0 : index
    %0 = vector.load %arg2[%c0, %c0_0] : memref<1x16xf32, #tpu.memory_space<vmem>>, vector<1x16xf32>
    %c0_1 = arith.constant 0 : index
    %c0_2 = arith.constant 0 : index
    %1 = vector.load %arg14[%c0_1, %c0_2] : memref<8x128xf32, #tpu.memory_space<vmem>>, vector<8x128xf32>
    %c0_3 = arith.constant 0 : index
    %c0_4 = arith.constant 0 : index
    %2 = vector.load %arg1[%c0_3, %c0_4] : memref<16x128xf32, #tpu.memory_space<vmem>>, vector<16x128xf32>
    %3 = arith.truncf %2 : vector<16x128xf32> to vector<16x128xbf16>
    %c0_5 = arith.constant 0 : index
    %c0_6 = arith.constant 0 : index
    %4 = vector.load %arg4[%c0_5, %c0_6] : memref<128x128xbf16, #tpu.memory_space<vmem>>, vector<128x128xbf16>
    %cst = arith.constant dense<0.000000e+00> : vector<16x128xf32>
    %5 = tpu.matmul %3, %4, %cst {dimension_numbers = #tpu.dot_dimension_numbers<[1], [0], [0], [1], [0, 0, 1, 1], [], []>} : vector<16x128xbf16>, vector<128x128xbf16>, vector<16x128xf32> -> vector<16x128xf32>
    %6 = vector.extract_strided_slice %1 {offsets = [0, 0], sizes = [1, 128], strides = [1, 1]} : vector<8x128xf32> to vector<1x128xf32>
    %7 = vector.extract_strided_slice %1 {offsets = [1, 0], sizes = [1, 128], strides = [1, 1]} : vector<8x128xf32> to vector<1x128xf32>
    %cst_7 = arith.constant dense<0.000000e+00> : vector<1x128xf32>
    %8 = tpu.matmul %0, %5, %cst_7 {dimension_numbers = #tpu.dot_dimension_numbers<[1], [0], [0], [1], [0, 0, 1, 1], [], []>} : vector<1x16xf32>, vector<16x128xf32>, vector<1x128xf32> -> vector<1x128xf32>
    %9 = arith.mulf %5, %5 : vector<16x128xf32>
    %cst_8 = arith.constant dense<0.000000e+00> : vector<1x128xf32>
    %10 = tpu.matmul %0, %9, %cst_8 {dimension_numbers = #tpu.dot_dimension_numbers<[1], [0], [0], [1], [0, 0, 1, 1], [], []>} : vector<1x16xf32>, vector<16x128xf32>, vector<1x128xf32> -> vector<1x128xf32>
    %c0_9 = arith.constant 0 : index
    %c0_10 = arith.constant 0 : index
    %11 = vector.load %arg8[%c0_9, %c0_10] : memref<128x128xf32, #tpu.memory_space<vmem>>, vector<128x128xf32>
    %cst_11 = arith.constant dense<0.000000e+00> : vector<1x128xf32>
    %12 = tpu.matmul %8, %11, %cst_11 {dimension_numbers = #tpu.dot_dimension_numbers<[1], [0], [0], [1], [0, 0, 1, 1], [], []>} : vector<1x128xf32>, vector<128x128xf32>, vector<1x128xf32> -> vector<1x128xf32>
    %c0_12 = arith.constant 0 : index
    %c0_13 = arith.constant 0 : index
    %13 = vector.load %arg8[%c0_12, %c0_13] : memref<128x128xf32, #tpu.memory_space<vmem>>, vector<128x128xf32>
    %cst_14 = arith.constant dense<0.000000e+00> : vector<1x128xf32>
    %14 = tpu.matmul %10, %13, %cst_14 {dimension_numbers = #tpu.dot_dimension_numbers<[1], [0], [0], [1], [0, 0, 1, 1], [], []>} : vector<1x128xf32>, vector<128x128xf32>, vector<1x128xf32> -> vector<1x128xf32>
    %cst_15 = arith.constant 0.00520833349 : f32
    %15 = vector.broadcast %cst_15 : f32 to vector<1x128xf32>
    %16 = arith.mulf %12, %15 : vector<1x128xf32>
    %cst_16 = arith.constant 0.00520833349 : f32
    %17 = vector.broadcast %cst_16 : f32 to vector<1x128xf32>
    %18 = arith.mulf %14, %17 : vector<1x128xf32>
    %19 = arith.mulf %16, %16 : vector<1x128xf32>
    %20 = arith.subf %18, %19 : vector<1x128xf32>
    %cst_17 = arith.constant 0.000000e+00 : f32
    %21 = vector.broadcast %cst_17 : f32 to vector<1x128xf32>
    %22 = arith.maximumf %20, %21 : vector<1x128xf32>
    %cst_18 = arith.constant 9.99999974E-6 : f32
    %23 = vector.broadcast %cst_18 : f32 to vector<1x128xf32>
    %24 = arith.addf %22, %23 : vector<1x128xf32>
    %25 = math.rsqrt %24 : vector<1x128xf32>
    %26 = arith.mulf %6, %25 : vector<1x128xf32>
    %27 = arith.mulf %16, %26 : vector<1x128xf32>
    %28 = arith.subf %7, %27 : vector<1x128xf32>
    %c0_19 = arith.constant 0 : index
    %c0_20 = arith.constant 0 : index
    %29 = vector.load %arg9[%c0_19, %c0_20] : memref<128x128xf32, #tpu.memory_space<vmem>>, vector<128x128xf32>
    %cst_21 = arith.constant dense<0.000000e+00> : vector<1x128xf32>
    %30 = tpu.matmul %26, %29, %cst_21 {dimension_numbers = #tpu.dot_dimension_numbers<[1], [0], [0], [1], [0, 0, 1, 1], [], []>} : vector<1x128xf32>, vector<128x128xf32>, vector<1x128xf32> -> vector<1x128xf32>
    %c0_22 = arith.constant 0 : index
    %c0_23 = arith.constant 0 : index
    %31 = vector.load %arg9[%c0_22, %c0_23] : memref<128x128xf32, #tpu.memory_space<vmem>>, vector<128x128xf32>
    %cst_24 = arith.constant dense<0.000000e+00> : vector<1x128xf32>
    %32 = tpu.matmul %28, %31, %cst_24 {dimension_numbers = #tpu.dot_dimension_numbers<[1], [0], [0], [1], [0, 0, 1, 1], [], []>} : vector<1x128xf32>, vector<128x128xf32>, vector<1x128xf32> -> vector<1x128xf32>
    %33 = vector.broadcast %30 : vector<1x128xf32> to vector<16x128xf32>
    %34 = arith.mulf %5, %33 : vector<16x128xf32>
    %35 = vector.broadcast %32 : vector<1x128xf32> to vector<16x128xf32>
    %36 = arith.addf %34, %35 : vector<16x128xf32>
    %cst_25 = arith.constant 0.000000e+00 : f32
    %37 = vector.broadcast %cst_25 : f32 to vector<16x128xf32>
    %38 = arith.cmpf ogt, %36, %37 : vector<16x128xf32>
    %cst_26 = arith.constant 2.000000e-01 : f32
    %39 = vector.broadcast %cst_26 : f32 to vector<16x128xf32>
    %40 = arith.mulf %39, %36 : vector<16x128xf32>
    %41 = arith.select %38, %36, %40 : vector<16x128xi1>, vector<16x128xf32>
    %42 = arith.truncf %41 : vector<16x128xf32> to vector<16x128xbf16>
    %c0_27 = arith.constant 0 : index
    %c0_28 = arith.constant 0 : index
    %43 = vector.load %arg5[%c0_27, %c0_28] : memref<128x256xbf16, #tpu.memory_space<vmem>>, vector<128x256xbf16>
    %cst_29 = arith.constant dense<0.000000e+00> : vector<16x256xf32>
    %44 = tpu.matmul %42, %43, %cst_29 {dimension_numbers = #tpu.dot_dimension_numbers<[1], [0], [0], [1], [0, 0, 1, 1], [], []>} : vector<16x128xbf16>, vector<128x256xbf16>, vector<16x256xf32> -> vector<16x256xf32>
    %45 = vector.extract_strided_slice %1 {offsets = [2, 0], sizes = [1, 128], strides = [1, 1]} : vector<8x128xf32> to vector<1x128xf32>
    %46 = vector.extract_strided_slice %1 {offsets = [3, 0], sizes = [1, 128], strides = [1, 1]} : vector<8x128xf32> to vector<1x128xf32>
    %cst_30 = arith.constant dense<0.000000e+00> : vector<1x256xf32>
    %47 = tpu.matmul %0, %44, %cst_30 {dimension_numbers = #tpu.dot_dimension_numbers<[1], [0], [0], [1], [0, 0, 1, 1], [], []>} : vector<1x16xf32>, vector<16x256xf32>, vector<1x256xf32> -> vector<1x256xf32>
    %48 = arith.mulf %44, %44 : vector<16x256xf32>
    %cst_31 = arith.constant dense<0.000000e+00> : vector<1x256xf32>
    %49 = tpu.matmul %0, %48, %cst_31 {dimension_numbers = #tpu.dot_dimension_numbers<[1], [0], [0], [1], [0, 0, 1, 1], [], []>} : vector<1x16xf32>, vector<16x256xf32>, vector<1x256xf32> -> vector<1x256xf32>
    %c0_32 = arith.constant 0 : index
    %c0_33 = arith.constant 0 : index
    %50 = vector.load %arg10[%c0_32, %c0_33] : memref<256x128xf32, #tpu.memory_space<vmem>>, vector<256x128xf32>
    %cst_34 = arith.constant dense<0.000000e+00> : vector<1x128xf32>
    %51 = tpu.matmul %47, %50, %cst_34 {dimension_numbers = #tpu.dot_dimension_numbers<[1], [0], [0], [1], [0, 0, 1, 1], [], []>} : vector<1x256xf32>, vector<256x128xf32>, vector<1x128xf32> -> vector<1x128xf32>
    %c0_35 = arith.constant 0 : index
    %c0_36 = arith.constant 0 : index
    %52 = vector.load %arg10[%c0_35, %c0_36] : memref<256x128xf32, #tpu.memory_space<vmem>>, vector<256x128xf32>
    %cst_37 = arith.constant dense<0.000000e+00> : vector<1x128xf32>
    %53 = tpu.matmul %49, %52, %cst_37 {dimension_numbers = #tpu.dot_dimension_numbers<[1], [0], [0], [1], [0, 0, 1, 1], [], []>} : vector<1x256xf32>, vector<256x128xf32>, vector<1x128xf32> -> vector<1x128xf32>
    %cst_38 = arith.constant 0.010416667 : f32
    %54 = vector.broadcast %cst_38 : f32 to vector<1x128xf32>
    %55 = arith.mulf %51, %54 : vector<1x128xf32>
    %cst_39 = arith.constant 0.010416667 : f32
    %56 = vector.broadcast %cst_39 : f32 to vector<1x128xf32>
    %57 = arith.mulf %53, %56 : vector<1x128xf32>
    %58 = arith.mulf %55, %55 : vector<1x128xf32>
    %59 = arith.subf %57, %58 : vector<1x128xf32>
    %cst_40 = arith.constant 0.000000e+00 : f32
    %60 = vector.broadcast %cst_40 : f32 to vector<1x128xf32>
    %61 = arith.maximumf %59, %60 : vector<1x128xf32>
    %cst_41 = arith.constant 9.99999974E-6 : f32
    %62 = vector.broadcast %cst_41 : f32 to vector<1x128xf32>
    %63 = arith.addf %61, %62 : vector<1x128xf32>
    %64 = math.rsqrt %63 : vector<1x128xf32>
    %65 = arith.mulf %45, %64 : vector<1x128xf32>
    %66 = arith.mulf %55, %65 : vector<1x128xf32>
    %67 = arith.subf %46, %66 : vector<1x128xf32>
    %c0_42 = arith.constant 0 : index
    %c0_43 = arith.constant 0 : index
    %68 = vector.load %arg11[%c0_42, %c0_43] : memref<128x256xf32, #tpu.memory_space<vmem>>, vector<128x256xf32>
    %cst_44 = arith.constant dense<0.000000e+00> : vector<1x256xf32>
    %69 = tpu.matmul %65, %68, %cst_44 {dimension_numbers = #tpu.dot_dimension_numbers<[1], [0], [0], [1], [0, 0, 1, 1], [], []>} : vector<1x128xf32>, vector<128x256xf32>, vector<1x256xf32> -> vector<1x256xf32>
    %c0_45 = arith.constant 0 : index
    %c0_46 = arith.constant 0 : index
    %70 = vector.load %arg11[%c0_45, %c0_46] : memref<128x256xf32, #tpu.memory_space<vmem>>, vector<128x256xf32>
    %cst_47 = arith.constant dense<0.000000e+00> : vector<1x256xf32>
    %71 = tpu.matmul %67, %70, %cst_47 {dimension_numbers = #tpu.dot_dimension_numbers<[1], [0], [0], [1], [0, 0, 1, 1], [], []>} : vector<1x128xf32>, vector<128x256xf32>, vector<1x256xf32> -> vector<1x256xf32>
    %72 = vector.broadcast %69 : vector<1x256xf32> to vector<16x256xf32>
    %73 = arith.mulf %44, %72 : vector<16x256xf32>
    %74 = vector.broadcast %71 : vector<1x256xf32> to vector<16x256xf32>
    %75 = arith.addf %73, %74 : vector<16x256xf32>
    %cst_48 = arith.constant 0.000000e+00 : f32
    %76 = vector.broadcast %cst_48 : f32 to vector<16x256xf32>
    %77 = arith.cmpf ogt, %75, %76 : vector<16x256xf32>
    %cst_49 = arith.constant 2.000000e-01 : f32
    %78 = vector.broadcast %cst_49 : f32 to vector<16x256xf32>
    %79 = arith.mulf %78, %75 : vector<16x256xf32>
    %80 = arith.select %77, %75, %79 : vector<16x256xi1>, vector<16x256xf32>
    %81 = arith.truncf %80 : vector<16x256xf32> to vector<16x256xbf16>
    %c0_50 = arith.constant 0 : index
    %c0_51 = arith.constant 0 : index
    %82 = vector.load %arg6[%c0_50, %c0_51] : memref<256x384xbf16, #tpu.memory_space<vmem>>, vector<256x384xbf16>
    %cst_52 = arith.constant dense<0.000000e+00> : vector<16x384xf32>
    %83 = tpu.matmul %81, %82, %cst_52 {dimension_numbers = #tpu.dot_dimension_numbers<[1], [0], [0], [1], [0, 0, 1, 1], [], []>} : vector<16x256xbf16>, vector<256x384xbf16>, vector<16x384xf32> -> vector<16x384xf32>
    %84 = vector.extract_strided_slice %1 {offsets = [4, 0], sizes = [1, 128], strides = [1, 1]} : vector<8x128xf32> to vector<1x128xf32>
    %85 = vector.extract_strided_slice %1 {offsets = [5, 0], sizes = [1, 128], strides = [1, 1]} : vector<8x128xf32> to vector<1x128xf32>
    %cst_53 = arith.constant dense<0.000000e+00> : vector<1x384xf32>
    %86 = tpu.matmul %0, %83, %cst_53 {dimension_numbers = #tpu.dot_dimension_numbers<[1], [0], [0], [1], [0, 0, 1, 1], [], []>} : vector<1x16xf32>, vector<16x384xf32>, vector<1x384xf32> -> vector<1x384xf32>
    %87 = arith.mulf %83, %83 : vector<16x384xf32>
    %cst_54 = arith.constant dense<0.000000e+00> : vector<1x384xf32>
    %88 = tpu.matmul %0, %87, %cst_54 {dimension_numbers = #tpu.dot_dimension_numbers<[1], [0], [0], [1], [0, 0, 1, 1], [], []>} : vector<1x16xf32>, vector<16x384xf32>, vector<1x384xf32> -> vector<1x384xf32>
    %c0_55 = arith.constant 0 : index
    %c0_56 = arith.constant 0 : index
    %89 = vector.load %arg12[%c0_55, %c0_56] : memref<384x128xf32, #tpu.memory_space<vmem>>, vector<384x128xf32>
    %cst_57 = arith.constant dense<0.000000e+00> : vector<1x128xf32>
    %90 = tpu.matmul %86, %89, %cst_57 {dimension_numbers = #tpu.dot_dimension_numbers<[1], [0], [0], [1], [0, 0, 1, 1], [], []>} : vector<1x384xf32>, vector<384x128xf32>, vector<1x128xf32> -> vector<1x128xf32>
    %c0_58 = arith.constant 0 : index
    %c0_59 = arith.constant 0 : index
    %91 = vector.load %arg12[%c0_58, %c0_59] : memref<384x128xf32, #tpu.memory_space<vmem>>, vector<384x128xf32>
    %cst_60 = arith.constant dense<0.000000e+00> : vector<1x128xf32>
    %92 = tpu.matmul %88, %91, %cst_60 {dimension_numbers = #tpu.dot_dimension_numbers<[1], [0], [0], [1], [0, 0, 1, 1], [], []>} : vector<1x384xf32>, vector<384x128xf32>, vector<1x128xf32> -> vector<1x128xf32>
    %cst_61 = arith.constant 0.020833334 : f32
    %93 = vector.broadcast %cst_61 : f32 to vector<1x128xf32>
    %94 = arith.mulf %90, %93 : vector<1x128xf32>
    %cst_62 = arith.constant 0.020833334 : f32
    %95 = vector.broadcast %cst_62 : f32 to vector<1x128xf32>
    %96 = arith.mulf %92, %95 : vector<1x128xf32>
    %97 = arith.mulf %94, %94 : vector<1x128xf32>
    %98 = arith.subf %96, %97 : vector<1x128xf32>
    %cst_63 = arith.constant 0.000000e+00 : f32
    %99 = vector.broadcast %cst_63 : f32 to vector<1x128xf32>
    %100 = arith.maximumf %98, %99 : vector<1x128xf32>
    %cst_64 = arith.constant 9.99999974E-6 : f32
    %101 = vector.broadcast %cst_64 : f32 to vector<1x128xf32>
    %102 = arith.addf %100, %101 : vector<1x128xf32>
    %103 = math.rsqrt %102 : vector<1x128xf32>
    %104 = arith.mulf %84, %103 : vector<1x128xf32>
    %105 = arith.mulf %94, %104 : vector<1x128xf32>
    %106 = arith.subf %85, %105 : vector<1x128xf32>
    %c0_65 = arith.constant 0 : index
    %c0_66 = arith.constant 0 : index
    %107 = vector.load %arg13[%c0_65, %c0_66] : memref<128x384xf32, #tpu.memory_space<vmem>>, vector<128x384xf32>
    %cst_67 = arith.constant dense<0.000000e+00> : vector<1x384xf32>
    %108 = tpu.matmul %104, %107, %cst_67 {dimension_numbers = #tpu.dot_dimension_numbers<[1], [0], [0], [1], [0, 0, 1, 1], [], []>} : vector<1x128xf32>, vector<128x384xf32>, vector<1x384xf32> -> vector<1x384xf32>
    %c0_68 = arith.constant 0 : index
    %c0_69 = arith.constant 0 : index
    %109 = vector.load %arg13[%c0_68, %c0_69] : memref<128x384xf32, #tpu.memory_space<vmem>>, vector<128x384xf32>
    %cst_70 = arith.constant dense<0.000000e+00> : vector<1x384xf32>
    %110 = tpu.matmul %106, %109, %cst_70 {dimension_numbers = #tpu.dot_dimension_numbers<[1], [0], [0], [1], [0, 0, 1, 1], [], []>} : vector<1x128xf32>, vector<128x384xf32>, vector<1x384xf32> -> vector<1x384xf32>
    %111 = vector.broadcast %108 : vector<1x384xf32> to vector<16x384xf32>
    %112 = arith.mulf %83, %111 : vector<16x384xf32>
    %113 = vector.broadcast %110 : vector<1x384xf32> to vector<16x384xf32>
    %114 = arith.addf %112, %113 : vector<16x384xf32>
    %cst_71 = arith.constant 0.000000e+00 : f32
    %115 = vector.broadcast %cst_71 : f32 to vector<16x384xf32>
    %116 = arith.cmpf ogt, %114, %115 : vector<16x384xf32>
    %cst_72 = arith.constant 2.000000e-01 : f32
    %117 = vector.broadcast %cst_72 : f32 to vector<16x384xf32>
    %118 = arith.mulf %117, %114 : vector<16x384xf32>
    %119 = arith.select %116, %114, %118 : vector<16x384xi1>, vector<16x384xf32>
    %120 = arith.truncf %119 : vector<16x384xf32> to vector<16x384xbf16>
    %c0_73 = arith.constant 0 : index
    %c0_74 = arith.constant 0 : index
    %121 = vector.load %arg7[%c0_73, %c0_74] : memref<384x256xbf16, #tpu.memory_space<vmem>>, vector<384x256xbf16>
    %cst_75 = arith.constant dense<0.000000e+00> : vector<16x256xf32>
    %122 = tpu.matmul %120, %121, %cst_75 {dimension_numbers = #tpu.dot_dimension_numbers<[1], [0], [0], [1], [0, 0, 1, 1], [], []>} : vector<16x384xbf16>, vector<384x256xbf16>, vector<16x256xf32> -> vector<16x256xf32>
    %123 = vector.extract_strided_slice %122 {offsets = [0, 0], sizes = [16, 128], strides = [1, 1]} : vector<16x256xf32> to vector<16x128xf32>
    %124 = vector.extract_strided_slice %122 {offsets = [0, 128], sizes = [16, 128], strides = [1, 1]} : vector<16x256xf32> to vector<16x128xf32>
    %c0_76 = arith.constant 0 : index
    %c0_77 = arith.constant 0 : index
    %125 = vector.load %arg3[%c0_76, %c0_77] : memref<16x128xf32, #tpu.memory_space<vmem>>, vector<16x128xf32>
    %cst_78 = arith.constant 5.000000e-01 : f32
    %126 = vector.broadcast %cst_78 : f32 to vector<16x128xf32>
    %127 = arith.mulf %126, %124 : vector<16x128xf32>
    %128 = math.exp %127 : vector<16x128xf32>
    %129 = arith.mulf %125, %128 : vector<16x128xf32>
    %130 = arith.addf %123, %129 : vector<16x128xf32>
    %c0_79 = arith.constant 0 : index
    %c0_80 = arith.constant 0 : index
    %131 = vector.load %arg15[%c0_79, %c0_80] : memref<16x128xf32, #tpu.memory_space<vmem>>, vector<16x128xf32>
    tpu.vector_store %arg15[%c0_79, %c0_80], %130 {strides = array<i32>} : memref<16x128xf32, #tpu.memory_space<vmem>>, vector<16x128xf32>,
    return
  }
  func.func @transform_0(%arg0: i32) -> (i32, i32) {
    %c0_i32 = arith.constant 0 : i32
    %c0_i32_0 = arith.constant 0 : i32
    %c0_i32_1 = arith.constant 0 : i32
    return %c0_i32, %c0_i32_0 : i32, i32
  }
  func.func @transform_1(%arg0: i32) -> (i32, i32) {
    %c0_i32 = arith.constant 0 : i32
    %c0_i32_0 = arith.constant 0 : i32
    %c0_i32_1 = arith.constant 0 : i32
    return %c0_i32, %c0_i32_0 : i32, i32
  }
  func.func @transform_2(%arg0: i32) -> (i32, i32) {
    %c0_i32 = arith.constant 0 : i32
    %c0_i32_0 = arith.constant 0 : i32
    %c0_i32_1 = arith.constant 0 : i32
    return %c0_i32, %c0_i32_0 : i32, i32
  }
  func.func @transform_3(%arg0: i32) -> (i32, i32) {
    %c0_i32 = arith.constant 0 : i32
    %c0_i32_0 = arith.constant 0 : i32
    %c0_i32_1 = arith.constant 0 : i32
    return %c0_i32, %c0_i32_0 : i32, i32
  }
  func.func @transform_4(%arg0: i32) -> (i32, i32) {
    %c0_i32 = arith.constant 0 : i32
    %c0_i32_0 = arith.constant 0 : i32
    %c0_i32_1 = arith.constant 0 : i32
    return %c0_i32, %c0_i32_0 : i32, i32
  }
  func.func @transform_5(%arg0: i32) -> (i32, i32) {
    %c0_i32 = arith.constant 0 : i32
    %c0_i32_0 = arith.constant 0 : i32
    %c0_i32_1 = arith.constant 0 : i32
    return %c0_i32, %c0_i32_0 : i32, i32
  }
  func.func @transform_6(%arg0: i32) -> (i32, i32) {
    %c0_i32 = arith.constant 0 : i32
    %c0_i32_0 = arith.constant 0 : i32
    %c0_i32_1 = arith.constant 0 : i32
    return %c0_i32, %c0_i32_0 : i32, i32
  }
  func.func @transform_7(%arg0: i32) -> (i32, i32) {
    %c0_i32 = arith.constant 0 : i32
    %c0_i32_0 = arith.constant 0 : i32
    %c0_i32_1 = arith.constant 0 : i32
    return %c0_i32, %c0_i32_0 : i32, i32
  }
  func.func @transform_8(%arg0: i32) -> (i32, i32) {
    %c0_i32 = arith.constant 0 : i32
    %c0_i32_0 = arith.constant 0 : i32
    %c0_i32_1 = arith.constant 0 : i32
    return %c0_i32, %c0_i32_0 : i32, i32
  }
  func.func @transform_9(%arg0: i32) -> (i32, i32) {
    %c0_i32 = arith.constant 0 : i32
    %c0_i32_0 = arith.constant 0 : i32
    %c0_i32_1 = arith.constant 0 : i32
    return %c0_i32, %c0_i32_0 : i32, i32
  }
  func.func @transform_10(%arg0: i32) -> (i32, i32) {
    %c0_i32 = arith.constant 0 : i32
    %c0_i32_0 = arith.constant 0 : i32
    %c0_i32_1 = arith.constant 0 : i32
    return %c0_i32, %c0_i32_0 : i32, i32
  }
  func.func @transform_11(%arg0: i32) -> (i32, i32) {
    %c0_i32 = arith.constant 0 : i32
    %c0_i32_0 = arith.constant 0 : i32
    %c0_i32_1 = arith.constant 0 : i32
    return %c0_i32, %c0_i32_0 : i32, i32
  }
  func.func @transform_12(%arg0: i32) -> (i32, i32) {
    %c0_i32 = arith.constant 0 : i32
    %c0_i32_0 = arith.constant 0 : i32
    %c0_i32_1 = arith.constant 0 : i32
    return %c0_i32, %c0_i32_0 : i32, i32
  }
  func.func @transform_13(%arg0: i32) -> (i32, i32) {
    %c0_i32 = arith.constant 0 : i32
    %c0_i32_0 = arith.constant 0 : i32
    %c0_i32_1 = arith.constant 0 : i32
    return %c0_i32, %c0_i32_0 : i32, i32
  }
  func.func @transform_14(%arg0: i32) -> (i32, i32) {
    %c0_i32 = arith.constant 0 : i32
    %c0_i32_0 = arith.constant 0 : i32
    %c0_i32_1 = arith.constant 0 : i32
    return %c0_i32, %c0_i32_0 : i32, i32
  }
}

</mosaic_0001>

<llo_original>
// kernel: forward.1
$region0: #{forward.1}
  #allocation0 [shape = 'u32[]', space=smem, size = 0x4, offset = 0x4, fixed_abs, tag = 'smem constant byte address 0x4 - core index']
  #allocation1 [shape = 'u32[144,128]{1,0:T(1,128)}', space=vmem, size = 0x12000, scoped, tag = 'internal scratch']
  %s0 = inlined_call_operand.vmem [shape: f32[16,128], index: 0, kind: input, shape index: {}]
  %s1 = inlined_call_operand.vmem [shape: f32[1,16], index: 1, kind: input, shape index: {}]
  %s2 = inlined_call_operand.vmem [shape: f32[16,128], index: 2, kind: input, shape index: {}]
  %s3 = inlined_call_operand.hbm [shape: bf16[128,128], index: 3, kind: input, shape index: {}]
  %s4 = inlined_call_operand.vmem [shape: bf16[128,256], index: 4, kind: input, shape index: {}]
  %s5 = inlined_call_operand.vmem [shape: bf16[256,384], index: 5, kind: input, shape index: {}]
  %s6 = inlined_call_operand.vmem [shape: bf16[384,256], index: 6, kind: input, shape index: {}]
  %s7 = inlined_call_operand.hbm [shape: f32[128,128], index: 7, kind: input, shape index: {}]
  %s8 = inlined_call_operand.hbm [shape: f32[128,128], index: 8, kind: input, shape index: {}]
  %s9 = inlined_call_operand.vmem [shape: f32[256,128], index: 9, kind: input, shape index: {}]
  %s10 = inlined_call_operand.vmem [shape: f32[128,256], index: 10, kind: input, shape index: {}]
  %s11 = inlined_call_operand.vmem [shape: f32[384,128], index: 11, kind: input, shape index: {}]
  %s12 = inlined_call_operand.vmem [shape: f32[128,384], index: 12, kind: input, shape index: {}]
  %s13 = inlined_call_operand.vmem [shape: f32[8,128], index: 13, kind: input, shape index: {}]
  %s14 = inlined_call_operand.vmem [shape: f32[16,128], index: 14, kind: output, shape index: {}]
  %s15 = sld [smem:[#allocation0]]
  $region78: #{forward.1} parent=0
    _
  %s17 = ssub.s32 1, %s15
  %s18 = scalar_select 0, %s17, %s15
  $region1: #{forward.1} parent=0
    #allocation2 [shape = 'u8[32768]{0}', space=vmem, size = 0x8000, scoped, tag = 'input window, operand 3, single buffered']
    #allocation3 [shape = 's32[1]{0}', space=sflag, size = 0x4, scoped, tag = 'scoped memory for forward.1']
    #allocation4 [shape = 'u8[65536]{0}', space=vmem, size = 0x10000, scoped, tag = 'input window, operand 7, single buffered']
    #allocation5 [shape = 's32[1]{0}', space=sflag, size = 0x4, scoped, tag = 'scoped memory for forward.1']
    #allocation6 [shape = 'u8[65536]{0}', space=vmem, size = 0x10000, scoped, tag = 'input window, operand 8, single buffered']
    %19 = vsyncpa [#allocation3], 0
    %20 = vsyncpa [#allocation5], 0
    // Predicated region
    $region2: #{forward.1} parent=1 // pred_check
      _
    $region3: #{forward.1} parent=1 // pred_check_branch
      %22 = sbr.rel (0) target = $region5
    $region4: #{forward.1} parent=1 // pred_region
      _
    $region5: #{forward.1} parent=1 // pred_fallthru
      _
    // Predicated region
    $region6: #{forward.1} parent=1 // pred_check
      _
    $region7: #{forward.1} parent=1 // pred_check_branch
      %24 = sbr.rel (0) target = $region9
    $region8: #{forward.1} parent=1 // pred_region
      _
    $region9: #{forward.1} parent=1 // pred_fallthru
      _
    // Predicated region
    $region10: #{forward.1} parent=1 // pred_check
      _
    $region11: #{forward.1} parent=1 // pred_check_branch
      %26 = sbr.rel (0) target = $region13
    $region12: #{forward.1} parent=1 // pred_region
      _
    $region13: #{forward.1} parent=1 // pred_fallthru
      _
    // Predicated region
    $region14: #{forward.1} parent=1 // pred_check
      _
    $region15: #{forward.1} parent=1 // pred_check_branch
      %28 = sbr.rel (0) target = $region17
    $region16: #{forward.1} parent=1 // pred_region
      %s30 = ssub.s32 1024, 1024
      %31 = vsyncadd [#allocation3], %s30
      %s32 = sshll.u32 [#allocation2], 4
      %s33 = int_to_ptr.vmem [resolvable:$true] %s32
      %38 = dma.hbm_to_vmem [thread:$0]  %s3, 1024, %s33, [#allocation3], 64, 64, 4
    $region17: #{forward.1} parent=1 // pred_fallthru
      _
    // Predicated region
    $region18: #{forward.1} parent=1 // pred_check
      _
    $region19: #{forward.1} parent=1 // pred_check_branch
      %40 = sbr.rel (0) target = $region21
    $region20: #{forward.1} parent=1 // pred_region
      _
    $region21: #{forward.1} parent=1 // pred_fallthru
      _
    // Predicated region
    $region22: #{forward.1} parent=1 // pred_check
      _
    $region23: #{forward.1} parent=1 // pred_check_branch
      %42 = sbr.rel (0) target = $region25
    $region24: #{forward.1} parent=1 // pred_region
      _
    $region25: #{forward.1} parent=1 // pred_fallthru
      _
    // Predicated region
    $region26: #{forward.1} parent=1 // pred_check
      _
    $region27: #{forward.1} parent=1 // pred_check_branch
      %44 = sbr.rel (0) target = $region29
    $region28: #{forward.1} parent=1 // pred_region
      _
    $region29: #{forward.1} parent=1 // pred_fallthru
      _
    // Predicated region
    $region30: #{forward.1} parent=1 // pred_check
      _
    $region31: #{forward.1} parent=1 // pred_check_branch
      %46 = sbr.rel (0) target = $region33
    $region32: #{forward.1} parent=1 // pred_region
      %s48 = ssub.s32 2048, 2048
      %49 = vsyncadd [#allocation5], %s48
      %s50 = sshll.u32 [#allocation4], 4
      %s51 = int_to_ptr.vmem [resolvable:$true] %s50
      %56 = dma.hbm_to_vmem [thread:$0]  %s7, 2048, %s51, [#allocation5], 128, 128, 8
    $region33: #{forward.1} parent=1 // pred_fallthru
      _
    // Predicated region
    $region34: #{forward.1} parent=1 // pred_check
      _
    $region35: #{forward.1} parent=1 // pred_check_branch
      %58 = sbr.rel (0) target = $region37
    $region36: #{forward.1} parent=1 // pred_region
      %s60 = ssub.s32 2048, 2048
      %61 = vsyncadd [#allocation5], %s60
      %s62 = sshll.u32 [#allocation6], 4
      %s63 = int_to_ptr.vmem [resolvable:$true] %s62
      %68 = dma.hbm_to_vmem [thread:$0]  %s8, 2048, %s63, [#allocation5], 128, 128, 8
    $region37: #{forward.1} parent=1 // pred_fallthru
      _
    // Predicated region
    $region38: #{forward.1} parent=1 // pred_check
      _
    $region39: #{forward.1} parent=1 // pred_check_branch
      %70 = sbr.rel (0) target = $region41
    $region40: #{forward.1} parent=1 // pred_region
      _
    $region41: #{forward.1} parent=1 // pred_fallthru
      _
    // Predicated region
    $region42: #{forward.1} parent=1 // pred_check
      _
    $region43: #{forward.1} parent=1 // pred_check_branch
      %72 = sbr.rel (0) target = $region45
    $region44: #{forward.1} parent=1 // pred_region
      _
    $region45: #{forward.1} parent=1 // pred_fallthru
      _
    // Predicated region
    $region46: #{forward.1} parent=1 // pred_check
      _
    $region47: #{forward.1} parent=1 // pred_check_branch
      %74 = sbr.rel (0) target = $region49
    $region48: #{forward.1} parent=1 // pred_region
      _
    $region49: #{forward.1} parent=1 // pred_fallthru
      _
    // Predicated region
    $region50: #{forward.1} parent=1 // pred_check
      _
    $region51: #{forward.1} parent=1 // pred_check_branch
      %76 = sbr.rel (0) target = $region53
    $region52: #{forward.1} parent=1 // pred_region
      _
    $region53: #{forward.1} parent=1 // pred_fallthru
      _
    // Predicated region
    $region54: #{forward.1} parent=1 // pred_check
      _
    $region55: #{forward.1} parent=1 // pred_check_branch
      %78 = sbr.rel (0) target = $region57
    $region56: #{forward.1} parent=1 // pred_region
      _
    $region57: #{forward.1} parent=1 // pred_fallthru
      _
    // Predicated region
    $region58: #{forward.1} parent=1 // pred_check
      _
    $region59: #{forward.1} parent=1 // pred_check_branch
      %80 = sbr.rel (0) target = $region61
    $region60: #{forward.1} parent=1 // pred_region
      %81 = dma.done [#allocation3], 1024
    $region61: #{forward.1} parent=1 // pred_fallthru
      _
    // Predicated region
    $region62: #{forward.1} parent=1 // pred_check
      _
    $region63: #{forward.1} parent=1 // pred_check_branch
      %83 = sbr.rel (0) target = $region65
    $region64: #{forward.1} parent=1 // pred_region
      %84 = dma.done [#allocation5], 2048
    $region65: #{forward.1} parent=1 // pred_fallthru
      _
    // Predicated region
    $region66: #{forward.1} parent=1 // pred_check
      _
    $region67: #{forward.1} parent=1 // pred_check_branch
      %86 = sbr.rel (0) target = $region69
    $region68: #{forward.1} parent=1 // pred_region
      %87 = dma.done [#allocation5], 2048
    $region69: #{forward.1} parent=1 // pred_fallthru
      _
    %v89 = vld [vmem:[%s1] sm:$0x1]
    %v90 = vld [vmem:[%s13] sm:$0xff]
    %v91 = vld [vmem:[%s0] sm:$0xff]
    %v92 = vld [vmem:[%s0 + $0x8] sm:$0xff]
    %v93 = vpack.c.bf16 %v92, %v91
    %v94 = vld [vmem:[#allocation2] sm:$0xf]
    %v95 = vld [vmem:[#allocation2 + $0x4] sm:$0xf]
    %v96 = vld [vmem:[#allocation2 + $0x8] sm:$0xf]
    %v97 = vld [vmem:[#allocation2 + $0xc] sm:$0xf]
    %v98 = vld [vmem:[#allocation2 + $0x10] sm:$0xf]
    %v99 = vld [vmem:[#allocation2 + $0x14] sm:$0xf]
    %v100 = vld [vmem:[#allocation2 + $0x18] sm:$0xf]
    %v101 = vld [vmem:[#allocation2 + $0x1c] sm:$0xf]
    %v102 = vld [vmem:[#allocation2 + $0x20] sm:$0xf]
    %v103 = vld [vmem:[#allocation2 + $0x24] sm:$0xf]
    %v104 = vld [vmem:[#allocation2 + $0x28] sm:$0xf]
    %v105 = vld [vmem:[#allocation2 + $0x2c] sm:$0xf]
    %v106 = vld [vmem:[#allocation2 + $0x30] sm:$0xf]
    %v107 = vld [vmem:[#allocation2 + $0x34] sm:$0xf]
    %v108 = vld [vmem:[#allocation2 + $0x38] sm:$0xf]
    %v109 = vld [vmem:[#allocation2 + $0x3c] sm:$0xf]
    %v126 = vunpack.c.l.b16 %v94
    %v127 = vunpack.c.l.b16 %v95
    %v128 = vunpack.c.l.b16 %v96
    %v129 = vunpack.c.l.b16 %v97
    %v130 = vunpack.c.l.b16 %v98
    %v131 = vunpack.c.l.b16 %v99
    %v132 = vunpack.c.l.b16 %v100
    %v133 = vunpack.c.l.b16 %v101
    %v134 = vunpack.c.l.b16 %v102
    %v135 = vunpack.c.l.b16 %v103
    %v136 = vunpack.c.l.b16 %v104
    %v137 = vunpack.c.l.b16 %v105
    %v138 = vunpack.c.l.b16 %v106
    %v139 = vunpack.c.l.b16 %v107
    %v140 = vunpack.c.l.b16 %v108
    %v141 = vunpack.c.l.b16 %v109
    %v142 = vpack.c.b16 %v127, %v126
    %v143 = vpack.c.b16 %v129, %v128
    %v144 = vpack.c.b16 %v131, %v130
    %v145 = vpack.c.b16 %v133, %v132
    %v146 = vpack.c.b16 %v135, %v134
    %v147 = vpack.c.b16 %v137, %v136
    %v148 = vpack.c.b16 %v139, %v138
    %v149 = vpack.c.b16 %v141, %v140
    %158 = vmatprep.subr.bf16.mxu0 0
    %159 = vmatpush1.bf16.msra.mxu0 %v142
    %160 = vmatprep.subr.bf16.mxu0 0
    %161 = vmatpush1.bf16.msra.mxu0 %v143
    %162 = vmatprep.subr.bf16.mxu0 0
    %163 = vmatpush1.bf16.msra.mxu0 %v144
    %164 = vmatprep.subr.bf16.mxu0 0
    %165 = vmatpush1.bf16.msra.mxu0 %v145
    %166 = vmatprep.subr.bf16.mxu0 0
    %167 = vmatpush1.bf16.msra.mxu0 %v146
    %168 = vmatprep.subr.bf16.mxu0 0
    %169 = vmatpush1.bf16.msra.mxu0 %v147
    %170 = vmatprep.subr.bf16.mxu0 0
    %171 = vmatpush1.bf16.msra.mxu0 %v148
    %172 = vmatprep.subr.bf16.mxu0 0
    %173 = vmatpush1.bf16.msra.mxu0 %v149
    %174 = vmatprep.subr.bf16.mxu0 0
    %175 = vmatpush1.bf16.msra.mxu0 0
    %176 = vmatprep.subr.bf16.mxu0 0
    %177 = vmatpush1.bf16.msra.mxu0 0
    %178 = vmatprep.subr.bf16.mxu0 0
    %179 = vmatpush1.bf16.msra.mxu0 0
    %180 = vmatprep.subr.bf16.mxu0 0
    %181 = vmatpush1.bf16.msra.mxu0 0
    %182 = vmatprep.subr.bf16.mxu0 0
    %183 = vmatpush1.bf16.msra.mxu0 0
    %184 = vmatprep.subr.bf16.mxu0 0
    %185 = vmatpush1.bf16.msra.mxu0 0
    %186 = vmatprep.subr.bf16.mxu0 0
    %187 = vmatpush1.bf16.msra.mxu0 0
    %188 = vmatprep.subr.bf16.mxu0 0
    %189 = vmatpush1.bf16.msra.mxu0 0
    %190 = vmatprep.mubr.bf16.mxu0 0
    %191 = vmatmul.mubr.bf16.gmra.mrb[0].mxu0 %v93
    %v192 = vpop.f32.mrb[0].mxu0
    %v193 = vadd.f32 0.0, %v192
    %v194 = vpop.f32.mrb[0].mxu0
    %v195 = vpop.f32.mrb[0].mxu0
    %v196 = vadd.f32 0.0, %v195
    %v197 = vpop.f32.mrb[0].mxu0
    %198 = vdwg.mxu0
    %vm199 = vcmask 130048
    %v201 = vsel %vm199, %v89, 0
    %203 = vmatprep.subr.mxu0 0.0
    %204 = vmatpush1.msra.mxu0 %v193
    %205 = vmatprep.subr.mxu0 0.0
    %206 = vmatpush1.msra.mxu0 %v196
    %207 = vmatprep.subr.mxu0 0.0
    %208 = vmatpush1.msra.mxu0 0.0
    %209 = vmatprep.subr.mxu0 0.0
    %210 = vmatpush1.msra.mxu0 0.0
    %211 = vmatprep.subr.mxu0 0.0
    %212 = vmatpush1.msra.mxu0 0.0
    %213 = vmatprep.subr.mxu0 0.0
    %214 = vmatpush1.msra.mxu0 0.0
    %215 = vmatprep.subr.mxu0 0.0
    %216 = vmatpush1.msra.mxu0 0.0
    %217 = vmatprep.subr.mxu0 0.0
    %218 = vmatpush1.msra.mxu0 0.0
    %219 = vmatprep.subr.mxu0 0.0
    %220 = vmatpush1.msra.mxu0 0.0
    %221 = vmatprep.subr.mxu0 0.0
    %222 = vmatpush1.msra.mxu0 0.0
    %223 = vmatprep.subr.mxu0 0.0
    %224 = vmatpush1.msra.mxu0 0.0
    %225 = vmatprep.subr.mxu0 0.0
    %226 = vmatpush1.msra.mxu0 0.0
    %227 = vmatprep.subr.mxu0 0.0
    %228 = vmatpush1.msra.mxu0 0.0
    %229 = vmatprep.subr.mxu0 0.0
    %230 = vmatpush1.msra.mxu0 0.0
    %231 = vmatprep.subr.mxu0 0.0
    %232 = vmatpush1.msra.mxu0 0.0
    %233 = vmatprep.subr.mxu0 0.0
    %234 = vmatpush1.msra.mxu0 0.0
    %235 = vmatprep.subr.mxu0 0.0
    %236 = vmatpush1.msra.mxu0 0.0
    %237 = vmatprep.subr.mxu0 0.0
    %238 = vmatpush1.msra.mxu0 0.0
    %239 = vmatprep.subr.mxu0 0.0
    %240 = vmatpush1.msra.mxu0 0.0
    %241 = vmatprep.subr.mxu0 0.0
    %242 = vmatpush1.msra.mxu0 0.0
    %243 = vmatprep.subr.mxu0 0.0
    %244 = vmatpush1.msra.mxu0 0.0
    %245 = vmatprep.subr.mxu0 0.0
    %246 = vmatpush1.msra.mxu0 0.0
    %247 = vmatprep.subr.mxu0 0.0
    %248 = vmatpush1.msra.mxu0 0.0
    %249 = vmatprep.subr.mxu0 0.0
    %250 = vmatpush1.msra.mxu0 0.0
    %251 = vmatprep.subr.mxu0 0.0
    %252 = vmatpush1.msra.mxu0 0.0
    %253 = vmatprep.subr.mxu0 0.0
    %254 = vmatpush1.msra.mxu0 0.0
    %255 = vmatprep.subr.mxu0 0.0
    %256 = vmatpush1.msra.mxu0 0.0
    %257 = vmatprep.subr.mxu0 0.0
    %258 = vmatpush1.msra.mxu0 0.0
    %259 = vmatprep.subr.mxu0 0.0
    %260 = vmatpush1.msra.mxu0 0.0
    %261 = vmatprep.subr.mxu0 0.0
    %262 = vmatpush1.msra.mxu0 0.0
    %263 = vmatprep.subr.mxu0 0.0
    %264 = vmatpush1.msra.mxu0 0.0
    %265 = vmatprep.subr.mxu0 0.0
    %266 = vmatpush1.msra.mxu0 0.0
    %267 = vmatprep.mubr.f32.mxu0 0.0
    %268 = vmatmul.mubr.f32.gmra.mrb[0].mxu0 %v201
    %v269 = vpop.f32.mrb[0].mxu0
    %v270 = vadd.f32 0.0, %v269
    %v271 = vpop.f32.mrb[0].mxu0
    %272 = vdwg.mxu0
    %v273 = vmul.f32 %v193, %v193
    %v274 = vmul.f32 %v196, %v196
    %275 = vmatprep.subr.mxu0 0.0
    %276 = vmatpush1.msra.mxu0 %v273
    %277 = vmatprep.subr.mxu0 0.0
    %278 = vmatpush1.msra.mxu0 %v274
    %279 = vmatprep.subr.mxu0 0.0
    %280 = vmatpush1.msra.mxu0 0.0
    %281 = vmatprep.subr.mxu0 0.0
    %282 = vmatpush1.msra.mxu0 0.0
    %283 = vmatprep.subr.mxu0 0.0
    %284 = vmatpush1.msra.mxu0 0.0
    %285 = vmatprep.subr.mxu0 0.0
    %286 = vmatpush1.msra.mxu0 0.0
    %287 = vmatprep.subr.mxu0 0.0
    %288 = vmatpush1.msra.mxu0 0.0
    %289 = vmatprep.subr.mxu0 0.0
    %290 = vmatpush1.msra.mxu0 0.0
    %291 = vmatprep.subr.mxu0 0.0
    %292 = vmatpush1.msra.mxu0 0.0
    %293 = vmatprep.subr.mxu0 0.0
    %294 = vmatpush1.msra.mxu0 0.0
    %295 = vmatprep.subr.mxu0 0.0
    %296 = vmatpush1.msra.mxu0 0.0
    %297 = vmatprep.subr.mxu0 0.0
    %298 = vmatpush1.msra.mxu0 0.0
    %299 = vmatprep.subr.mxu0 0.0
    %300 = vmatpush1.msra.mxu0 0.0
    %301 = vmatprep.subr.mxu0 0.0
    %302 = vmatpush1.msra.mxu0 0.0
    %303 = vmatprep.subr.mxu0 0.0
    %304 = vmatpush1.msra.mxu0 0.0
    %305 = vmatprep.subr.mxu0 0.0
    %306 = vmatpush1.msra.mxu0 0.0
    %307 = vmatprep.subr.mxu0 0.0
    %308 = vmatpush1.msra.mxu0 0.0
    %309 = vmatprep.subr.mxu0 0.0
    %310 = vmatpush1.msra.mxu0 0.0
    %311 = vmatprep.subr.mxu0 0.0
    %312 = vmatpush1.msra.mxu0 0.0
    %313 = vmatprep.subr.mxu0 0.0
    %314 = vmatpush1.msra.mxu0 0.0
    %315 = vmatprep.subr.mxu0 0.0
    %316 = vmatpush1.msra.mxu0 0.0
    %317 = vmatprep.subr.mxu0 0.0
    %318 = vmatpush1.msra.mxu0 0.0
    %319 = vmatprep.subr.mxu0 0.0
    %320 = vmatpush1.msra.mxu0 0.0
    %321 = vmatprep.subr.mxu0 0.0
    %322 = vmatpush1.msra.mxu0 0.0
    %323 = vmatprep.subr.mxu0 0.0
    %324 = vmatpush1.msra.mxu0 0.0
    %325 = vmatprep.subr.mxu0 0.0
    %326 = vmatpush1.msra.mxu0 0.0
    %327 = vmatprep.subr.mxu0 0.0
    %328 = vmatpush1.msra.mxu0 0.0
    %329 = vmatprep.subr.mxu0 0.0
    %330 = vmatpush1.msra.mxu0 0.0
    %331 = vmatprep.subr.mxu0 0.0
    %332 = vmatpush1.msra.mxu0 0.0
    %333 = vmatprep.subr.mxu0 0.0
    %334 = vmatpush1.msra.mxu0 0.0
    %335 = vmatprep.subr.mxu0 0.0
    %336 = vmatpush1.msra.mxu0 0.0
    %337 = vmatprep.subr.mxu0 0.0
    %338 = vmatpush1.msra.mxu0 0.0
    %339 = vmatprep.mubr.f32.mxu0 0.0
    %340 = vmatmul.mubr.f32.gmra.mrb[0].mxu0 %v201
    %v341 = vpop.f32.mrb[0].mxu0
    %v342 = vadd.f32 0.0, %v341
    %v343 = vpop.f32.mrb[0].mxu0
    %344 = vdwg.mxu0
    %v345 = vld [vmem:[#allocation4] sm:$0xff]
    %v346 = vld [vmem:[#allocation4 + $0x8] sm:$0xff]
    %v347 = vld [vmem:[#allocation4 + $0x10] sm:$0xff]
    %v348 = vld [vmem:[#allocation4 + $0x18] sm:$0xff]
    %v349 = vld [vmem:[#allocation4 + $0x20] sm:$0xff]
    %v350 = vld [vmem:[#allocation4 + $0x28] sm:$0xff]
    %v351 = vld [vmem:[#allocation4 + $0x30] sm:$0xff]
    %v352 = vld [vmem:[#allocation4 + $0x38] sm:$0xff]
    %v353 = vld [vmem:[#allocation4 + $0x40] sm:$0xff]
    %v354 = vld [vmem:[#allocation4 + $0x48] sm:$0xff]
    %v355 = vld [vmem:[#allocation4 + $0x50] sm:$0xff]
    %v356 = vld [vmem:[#allocation4 + $0x58] sm:$0xff]
    %v357 = vld [vmem:[#allocation4 + $0x60] sm:$0xff]
    %v358 = vld [vmem:[#allocation4 + $0x68] sm:$0xff]
    %v359 = vld [vmem:[#allocation4 + $0x70] sm:$0xff]
    %v360 = vld [vmem:[#allocation4 + $0x78] sm:$0xff]
    %361 = vmatprep.subr.mxu0 0.0
    %362 = vmatpush1.msra.mxu0 %v345
    %363 = vmatprep.subr.mxu0 0.0
    %364 = vmatpush1.msra.mxu0 %v346
    %365 = vmatprep.subr.mxu0 0.0
    %366 = vmatpush1.msra.mxu0 %v347
    %367 = vmatprep.subr.mxu0 0.0
    %368 = vmatpush1.msra.mxu0 %v348
    %369 = vmatprep.subr.mxu0 0.0
    %370 = vmatpush1.msra.mxu0 %v349
    %371 = vmatprep.subr.mxu0 0.0
    %372 = vmatpush1.msra.mxu0 %v350
    %373 = vmatprep.subr.mxu0 0.0
    %374 = vmatpush1.msra.mxu0 %v351
    %375 = vmatprep.subr.mxu0 0.0
    %376 = vmatpush1.msra.mxu0 %v352
    %377 = vmatprep.subr.mxu0 0.0
    %378 = vmatpush1.msra.mxu0 %v353
    %379 = vmatprep.subr.mxu0 0.0
    %380 = vmatpush1.msra.mxu0 %v354
    %381 = vmatprep.subr.mxu0 0.0
    %382 = vmatpush1.msra.mxu0 %v355
    %383 = vmatprep.subr.mxu0 0.0
    %384 = vmatpush1.msra.mxu0 %v356
    %385 = vmatprep.subr.mxu0 0.0
    %386 = vmatpush1.msra.mxu0 %v357
    %387 = vmatprep.subr.mxu0 0.0
    %388 = vmatpush1.msra.mxu0 %v358
    %389 = vmatprep.subr.mxu0 0.0
    %390 = vmatpush1.msra.mxu0 %v359
    %391 = vmatprep.subr.mxu0 0.0
    %392 = vmatpush1.msra.mxu0 %v360
    %393 = vmatprep.subr.mxu0 0.0
    %394 = vmatpush1.msra.mxu0 0.0
    %395 = vmatprep.subr.mxu0 0.0
    %396 = vmatpush1.msra.mxu0 0.0
    %397 = vmatprep.subr.mxu0 0.0
    %398 = vmatpush1.msra.mxu0 0.0
    %399 = vmatprep.subr.mxu0 0.0
    %400 = vmatpush1.msra.mxu0 0.0
    %401 = vmatprep.subr.mxu0 0.0
    %402 = vmatpush1.msra.mxu0 0.0
    %403 = vmatprep.subr.mxu0 0.0
    %404 = vmatpush1.msra.mxu0 0.0
    %405 = vmatprep.subr.mxu0 0.0
    %406 = vmatpush1.msra.mxu0 0.0
    %407 = vmatprep.subr.mxu0 0.0
    %408 = vmatpush1.msra.mxu0 0.0
    %409 = vmatprep.subr.mxu0 0.0
    %410 = vmatpush1.msra.mxu0 0.0
    %411 = vmatprep.subr.mxu0 0.0
    %412 = vmatpush1.msra.mxu0 0.0
    %413 = vmatprep.subr.mxu0 0.0
    %414 = vmatpush1.msra.mxu0 0.0
    %415 = vmatprep.subr.mxu0 0.0
    %416 = vmatpush1.msra.mxu0 0.0
    %417 = vmatprep.subr.mxu0 0.0
    %418 = vmatpush1.msra.mxu0 0.0
    %419 = vmatprep.subr.mxu0 0.0
    %420 = vmatpush1.msra.mxu0 0.0
    %421 = vmatprep.subr.mxu0 0.0
    %422 = vmatpush1.msra.mxu0 0.0
    %423 = vmatprep.subr.mxu0 0.0
    %424 = vmatpush1.msra.mxu0 0.0
    %425 = vmatprep.mubr.f32.mxu0 0.0
    %426 = vmatmul.mubr.f32.gmra.mrb[0].mxu0 %v270
    %v427 = vpop.f32.mrb[0].mxu0
    %v428 = vadd.f32 0.0, %v427
    %v429 = vpop.f32.mrb[0].mxu0
    %430 = vdwg.mxu0
    %431 = vmatprep.subr.mxu0 0.0
    %432 = vmatpush1.msra.mxu0 %v345
    %433 = vmatprep.subr.mxu0 0.0
    %434 = vmatpush1.msra.mxu0 %v346
    %435 = vmatprep.subr.mxu0 0.0
    %436 = vmatpush1.msra.mxu0 %v347
    %437 = vmatprep.subr.mxu0 0.0
    %438 = vmatpush1.msra.mxu0 %v348
    %439 = vmatprep.subr.mxu0 0.0
    %440 = vmatpush1.msra.mxu0 %v349
    %441 = vmatprep.subr.mxu0 0.0
    %442 = vmatpush1.msra.mxu0 %v350
    %443 = vmatprep.subr.mxu0 0.0
    %444 = vmatpush1.msra.mxu0 %v351
    %445 = vmatprep.subr.mxu0 0.0
    %446 = vmatpush1.msra.mxu0 %v352
    %447 = vmatprep.subr.mxu0 0.0
    %448 = vmatpush1.msra.mxu0 %v353
    %449 = vmatprep.subr.mxu0 0.0
    %450 = vmatpush1.msra.mxu0 %v354
    %451 = vmatprep.subr.mxu0 0.0
    %452 = vmatpush1.msra.mxu0 %v355
    %453 = vmatprep.subr.mxu0 0.0
    %454 = vmatpush1.msra.mxu0 %v356
    %455 = vmatprep.subr.mxu0 0.0
    %456 = vmatpush1.msra.mxu0 %v357
    %457 = vmatprep.subr.mxu0 0.0
    %458 = vmatpush1.msra.mxu0 %v358
    %459 = vmatprep.subr.mxu0 0.0
    %460 = vmatpush1.msra.mxu0 %v359
    %461 = vmatprep.subr.mxu0 0.0
    %462 = vmatpush1.msra.mxu0 %v360
    %463 = vmatprep.subr.mxu0 0.0
    %464 = vmatpush1.msra.mxu0 0.0
    %465 = vmatprep.subr.mxu0 0.0
    %466 = vmatpush1.msra.mxu0 0.0
    %467 = vmatprep.subr.mxu0 0.0
    %468 = vmatpush1.msra.mxu0 0.0
    %469 = vmatprep.subr.mxu0 0.0
    %470 = vmatpush1.msra.mxu0 0.0
    %471 = vmatprep.subr.mxu0 0.0
    %472 = vmatpush1.msra.mxu0 0.0
    %473 = vmatprep.subr.mxu0 0.0
    %474 = vmatpush1.msra.mxu0 0.0
    %475 = vmatprep.subr.mxu0 0.0
    %476 = vmatpush1.msra.mxu0 0.0
    %477 = vmatprep.subr.mxu0 0.0
    %478 = vmatpush1.msra.mxu0 0.0
    %479 = vmatprep.subr.mxu0 0.0
    %480 = vmatpush1.msra.mxu0 0.0
    %481 = vmatprep.subr.mxu0 0.0
    %482 = vmatpush1.msra.mxu0 0.0
    %483 = vmatprep.subr.mxu0 0.0
    %484 = vmatpush1.msra.mxu0 0.0
    %485 = vmatprep.subr.mxu0 0.0
    %486 = vmatpush1.msra.mxu0 0.0
    %487 = vmatprep.subr.mxu0 0.0
    %488 = vmatpush1.msra.mxu0 0.0
    %489 = vmatprep.subr.mxu0 0.0
    %490 = vmatpush1.msra.mxu0 0.0
    %491 = vmatprep.subr.mxu0 0.0
    %492 = vmatpush1.msra.mxu0 0.0
    %493 = vmatprep.subr.mxu0 0.0
    %494 = vmatpush1.msra.mxu0 0.0
    %495 = vmatprep.mubr.f32.mxu0 0.0
    %496 = vmatmul.mubr.f32.gmra.mrb[0].mxu0 %v342
    %v497 = vpop.f32.mrb[0].mxu0
    %v498 = vadd.f32 0.0, %v497
    %v499 = vpop.f32.mrb[0].mxu0
    %500 = vdwg.mxu0
    %v501 = vmul.f32 %v428, 0.0052083335
    %v502 = vmul.f32 %v498, 0.0052083335
    %v503 = vmul.f32 %v501, %v501
    %v504 = vsub.f32 %v502, %v503
    %v505 = vmax.f32 %v504, 0.0
    %v506 = vadd.f32 %v505, 1e-05
    %v507 = vrsqrt.pop %v506
    %v508 = vmul.f32 %v90, %v507
    %v509 = vmul.f32 %v501, %v508
    %v511 = vrot.slane %v509, 7
    %v513 = vsub.f32 %v90, %v511
    %v514 = vld [vmem:[#allocation6] sm:$0xff]
    %v515 = vld [vmem:[#allocation6 + $0x8] sm:$0xff]
    %v516 = vld [vmem:[#allocation6 + $0x10] sm:$0xff]
    %v517 = vld [vmem:[#allocation6 + $0x18] sm:$0xff]
    %v518 = vld [vmem:[#allocation6 + $0x20] sm:$0xff]
    %v519 = vld [vmem:[#allocation6 + $0x28] sm:$0xff]
    %v520 = vld [vmem:[#allocation6 + $0x30] sm:$0xff]
    %v521 = vld [vmem:[#allocation6 + $0x38] sm:$0xff]
    %v522 = vld [vmem:[#allocation6 + $0x40] sm:$0xff]
    %v523 = vld [vmem:[#allocation6 + $0x48] sm:$0xff]
    %v524 = vld [vmem:[#allocation6 + $0x50] sm:$0xff]
    %v525 = vld [vmem:[#allocation6 + $0x58] sm:$0xff]
    %v526 = vld [vmem:[#allocation6 + $0x60] sm:$0xff]
    %v527 = vld [vmem:[#allocation6 + $0x68] sm:$0xff]
    %v528 = vld [vmem:[#allocation6 + $0x70] sm:$0xff]
    %v529 = vld [vmem:[#allocation6 + $0x78] sm:$0xff]
    %530 = vmatprep.subr.mxu0 0.0
    %531 = vmatpush1.msra.mxu0 %v514
    %532 = vmatprep.subr.mxu0 0.0
    %533 = vmatpush1.msra.mxu0 %v515
    %534 = vmatprep.subr.mxu0 0.0
    %535 = vmatpush1.msra.mxu0 %v516
    %536 = vmatprep.subr.mxu0 0.0
    %537 = vmatpush1.msra.mxu0 %v517
    %538 = vmatprep.subr.mxu0 0.0
    %539 = vmatpush1.msra.mxu0 %v518
    %540 = vmatprep.subr.mxu0 0.0
    %541 = vmatpush1.msra.mxu0 %v519
    %542 = vmatprep.subr.mxu0 0.0
    %543 = vmatpush1.msra.mxu0 %v520
    %544 = vmatprep.subr.mxu0 0.0
    %545 = vmatpush1.msra.mxu0 %v521
    %546 = vmatprep.subr.mxu0 0.0
    %547 = vmatpush1.msra.mxu0 %v522
    %548 = vmatprep.subr.mxu0 0.0
    %549 = vmatpush1.msra.mxu0 %v523
    %550 = vmatprep.subr.mxu0 0.0
    %551 = vmatpush1.msra.mxu0 %v524
    %552 = vmatprep.subr.mxu0 0.0
    %553 = vmatpush1.msra.mxu0 %v525
    %554 = vmatprep.subr.mxu0 0.0
    %555 = vmatpush1.msra.mxu0 %v526
    %556 = vmatprep.subr.mxu0 0.0
    %557 = vmatpush1.msra.mxu0 %v527
    %558 = vmatprep.subr.mxu0 0.0
    %559 = vmatpush1.msra.mxu0 %v528
    %560 = vmatprep.subr.mxu0 0.0
    %561 = vmatpush1.msra.mxu0 %v529
    %562 = vmatprep.subr.mxu0 0.0
    %563 = vmatpush1.msra.mxu0 0.0
    %564 = vmatprep.subr.mxu0 0.0
    %565 = vmatpush1.msra.mxu0 0.0
    %566 = vmatprep.subr.mxu0 0.0
    %567 = vmatpush1.msra.mxu0 0.0
    %568 = vmatprep.subr.mxu0 0.0
    %569 = vmatpush1.msra.mxu0 0.0
    %570 = vmatprep.subr.mxu0 0.0
    %571 = vmatpush1.msra.mxu0 0.0
    %572 = vmatprep.subr.mxu0 0.0
    %573 = vmatpush1.msra.mxu0 0.0
    %574 = vmatprep.subr.mxu0 0.0
    %575 = vmatpush1.msra.mxu0 0.0
    %576 = vmatprep.subr.mxu0 0.0
    %577 = vmatpush1.msra.mxu0 0.0
    %578 = vmatprep.subr.mxu0 0.0
    %579 = vmatpush1.msra.mxu0 0.0
    %580 = vmatprep.subr.mxu0 0.0
    %581 = vmatpush1.msra.mxu0 0.0
    %582 = vmatprep.subr.mxu0 0.0
    %583 = vmatpush1.msra.mxu0 0.0
    %584 = vmatprep.subr.mxu0 0.0
    %585 = vmatpush1.msra.mxu0 0.0
    %586 = vmatprep.subr.mxu0 0.0
    %587 = vmatpush1.msra.mxu0 0.0
    %588 = vmatprep.subr.mxu0 0.0
    %589 = vmatpush1.msra.mxu0 0.0
    %590 = vmatprep.subr.mxu0 0.0
    %591 = vmatpush1.msra.mxu0 0.0
    %592 = vmatprep.subr.mxu0 0.0
    %593 = vmatpush1.msra.mxu0 0.0
    %594 = vmatprep.mubr.f32.mxu0 0.0
    %595 = vmatmul.mubr.f32.gmra.mrb[0].mxu0 %v508
    %v596 = vpop.f32.mrb[0].mxu0
    %v597 = vadd.f32 0.0, %v596
    %v598 = vpop.f32.mrb[0].mxu0
    %599 = vdwg.mxu0
    %v601 = vrot.slane %v513, 1
    %603 = vmatprep.subr.mxu0 0.0
    %604 = vmatpush1.msra.mxu0 %v514
    %605 = vmatprep.subr.mxu0 0.0
    %606 = vmatpush1.msra.mxu0 %v515
    %607 = vmatprep.subr.mxu0 0.0
    %608 = vmatpush1.msra.mxu0 %v516
    %609 = vmatprep.subr.mxu0 0.0
    %610 = vmatpush1.msra.mxu0 %v517
    %611 = vmatprep.subr.mxu0 0.0
    %612 = vmatpush1.msra.mxu0 %v518
    %613 = vmatprep.subr.mxu0 0.0
    %614 = vmatpush1.msra.mxu0 %v519
    %615 = vmatprep.subr.mxu0 0.0
    %616 = vmatpush1.msra.mxu0 %v520
    %617 = vmatprep.subr.mxu0 0.0
    %618 = vmatpush1.msra.mxu0 %v521
    %619 = vmatprep.subr.mxu0 0.0
    %620 = vmatpush1.msra.mxu0 %v522
    %621 = vmatprep.subr.mxu0 0.0
    %622 = vmatpush1.msra.mxu0 %v523
    %623 = vmatprep.subr.mxu0 0.0
    %624 = vmatpush1.msra.mxu0 %v524
    %625 = vmatprep.subr.mxu0 0.0
    %626 = vmatpush1.msra.mxu0 %v525
    %627 = vmatprep.subr.mxu0 0.0
    %628 = vmatpush1.msra.mxu0 %v526
    %629 = vmatprep.subr.mxu0 0.0
    %630 = vmatpush1.msra.mxu0 %v527
    %631 = vmatprep.subr.mxu0 0.0
    %632 = vmatpush1.msra.mxu0 %v528
    %633 = vmatprep.subr.mxu0 0.0
    %634 = vmatpush1.msra.mxu0 %v529
    %635 = vmatprep.subr.mxu0 0.0
    %636 = vmatpush1.msra.mxu0 0.0
    %637 = vmatprep.subr.mxu0 0.0
    %638 = vmatpush1.msra.mxu0 0.0
    %639 = vmatprep.subr.mxu0 0.0
    %640 = vmatpush1.msra.mxu0 0.0
    %641 = vmatprep.subr.mxu0 0.0
    %642 = vmatpush1.msra.mxu0 0.0
    %643 = vmatprep.subr.mxu0 0.0
    %644 = vmatpush1.msra.mxu0 0.0
    %645 = vmatprep.subr.mxu0 0.0
    %646 = vmatpush1.msra.mxu0 0.0
    %647 = vmatprep.subr.mxu0 0.0
    %648 = vmatpush1.msra.mxu0 0.0
    %649 = vmatprep.subr.mxu0 0.0
    %650 = vmatpush1.msra.mxu0 0.0
    %651 = vmatprep.subr.mxu0 0.0
    %652 = vmatpush1.msra.mxu0 0.0
    %653 = vmatprep.subr.mxu0 0.0
    %654 = vmatpush1.msra.mxu0 0.0
    %655 = vmatprep.subr.mxu0 0.0
    %656 = vmatpush1.msra.mxu0 0.0
    %657 = vmatprep.subr.mxu0 0.0
    %658 = vmatpush1.msra.mxu0 0.0
    %659 = vmatprep.subr.mxu0 0.0
    %660 = vmatpush1.msra.mxu0 0.0
    %661 = vmatprep.subr.mxu0 0.0
    %662 = vmatpush1.msra.mxu0 0.0
    %663 = vmatprep.subr.mxu0 0.0
    %664 = vmatpush1.msra.mxu0 0.0
    %665 = vmatprep.subr.mxu0 0.0
    %666 = vmatpush1.msra.mxu0 0.0
    %667 = vmatprep.mubr.f32.mxu0 0.0
    %668 = vmatmul.mubr.f32.gmra.mrb[0].mxu0 %v601
    %v669 = vpop.f32.mrb[0].mxu0
    %v670 = vadd.f32 0.0, %v669
    %v671 = vpop.f32.mrb[0].mxu0
    %672 = vdwg.mxu0
    %v673 = vlaneseq
    %v674 = vshrl.u32 %v673, 7
    %v675 = vsub.s32 0, %v674
    %v676 = vrot.slane %v597, %v675
    %v677 = vmul.f32 %v193, %v676
    %v678 = vmul.f32 %v196, %v676
    %v679 = vlaneseq
    %v680 = vshrl.u32 %v679, 7
    %v681 = vsub.s32 0, %v680
    %v682 = vrot.slane %v670, %v681
    %v683 = vadd.f32 %v677, %v682
    %v684 = vadd.f32 %v678, %v682
    %vm685 = vcmp.gt.f32.partialorder %v683, 0.0
    %vm686 = vcmp.gt.f32.partialorder %v684, 0.0
    %v687 = vmul.f32 %v683, 0.2
    %v688 = vmul.f32 %v684, 0.2
    %v689 = vsel %vm685, %v683, %v687
    %v690 = vsel %vm686, %v684, %v688
    %v691 = vpack.c.bf16 %v690, %v689
    %v692 = vld [vmem:[%s4] sm:$0xff]
    %v693 = vld [vmem:[%s4 + $0x8] sm:$0xff]
    %v694 = vld [vmem:[%s4 + $0x10] sm:$0xff]
    %v695 = vld [vmem:[%s4 + $0x18] sm:$0xff]
    %v696 = vld [vmem:[%s4 + $0x20] sm:$0xff]
    %v697 = vld [vmem:[%s4 + $0x28] sm:$0xff]
    %v698 = vld [vmem:[%s4 + $0x30] sm:$0xff]
    %v699 = vld [vmem:[%s4 + $0x38] sm:$0xff]
    %v700 = vld [vmem:[%s4 + $0x40] sm:$0xff]
    %v701 = vld [vmem:[%s4 + $0x48] sm:$0xff]
    %v702 = vld [vmem:[%s4 + $0x50] sm:$0xff]
    %v703 = vld [vmem:[%s4 + $0x58] sm:$0xff]
    %v704 = vld [vmem:[%s4 + $0x60] sm:$0xff]
    %v705 = vld [vmem:[%s4 + $0x68] sm:$0xff]
    %v706 = vld [vmem:[%s4 + $0x70] sm:$0xff]
    %v707 = vld [vmem:[%s4 + $0x78] sm:$0xff]
    %v724 = vunpack.c.l.b16 %v692
    %v725 = vunpack.c.h.b16 %v692
    %v726 = vunpack.c.l.b16 %v693
    %v727 = vunpack.c.h.b16 %v693
    %v728 = vunpack.c.l.b16 %v694
    %v729 = vunpack.c.h.b16 %v694
    %v730 = vunpack.c.l.b16 %v695
    %v731 = vunpack.c.h.b16 %v695
    %v732 = vunpack.c.l.b16 %v696
    %v733 = vunpack.c.h.b16 %v696
    %v734 = vunpack.c.l.b16 %v697
    %v735 = vunpack.c.h.b16 %v697
    %v736 = vunpack.c.l.b16 %v698
    %v737 = vunpack.c.h.b16 %v698
    %v738 = vunpack.c.l.b16 %v699
    %v739 = vunpack.c.h.b16 %v699
    %v740 = vunpack.c.l.b16 %v700
    %v741 = vunpack.c.h.b16 %v700
    %v742 = vunpack.c.l.b16 %v701
    %v743 = vunpack.c.h.b16 %v701
    %v744 = vunpack.c.l.b16 %v702
    %v745 = vunpack.c.h.b16 %v702
    %v746 = vunpack.c.l.b16 %v703
    %v747 = vunpack.c.h.b16 %v703
    %v748 = vunpack.c.l.b16 %v704
    %v749 = vunpack.c.h.b16 %v704
    %v750 = vunpack.c.l.b16 %v705
    %v751 = vunpack.c.h.b16 %v705
    %v752 = vunpack.c.l.b16 %v706
    %v753 = vunpack.c.h.b16 %v706
    %v754 = vunpack.c.l.b16 %v707
    %v755 = vunpack.c.h.b16 %v707
    %v756 = vpack.c.b16 %v726, %v724
    %v757 = vpack.c.b16 %v727, %v725
    %v758 = vpack.c.b16 %v730, %v728
    %v759 = vpack.c.b16 %v731, %v729
    %v760 = vpack.c.b16 %v734, %v732
    %v761 = vpack.c.b16 %v735, %v733
    %v762 = vpack.c.b16 %v738, %v736
    %v763 = vpack.c.b16 %v739, %v737
    %v764 = vpack.c.b16 %v742, %v740
    %v765 = vpack.c.b16 %v743, %v741
    %v766 = vpack.c.b16 %v746, %v744
    %v767 = vpack.c.b16 %v747, %v745
    %v768 = vpack.c.b16 %v750, %v748
    %v769 = vpack.c.b16 %v751, %v749
    %v770 = vpack.c.b16 %v754, %v752
    %v771 = vpack.c.b16 %v755, %v753
    %788 = vmatprep.subr.bf16.mxu0 %v757
    %789 = vmatpush1.bf16.msra.mxu0 %v756
    %790 = vmatprep.subr.bf16.mxu0 %v759
    %791 = vmatpush1.bf16.msra.mxu0 %v758
    %792 = vmatprep.subr.bf16.mxu0 %v761
    %793 = vmatpush1.bf16.msra.mxu0 %v760
    %794 = vmatprep.subr.bf16.mxu0 %v763
    %795 = vmatpush1.bf16.msra.mxu0 %v762
    %796 = vmatprep.subr.bf16.mxu0 %v765
    %797 = vmatpush1.bf16.msra.mxu0 %v764
    %798 = vmatprep.subr.bf16.mxu0 %v767
    %799 = vmatpush1.bf16.msra.mxu0 %v766
    %800 = vmatprep.subr.bf16.mxu0 %v769
    %801 = vmatpush1.bf16.msra.mxu0 %v768
    %802 = vmatprep.subr.bf16.mxu0 %v771
    %803 = vmatpush1.bf16.msra.mxu0 %v770
    %804 = vmatprep.subr.bf16.mxu0 0
    %805 = vmatpush1.bf16.msra.mxu0 0
    %806 = vmatprep.subr.bf16.mxu0 0
    %807 = vmatpush1.bf16.msra.mxu0 0
    %808 = vmatprep.subr.bf16.mxu0 0
    %809 = vmatpush1.bf16.msra.mxu0 0
    %810 = vmatprep.subr.bf16.mxu0 0
    %811 = vmatpush1.bf16.msra.mxu0 0
    %812 = vmatprep.subr.bf16.mxu0 0
    %813 = vmatpush1.bf16.msra.mxu0 0
    %814 = vmatprep.subr.bf16.mxu0 0
    %815 = vmatpush1.bf16.msra.mxu0 0
    %816 = vmatprep.subr.bf16.mxu0 0
    %817 = vmatpush1.bf16.msra.mxu0 0
    %818 = vmatprep.subr.bf16.mxu0 0
    %819 = vmatpush1.bf16.msra.mxu0 0
    %820 = vmatprep.mubr.bf16.mxu0 0
    %821 = vmatmul.mubr.bf16.gmra.mrb[0].mxu0 %v691
    %v822 = vpop.f32.mrb[0].mxu0
    %v823 = vadd.f32 0.0, %v822
    %v824 = vpop.f32.mrb[0].mxu0
    %v825 = vadd.f32 0.0, %v824
    %v826 = vpop.f32.mrb[0].mxu0
    %v827 = vadd.f32 0.0, %v826
    %v828 = vpop.f32.mrb[0].mxu0
    %v829 = vadd.f32 0.0, %v828
    %830 = vdwg.mxu0
    %831 = vmatprep.subr.mxu0 %v825
    %832 = vmatpush1.msra.mxu0 %v823
    %833 = vmatprep.subr.mxu0 %v829
    %834 = vmatpush1.msra.mxu0 %v827
    %835 = vmatprep.subr.mxu0 0.0
    %836 = vmatpush1.msra.mxu0 0.0
    %837 = vmatprep.subr.mxu0 0.0
    %838 = vmatpush1.msra.mxu0 0.0
    %839 = vmatprep.subr.mxu0 0.0
    %840 = vmatpush1.msra.mxu0 0.0
    %841 = vmatprep.subr.mxu0 0.0
    %842 = vmatpush1.msra.mxu0 0.0
    %843 = vmatprep.subr.mxu0 0.0
    %844 = vmatpush1.msra.mxu0 0.0
    %845 = vmatprep.subr.mxu0 0.0
    %846 = vmatpush1.msra.mxu0 0.0
    %847 = vmatprep.subr.mxu0 0.0
    %848 = vmatpush1.msra.mxu0 0.0
    %849 = vmatprep.subr.mxu0 0.0
    %850 = vmatpush1.msra.mxu0 0.0
    %851 = vmatprep.subr.mxu0 0.0
    %852 = vmatpush1.msra.mxu0 0.0
    %853 = vmatprep.subr.mxu0 0.0
    %854 = vmatpush1.msra.mxu0 0.0
    %855 = vmatprep.subr.mxu0 0.0
    %856 = vmatpush1.msra.mxu0 0.0
    %857 = vmatprep.subr.mxu0 0.0
    %858 = vmatpush1.msra.mxu0 0.0
    %859 = vmatprep.subr.mxu0 0.0
    %860 = vmatpush1.msra.mxu0 0.0
    %861 = vmatprep.subr.mxu0 0.0
    %862 = vmatpush1.msra.mxu0 0.0
    %863 = vmatprep.subr.mxu0 0.0
    %864 = vmatpush1.msra.mxu0 0.0
    %865 = vmatprep.subr.mxu0 0.0
    %866 = vmatpush1.msra.mxu0 0.0
    %867 = vmatprep.subr.mxu0 0.0
    %868 = vmatpush1.msra.mxu0 0.0
    %869 = vmatprep.subr.mxu0 0.0
    %870 = vmatpush1.msra.mxu0 0.0
    %871 = vmatprep.subr.mxu0 0.0
    %872 = vmatpush1.msra.mxu0 0.0
    %873 = vmatprep.subr.mxu0 0.0
    %874 = vmatpush1.msra.mxu0 0.0
    %875 = vmatprep.subr.mxu0 0.0
    %876 = vmatpush1.msra.mxu0 0.0
    %877 = vmatprep.subr.mxu0 0.0
    %878 = vmatpush1.msra.mxu0 0.0
    %879 = vmatprep.subr.mxu0 0.0
    %880 = vmatpush1.msra.mxu0 0.0
    %881 = vmatprep.subr.mxu0 0.0
    %882 = vmatpush1.msra.mxu0 0.0
    %883 = vmatprep.subr.mxu0 0.0
    %884 = vmatpush1.msra.mxu0 0.0
    %885 = vmatprep.subr.mxu0 0.0
    %886 = vmatpush1.msra.mxu0 0.0
    %887 = vmatprep.subr.mxu0 0.0
    %888 = vmatpush1.msra.mxu0 0.0
    %889 = vmatprep.subr.mxu0 0.0
    %890 = vmatpush1.msra.mxu0 0.0
    %891 = vmatprep.subr.mxu0 0.0
    %892 = vmatpush1.msra.mxu0 0.0
    %893 = vmatprep.subr.mxu0 0.0
    %894 = vmatpush1.msra.mxu0 0.0
    %895 = vmatprep.mubr.f32.mxu0 0.0
    %896 = vmatmul.mubr.f32.gmra.mrb[0].mxu0 %v201
    %v897 = vpop.f32.mrb[0].mxu0
    %v898 = vadd.f32 0.0, %v897
    %v899 = vpop.f32.mrb[0].mxu0
    %v900 = vadd.f32 0.0, %v899
    %901 = vdwg.mxu0
    %v902 = vmul.f32 %v823, %v823
    %v903 = vmul.f32 %v825, %v825
    %v904 = vmul.f32 %v827, %v827
    %v905 = vmul.f32 %v829, %v829
    %906 = vmatprep.subr.mxu0 %v903
    %907 = vmatpush1.msra.mxu0 %v902
    %908 = vmatprep.subr.mxu0 %v905
    %909 = vmatpush1.msra.mxu0 %v904
    %910 = vmatprep.subr.mxu0 0.0
    %911 = vmatpush1.msra.mxu0 0.0
    %912 = vmatprep.subr.mxu0 0.0
    %913 = vmatpush1.msra.mxu0 0.0
    %914 = vmatprep.subr.mxu0 0.0
    %915 = vmatpush1.msra.mxu0 0.0
    %916 = vmatprep.subr.mxu0 0.0
    %917 = vmatpush1.msra.mxu0 0.0
    %918 = vmatprep.subr.mxu0 0.0
    %919 = vmatpush1.msra.mxu0 0.0
    %920 = vmatprep.subr.mxu0 0.0
    %921 = vmatpush1.msra.mxu0 0.0
    %922 = vmatprep.subr.mxu0 0.0
    %923 = vmatpush1.msra.mxu0 0.0
    %924 = vmatprep.subr.mxu0 0.0
    %925 = vmatpush1.msra.mxu0 0.0
    %926 = vmatprep.subr.mxu0 0.0
    %927 = vmatpush1.msra.mxu0 0.0
    %928 = vmatprep.subr.mxu0 0.0
    %929 = vmatpush1.msra.mxu0 0.0
    %930 = vmatprep.subr.mxu0 0.0
    %931 = vmatpush1.msra.mxu0 0.0
    %932 = vmatprep.subr.mxu0 0.0
    %933 = vmatpush1.msra.mxu0 0.0
    %934 = vmatprep.subr.mxu0 0.0
    %935 = vmatpush1.msra.mxu0 0.0
    %936 = vmatprep.subr.mxu0 0.0
    %937 = vmatpush1.msra.mxu0 0.0
    %938 = vmatprep.subr.mxu0 0.0
    %939 = vmatpush1.msra.mxu0 0.0
    %940 = vmatprep.subr.mxu0 0.0
    %941 = vmatpush1.msra.mxu0 0.0
    %942 = vmatprep.subr.mxu0 0.0
    %943 = vmatpush1.msra.mxu0 0.0
    %944 = vmatprep.subr.mxu0 0.0
    %945 = vmatpush1.msra.mxu0 0.0
    %946 = vmatprep.subr.mxu0 0.0
    %947 = vmatpush1.msra.mxu0 0.0
    %948 = vmatprep.subr.mxu0 0.0
    %949 = vmatpush1.msra.mxu0 0.0
    %950 = vmatprep.subr.mxu0 0.0
    %951 = vmatpush1.msra.mxu0 0.0
    %952 = vmatprep.subr.mxu0 0.0
    %953 = vmatpush1.msra.mxu0 0.0
    %954 = vmatprep.subr.mxu0 0.0
    %955 = vmatpush1.msra.mxu0 0.0
    %956 = vmatprep.subr.mxu0 0.0
    %957 = vmatpush1.msra.mxu0 0.0
    %958 = vmatprep.subr.mxu0 0.0
    %959 = vmatpush1.msra.mxu0 0.0
    %960 = vmatprep.subr.mxu0 0.0
    %961 = vmatpush1.msra.mxu0 0.0
    %962 = vmatprep.subr.mxu0 0.0
    %963 = vmatpush1.msra.mxu0 0.0
    %964 = vmatprep.subr.mxu0 0.0
    %965 = vmatpush1.msra.mxu0 0.0
    %966 = vmatprep.subr.mxu0 0.0
    %967 = vmatpush1.msra.mxu0 0.0
    %968 = vmatprep.subr.mxu0 0.0
    %969 = vmatpush1.msra.mxu0 0.0
    %970 = vmatprep.mubr.f32.mxu0 0.0
    %971 = vmatmul.mubr.f32.gmra.mrb[0].mxu0 %v201
    %v972 = vpop.f32.mrb[0].mxu0
    %v973 = vadd.f32 0.0, %v972
    %v974 = vpop.f32.mrb[0].mxu0
    %v975 = vadd.f32 0.0, %v974
    %976 = vdwg.mxu0
    %v977 = vld [vmem:[%s9] sm:$0xff]
    %v978 = vld [vmem:[%s9 + $0x8] sm:$0xff]
    %v979 = vld [vmem:[%s9 + $0x10] sm:$0xff]
    %v980 = vld [vmem:[%s9 + $0x18] sm:$0xff]
    %v981 = vld [vmem:[%s9 + $0x20] sm:$0xff]
    %v982 = vld [vmem:[%s9 + $0x28] sm:$0xff]
    %v983 = vld [vmem:[%s9 + $0x30] sm:$0xff]
    %v984 = vld [vmem:[%s9 + $0x38] sm:$0xff]
    %v985 = vld [vmem:[%s9 + $0x40] sm:$0xff]
    %v986 = vld [vmem:[%s9 + $0x48] sm:$0xff]
    %v987 = vld [vmem:[%s9 + $0x50] sm:$0xff]
    %v988 = vld [vmem:[%s9 + $0x58] sm:$0xff]
    %v989 = vld [vmem:[%s9 + $0x60] sm:$0xff]
    %v990 = vld [vmem:[%s9 + $0x68] sm:$0xff]
    %v991 = vld [vmem:[%s9 + $0x70] sm:$0xff]
    %v992 = vld [vmem:[%s9 + $0x78] sm:$0xff]
    %v993 = vld [vmem:[%s9 + $0x80] sm:$0xff]
    %v994 = vld [vmem:[%s9 + $0x88] sm:$0xff]
    %v995 = vld [vmem:[%s9 + $0x90] sm:$0xff]
    %v996 = vld [vmem:[%s9 + $0x98] sm:$0xff]
    %v997 = vld [vmem:[%s9 + $0xa0] sm:$0xff]
    %v998 = vld [vmem:[%s9 + $0xa8] sm:$0xff]
    %v999 = vld [vmem:[%s9 + $0xb0] sm:$0xff]
    %v1000 = vld [vmem:[%s9 + $0xb8] sm:$0xff]
    %v1001 = vld [vmem:[%s9 + $0xc0] sm:$0xff]
    %v1002 = vld [vmem:[%s9 + $0xc8] sm:$0xff]
    %v1003 = vld [vmem:[%s9 + $0xd0] sm:$0xff]
    %v1004 = vld [vmem:[%s9 + $0xd8] sm:$0xff]
    %v1005 = vld [vmem:[%s9 + $0xe0] sm:$0xff]
    %v1006 = vld [vmem:[%s9 + $0xe8] sm:$0xff]
    %v1007 = vld [vmem:[%s9 + $0xf0] sm:$0xff]
    %v1008 = vld [vmem:[%s9 + $0xf8] sm:$0xff]
    %1009 = vmatprep.subr.mxu0 0.0
    %1010 = vmatpush1.msra.mxu0 %v977
    %1011 = vmatprep.subr.mxu0 0.0
    %1012 = vmatpush1.msra.mxu0 %v978
    %1013 = vmatprep.subr.mxu0 0.0
    %1014 = vmatpush1.msra.mxu0 %v979
    %1015 = vmatprep.subr.mxu0 0.0
    %1016 = vmatpush1.msra.mxu0 %v980
    %1017 = vmatprep.subr.mxu0 0.0
    %1018 = vmatpush1.msra.mxu0 %v981
    %1019 = vmatprep.subr.mxu0 0.0
    %1020 = vmatpush1.msra.mxu0 %v982
    %1021 = vmatprep.subr.mxu0 0.0
    %1022 = vmatpush1.msra.mxu0 %v983
    %1023 = vmatprep.subr.mxu0 0.0
    %1024 = vmatpush1.msra.mxu0 %v984
    %1025 = vmatprep.subr.mxu0 0.0
    %1026 = vmatpush1.msra.mxu0 %v985
    %1027 = vmatprep.subr.mxu0 0.0
    %1028 = vmatpush1.msra.mxu0 %v986
    %1029 = vmatprep.subr.mxu0 0.0
    %1030 = vmatpush1.msra.mxu0 %v987
    %1031 = vmatprep.subr.mxu0 0.0
    %1032 = vmatpush1.msra.mxu0 %v988
    %1033 = vmatprep.subr.mxu0 0.0
    %1034 = vmatpush1.msra.mxu0 %v989
    %1035 = vmatprep.subr.mxu0 0.0
    %1036 = vmatpush1.msra.mxu0 %v990
    %1037 = vmatprep.subr.mxu0 0.0
    %1038 = vmatpush1.msra.mxu0 %v991
    %1039 = vmatprep.subr.mxu0 0.0
    %1040 = vmatpush1.msra.mxu0 %v992
    %1041 = vmatprep.subr.mxu0 0.0
    %1042 = vmatpush1.msra.mxu0 %v993
    %1043 = vmatprep.subr.mxu0 0.0
    %1044 = vmatpush1.msra.mxu0 %v994
    %1045 = vmatprep.subr.mxu0 0.0
    %1046 = vmatpush1.msra.mxu0 %v995
    %1047 = vmatprep.subr.mxu0 0.0
    %1048 = vmatpush1.msra.mxu0 %v996
    %1049 = vmatprep.subr.mxu0 0.0
    %1050 = vmatpush1.msra.mxu0 %v997
    %1051 = vmatprep.subr.mxu0 0.0
    %1052 = vmatpush1.msra.mxu0 %v998
    %1053 = vmatprep.subr.mxu0 0.0
    %1054 = vmatpush1.msra.mxu0 %v999
    %1055 = vmatprep.subr.mxu0 0.0
    %1056 = vmatpush1.msra.mxu0 %v1000
    %1057 = vmatprep.subr.mxu0 0.0
    %1058 = vmatpush1.msra.mxu0 %v1001
    %1059 = vmatprep.subr.mxu0 0.0
    %1060 = vmatpush1.msra.mxu0 %v1002
    %1061 = vmatprep.subr.mxu0 0.0
    %1062 = vmatpush1.msra.mxu0 %v1003
    %1063 = vmatprep.subr.mxu0 0.0
    %1064 = vmatpush1.msra.mxu0 %v1004
    %1065 = vmatprep.subr.mxu0 0.0
    %1066 = vmatpush1.msra.mxu0 %v1005
    %1067 = vmatprep.subr.mxu0 0.0
    %1068 = vmatpush1.msra.mxu0 %v1006
    %1069 = vmatprep.subr.mxu0 0.0
    %1070 = vmatpush1.msra.mxu0 %v1007
    %1071 = vmatprep.subr.mxu0 0.0
    %1072 = vmatpush1.msra.mxu0 %v1008
    %1073 = vmatprep.mubr.f32.mxu0 %v900
    %1074 = vmatmul.mubr.f32.gmra.mrb[0].mxu0 %v898
    %v1075 = vpop.f32.mrb[0].mxu0
    %v1076 = vadd.f32 0.0, %v1075
    %v1077 = vpop.f32.mrb[0].mxu0
    %1078 = vdwg.mxu0
    %1079 = vmatprep.subr.mxu0 0.0
    %1080 = vmatpush1.msra.mxu0 %v977
    %1081 = vmatprep.subr.mxu0 0.0
    %1082 = vmatpush1.msra.mxu0 %v978
    %1083 = vmatprep.subr.mxu0 0.0
    %1084 = vmatpush1.msra.mxu0 %v979
    %1085 = vmatprep.subr.mxu0 0.0
    %1086 = vmatpush1.msra.mxu0 %v980
    %1087 = vmatprep.subr.mxu0 0.0
    %1088 = vmatpush1.msra.mxu0 %v981
    %1089 = vmatprep.subr.mxu0 0.0
    %1090 = vmatpush1.msra.mxu0 %v982
    %1091 = vmatprep.subr.mxu0 0.0
    %1092 = vmatpush1.msra.mxu0 %v983
    %1093 = vmatprep.subr.mxu0 0.0
    %1094 = vmatpush1.msra.mxu0 %v984
    %1095 = vmatprep.subr.mxu0 0.0
    %1096 = vmatpush1.msra.mxu0 %v985
    %1097 = vmatprep.subr.mxu0 0.0
    %1098 = vmatpush1.msra.mxu0 %v986
    %1099 = vmatprep.subr.mxu0 0.0
    %1100 = vmatpush1.msra.mxu0 %v987
    %1101 = vmatprep.subr.mxu0 0.0
    %1102 = vmatpush1.msra.mxu0 %v988
    %1103 = vmatprep.subr.mxu0 0.0
    %1104 = vmatpush1.msra.mxu0 %v989
    %1105 = vmatprep.subr.mxu0 0.0
    %1106 = vmatpush1.msra.mxu0 %v990
    %1107 = vmatprep.subr.mxu0 0.0
    %1108 = vmatpush1.msra.mxu0 %v991
    %1109 = vmatprep.subr.mxu0 0.0
    %1110 = vmatpush1.msra.mxu0 %v992
    %1111 = vmatprep.subr.mxu0 0.0
    %1112 = vmatpush1.msra.mxu0 %v993
    %1113 = vmatprep.subr.mxu0 0.0
    %1114 = vmatpush1.msra.mxu0 %v994
    %1115 = vmatprep.subr.mxu0 0.0
    %1116 = vmatpush1.msra.mxu0 %v995
    %1117 = vmatprep.subr.mxu0 0.0
    %1118 = vmatpush1.msra.mxu0 %v996
    %1119 = vmatprep.subr.mxu0 0.0
    %1120 = vmatpush1.msra.mxu0 %v997
    %1121 = vmatprep.subr.mxu0 0.0
    %1122 = vmatpush1.msra.mxu0 %v998
    %1123 = vmatprep.subr.mxu0 0.0
    %1124 = vmatpush1.msra.mxu0 %v999
    %1125 = vmatprep.subr.mxu0 0.0
    %1126 = vmatpush1.msra.mxu0 %v1000
    %1127 = vmatprep.subr.mxu0 0.0
    %1128 = vmatpush1.msra.mxu0 %v1001
    %1129 = vmatprep.subr.mxu0 0.0
    %1130 = vmatpush1.msra.mxu0 %v1002
    %1131 = vmatprep.subr.mxu0 0.0
    %1132 = vmatpush1.msra.mxu0 %v1003
    %1133 = vmatprep.subr.mxu0 0.0
    %1134 = vmatpush1.msra.mxu0 %v1004
    %1135 = vmatprep.subr.mxu0 0.0
    %1136 = vmatpush1.msra.mxu0 %v1005
    %1137 = vmatprep.subr.mxu0 0.0
    %1138 = vmatpush1.msra.mxu0 %v1006
    %1139 = vmatprep.subr.mxu0 0.0
    %1140 = vmatpush1.msra.mxu0 %v1007
    %1141 = vmatprep.subr.mxu0 0.0
    %1142 = vmatpush1.msra.mxu0 %v1008
    %1143 = vmatprep.mubr.f32.mxu0 %v975
    %1144 = vmatmul.mubr.f32.gmra.mrb[0].mxu0 %v973
    %v1145 = vpop.f32.mrb[0].mxu0
    %v1146 = vadd.f32 0.0, %v1145
    %v1147 = vpop.f32.mrb[0].mxu0
    %1148 = vdwg.mxu0
    %v1149 = vmul.f32 %v1076, 0.010416667
    %v1150 = vmul.f32 %v1146, 0.010416667
    %v1151 = vmul.f32 %v1149, %v1149
    %v1152 = vsub.f32 %v1150, %v1151
    %v1153 = vmax.f32 %v1152, 0.0
    %v1154 = vadd.f32 %v1153, 1e-05
    %v1155 = vrsqrt.pop %v1154
    %v1157 = vrot.slane %v1155, 6
    %v1159 = vmul.f32 %v90, %v1157
    %v1161 = vrot.slane %v1159, 2
    %v1163 = vmul.f32 %v1149, %v1161
    %v1165 = vrot.slane %v1163, 5
    %v1167 = vsub.f32 %v90, %v1165
    %v1168 = vld [vmem:[%s10] sm:$0xff]
    %v1169 = vld [vmem:[%s10 + $0x8] sm:$0xff]
    %v1170 = vld [vmem:[%s10 + $0x10] sm:$0xff]
    %v1171 = vld [vmem:[%s10 + $0x18] sm:$0xff]
    %v1172 = vld [vmem:[%s10 + $0x20] sm:$0xff]
    %v1173 = vld [vmem:[%s10 + $0x28] sm:$0xff]
    %v1174 = vld [vmem:[%s10 + $0x30] sm:$0xff]
    %v1175 = vld [vmem:[%s10 + $0x38] sm:$0xff]
    %v1176 = vld [vmem:[%s10 + $0x40] sm:$0xff]
    %v1177 = vld [vmem:[%s10 + $0x48] sm:$0xff]
    %v1178 = vld [vmem:[%s10 + $0x50] sm:$0xff]
    %v1179 = vld [vmem:[%s10 + $0x58] sm:$0xff]
    %v1180 = vld [vmem:[%s10 + $0x60] sm:$0xff]
    %v1181 = vld [vmem:[%s10 + $0x68] sm:$0xff]
    %v1182 = vld [vmem:[%s10 + $0x70] sm:$0xff]
    %v1183 = vld [vmem:[%s10 + $0x78] sm:$0xff]
    %v1184 = vld [vmem:[%s10 + $0x80] sm:$0xff]
    %v1185 = vld [vmem:[%s10 + $0x88] sm:$0xff]
    %v1186 = vld [vmem:[%s10 + $0x90] sm:$0xff]
    %v1187 = vld [vmem:[%s10 + $0x98] sm:$0xff]
    %v1188 = vld [vmem:[%s10 + $0xa0] sm:$0xff]
    %v1189 = vld [vmem:[%s10 + $0xa8] sm:$0xff]
    %v1190 = vld [vmem:[%s10 + $0xb0] sm:$0xff]
    %v1191 = vld [vmem:[%s10 + $0xb8] sm:$0xff]
    %v1192 = vld [vmem:[%s10 + $0xc0] sm:$0xff]
    %v1193 = vld [vmem:[%s10 + $0xc8] sm:$0xff]
    %v1194 = vld [vmem:[%s10 + $0xd0] sm:$0xff]
    %v1195 = vld [vmem:[%s10 + $0xd8] sm:$0xff]
    %v1196 = vld [vmem:[%s10 + $0xe0] sm:$0xff]
    %v1197 = vld [vmem:[%s10 + $0xe8] sm:$0xff]
    %v1198 = vld [vmem:[%s10 + $0xf0] sm:$0xff]
    %v1199 = vld [vmem:[%s10 + $0xf8] sm:$0xff]
    %1200 = vmatprep.subr.mxu0 %v1169
    %1201 = vmatpush1.msra.mxu0 %v1168
    %1202 = vmatprep.subr.mxu0 %v1171
    %1203 = vmatpush1.msra.mxu0 %v1170
    %1204 = vmatprep.subr.mxu0 %v1173
    %1205 = vmatpush1.msra.mxu0 %v1172
    %1206 = vmatprep.subr.mxu0 %v1175
    %1207 = vmatpush1.msra.mxu0 %v1174
    %1208 = vmatprep.subr.mxu0 %v1177
    %1209 = vmatpush1.msra.mxu0 %v1176
    %1210 = vmatprep.subr.mxu0 %v1179
    %1211 = vmatpush1.msra.mxu0 %v1178
    %1212 = vmatprep.subr.mxu0 %v1181
    %1213 = vmatpush1.msra.mxu0 %v1180
    %1214 = vmatprep.subr.mxu0 %v1183
    %1215 = vmatpush1.msra.mxu0 %v1182
    %1216 = vmatprep.subr.mxu0 %v1185
    %1217 = vmatpush1.msra.mxu0 %v1184
    %1218 = vmatprep.subr.mxu0 %v1187
    %1219 = vmatpush1.msra.mxu0 %v1186
    %1220 = vmatprep.subr.mxu0 %v1189
    %1221 = vmatpush1.msra.mxu0 %v1188
    %1222 = vmatprep.subr.mxu0 %v1191
    %1223 = vmatpush1.msra.mxu0 %v1190
    %1224 = vmatprep.subr.mxu0 %v1193
    %1225 = vmatpush1.msra.mxu0 %v1192
    %1226 = vmatprep.subr.mxu0 %v1195
    %1227 = vmatpush1.msra.mxu0 %v1194
    %1228 = vmatprep.subr.mxu0 %v1197
    %1229 = vmatpush1.msra.mxu0 %v1196
    %1230 = vmatprep.subr.mxu0 %v1199
    %1231 = vmatpush1.msra.mxu0 %v1198
    %1232 = vmatprep.subr.mxu0 0.0
    %1233 = vmatpush1.msra.mxu0 0.0
    %1234 = vmatprep.subr.mxu0 0.0
    %1235 = vmatpush1.msra.mxu0 0.0
    %1236 = vmatprep.subr.mxu0 0.0
    %1237 = vmatpush1.msra.mxu0 0.0
    %1238 = vmatprep.subr.mxu0 0.0
    %1239 = vmatpush1.msra.mxu0 0.0
    %1240 = vmatprep.subr.mxu0 0.0
    %1241 = vmatpush1.msra.mxu0 0.0
    %1242 = vmatprep.subr.mxu0 0.0
    %1243 = vmatpush1.msra.mxu0 0.0
    %1244 = vmatprep.subr.mxu0 0.0
    %1245 = vmatpush1.msra.mxu0 0.0
    %1246 = vmatprep.subr.mxu0 0.0
    %1247 = vmatpush1.msra.mxu0 0.0
    %1248 = vmatprep.subr.mxu0 0.0
    %1249 = vmatpush1.msra.mxu0 0.0
    %1250 = vmatprep.subr.mxu0 0.0
    %1251 = vmatpush1.msra.mxu0 0.0
    %1252 = vmatprep.subr.mxu0 0.0
    %1253 = vmatpush1.msra.mxu0 0.0
    %1254 = vmatprep.subr.mxu0 0.0
    %1255 = vmatpush1.msra.mxu0 0.0
    %1256 = vmatprep.subr.mxu0 0.0
    %1257 = vmatpush1.msra.mxu0 0.0
    %1258 = vmatprep.subr.mxu0 0.0
    %1259 = vmatpush1.msra.mxu0 0.0
    %1260 = vmatprep.subr.mxu0 0.0
    %1261 = vmatpush1.msra.mxu0 0.0
    %1262 = vmatprep.subr.mxu0 0.0
    %1263 = vmatpush1.msra.mxu0 0.0
    %1264 = vmatprep.mubr.f32.mxu0 0.0
    %1265 = vmatmul.mubr.f32.gmra.mrb[0].mxu0 %v1161
    %v1266 = vpop.f32.mrb[0].mxu0
    %v1267 = vadd.f32 0.0, %v1266
    %v1268 = vpop.f32.mrb[0].mxu0
    %v1269 = vadd.f32 0.0, %v1268
    %1270 = vdwg.mxu0
    %v1272 = vrot.slane %v1167, 3
    %1274 = vmatprep.subr.mxu0 %v1169
    %1275 = vmatpush1.msra.mxu0 %v1168
    %1276 = vmatprep.subr.mxu0 %v1171
    %1277 = vmatpush1.msra.mxu0 %v1170
    %1278 = vmatprep.subr.mxu0 %v1173
    %1279 = vmatpush1.msra.mxu0 %v1172
    %1280 = vmatprep.subr.mxu0 %v1175
    %1281 = vmatpush1.msra.mxu0 %v1174
    %1282 = vmatprep.subr.mxu0 %v1177
    %1283 = vmatpush1.msra.mxu0 %v1176
    %1284 = vmatprep.subr.mxu0 %v1179
    %1285 = vmatpush1.msra.mxu0 %v1178
    %1286 = vmatprep.subr.mxu0 %v1181
    %1287 = vmatpush1.msra.mxu0 %v1180
    %1288 = vmatprep.subr.mxu0 %v1183
    %1289 = vmatpush1.msra.mxu0 %v1182
    %1290 = vmatprep.subr.mxu0 %v1185
    %1291 = vmatpush1.msra.mxu0 %v1184
    %1292 = vmatprep.subr.mxu0 %v1187
    %1293 = vmatpush1.msra.mxu0 %v1186
    %1294 = vmatprep.subr.mxu0 %v1189
    %1295 = vmatpush1.msra.mxu0 %v1188
    %1296 = vmatprep.subr.mxu0 %v1191
    %1297 = vmatpush1.msra.mxu0 %v1190
    %1298 = vmatprep.subr.mxu0 %v1193
    %1299 = vmatpush1.msra.mxu0 %v1192
    %1300 = vmatprep.subr.mxu0 %v1195
    %1301 = vmatpush1.msra.mxu0 %v1194
    %1302 = vmatprep.subr.mxu0 %v1197
    %1303 = vmatpush1.msra.mxu0 %v1196
    %1304 = vmatprep.subr.mxu0 %v1199
    %1305 = vmatpush1.msra.mxu0 %v1198
    %1306 = vmatprep.subr.mxu0 0.0
    %1307 = vmatpush1.msra.mxu0 0.0
    %1308 = vmatprep.subr.mxu0 0.0
    %1309 = vmatpush1.msra.mxu0 0.0
    %1310 = vmatprep.subr.mxu0 0.0
    %1311 = vmatpush1.msra.mxu0 0.0
    %1312 = vmatprep.subr.mxu0 0.0
    %1313 = vmatpush1.msra.mxu0 0.0
    %1314 = vmatprep.subr.mxu0 0.0
    %1315 = vmatpush1.msra.mxu0 0.0
    %1316 = vmatprep.subr.mxu0 0.0
    %1317 = vmatpush1.msra.mxu0 0.0
    %1318 = vmatprep.subr.mxu0 0.0
    %1319 = vmatpush1.msra.mxu0 0.0
    %1320 = vmatprep.subr.mxu0 0.0
    %1321 = vmatpush1.msra.mxu0 0.0
    %1322 = vmatprep.subr.mxu0 0.0
    %1323 = vmatpush1.msra.mxu0 0.0
    %1324 = vmatprep.subr.mxu0 0.0
    %1325 = vmatpush1.msra.mxu0 0.0
    %1326 = vmatprep.subr.mxu0 0.0
    %1327 = vmatpush1.msra.mxu0 0.0
    %1328 = vmatprep.subr.mxu0 0.0
    %1329 = vmatpush1.msra.mxu0 0.0
    %1330 = vmatprep.subr.mxu0 0.0
    %1331 = vmatpush1.msra.mxu0 0.0
    %1332 = vmatprep.subr.mxu0 0.0
    %1333 = vmatpush1.msra.mxu0 0.0
    %1334 = vmatprep.subr.mxu0 0.0
    %1335 = vmatpush1.msra.mxu0 0.0
    %1336 = vmatprep.subr.mxu0 0.0
    %1337 = vmatpush1.msra.mxu0 0.0
    %1338 = vmatprep.mubr.f32.mxu0 0.0
    %1339 = vmatmul.mubr.f32.gmra.mrb[0].mxu0 %v1272
    %v1340 = vpop.f32.mrb[0].mxu0
    %v1341 = vadd.f32 0.0, %v1340
    %v1342 = vpop.f32.mrb[0].mxu0
    %v1343 = vadd.f32 0.0, %v1342
    %1344 = vdwg.mxu0
    %v1345 = vlaneseq
    %v1346 = vshrl.u32 %v1345, 7
    %v1347 = vsub.s32 0, %v1346
    %v1348 = vrot.slane %v1267, %v1347
    %v1349 = vlaneseq
    %v1350 = vshrl.u32 %v1349, 7
    %v1351 = vsub.s32 0, %v1350
    %v1352 = vrot.slane %v1269, %v1351
    %v1353 = vmul.f32 %v823, %v1348
    %v1354 = vmul.f32 %v825, %v1352
    %v1355 = vmul.f32 %v827, %v1348
    %v1356 = vmul.f32 %v829, %v1352
    %v1357 = vlaneseq
    %v1358 = vshrl.u32 %v1357, 7
    %v1359 = vsub.s32 0, %v1358
    %v1360 = vrot.slane %v1341, %v1359
    %v1361 = vlaneseq
    %v1362 = vshrl.u32 %v1361, 7
    %v1363 = vsub.s32 0, %v1362
    %v1364 = vrot.slane %v1343, %v1363
    %v1365 = vadd.f32 %v1353, %v1360
    %v1366 = vadd.f32 %v1354, %v1364
    %v1367 = vadd.f32 %v1355, %v1360
    %v1368 = vadd.f32 %v1356, %v1364
    %vm1369 = vcmp.gt.f32.partialorder %v1365, 0.0
    %vm1370 = vcmp.gt.f32.partialorder %v1366, 0.0
    %vm1371 = vcmp.gt.f32.partialorder %v1367, 0.0
    %vm1372 = vcmp.gt.f32.partialorder %v1368, 0.0
    %v1373 = vmul.f32 %v1365, 0.2
    %v1374 = vmul.f32 %v1366, 0.2
    %v1375 = vmul.f32 %v1367, 0.2
    %v1376 = vmul.f32 %v1368, 0.2
    %v1377 = vsel %vm1369, %v1365, %v1373
    %v1378 = vsel %vm1370, %v1366, %v1374
    %v1379 = vsel %vm1371, %v1367, %v1375
    %v1380 = vsel %vm1372, %v1368, %v1376
    %v1381 = vpack.c.bf16 %v1379, %v1377
    %v1382 = vpack.c.bf16 %v1380, %v1378
    %v1383 = vld [vmem:[%s5] sm:$0xff]
    %v1384 = vld [vmem:[%s5 + $0x8] sm:$0xf]
    %v1385 = vld [vmem:[%s5 + $0xc] sm:$0xff]
    %v1386 = vld [vmem:[%s5 + $0x14] sm:$0xf]
    %v1387 = vld [vmem:[%s5 + $0x18] sm:$0xff]
    %v1388 = vld [vmem:[%s5 + $0x20] sm:$0xf]
    %v1389 = vld [vmem:[%s5 + $0x24] sm:$0xff]
    %v1390 = vld [vmem:[%s5 + $0x2c] sm:$0xf]
    %v1391 = vld [vmem:[%s5 + $0x30] sm:$0xff]
    %v1392 = vld [vmem:[%s5 + $0x38] sm:$0xf]
    %v1393 = vld [vmem:[%s5 + $0x3c] sm:$0xff]
    %v1394 = vld [vmem:[%s5 + $0x44] sm:$0xf]
    %v1395 = vld [vmem:[%s5 + $0x48] sm:$0xff]
    %v1396 = vld [vmem:[%s5 + $0x50] sm:$0xf]
    %v1397 = vld [vmem:[%s5 + $0x54] sm:$0xff]
    %v1398 = vld [vmem:[%s5 + $0x5c] sm:$0xf]
    %v1399 = vld [vmem:[%s5 + $0x60] sm:$0xff]
    %v1400 = vld [vmem:[%s5 + $0x68] sm:$0xf]
    %v1401 = vld [vmem:[%s5 + $0x6c] sm:$0xff]
    %v1402 = vld [vmem:[%s5 + $0x74] sm:$0xf]
    %v1403 = vld [vmem:[%s5 + $0x78] sm:$0xff]
    %v1404 = vld [vmem:[%s5 + $0x80] sm:$0xf]
    %v1405 = vld [vmem:[%s5 + $0x84] sm:$0xff]
    %v1406 = vld [vmem:[%s5 + $0x8c] sm:$0xf]
    %v1407 = vld [vmem:[%s5 + $0x90] sm:$0xff]
    %v1408 = vld [vmem:[%s5 + $0x98] sm:$0xf]
    %v1409 = vld [vmem:[%s5 + $0x9c] sm:$0xff]
    %v1410 = vld [vmem:[%s5 + $0xa4] sm:$0xf]
    %v1411 = vld [vmem:[%s5 + $0xa8] sm:$0xff]
    %v1412 = vld [vmem:[%s5 + $0xb0] sm:$0xf]
    %v1413 = vld [vmem:[%s5 + $0xb4] sm:$0xff]
    %v1414 = vld [vmem:[%s5 + $0xbc] sm:$0xf]
    %v1415 = vld [vmem:[%s5 + $0xc0] sm:$0xff]
    %v1416 = vld [vmem:[%s5 + $0xc8] sm:$0xf]
    %v1417 = vld [vmem:[%s5 + $0xcc] sm:$0xff]
    %v1418 = vld [vmem:[%s5 + $0xd4] sm:$0xf]
    %v1419 = vld [vmem:[%s5 + $0xd8] sm:$0xff]
    %v1420 = vld [vmem:[%s5 + $0xe0] sm:$0xf]
    %v1421 = vld [vmem:[%s5 + $0xe4] sm:$0xff]
    %v1422 = vld [vmem:[%s5 + $0xec] sm:$0xf]
    %v1423 = vld [vmem:[%s5 + $0xf0] sm:$0xff]
    %v1424 = vld [vmem:[%s5 + $0xf8] sm:$0xf]
    %v1425 = vld [vmem:[%s5 + $0xfc] sm:$0xff]
    %v1426 = vld [vmem:[%s5 + $0x104] sm:$0xf]
    %v1427 = vld [vmem:[%s5 + $0x108] sm:$0xff]
    %v1428 = vld [vmem:[%s5 + $0x110] sm:$0xf]
    %v1429 = vld [vmem:[%s5 + $0x114] sm:$0xff]
    %v1430 = vld [vmem:[%s5 + $0x11c] sm:$0xf]
    %v1431 = vld [vmem:[%s5 + $0x120] sm:$0xff]
    %v1432 = vld [vmem:[%s5 + $0x128] sm:$0xf]
    %v1433 = vld [vmem:[%s5 + $0x12c] sm:$0xff]
    %v1434 = vld [vmem:[%s5 + $0x134] sm:$0xf]
    %v1435 = vld [vmem:[%s5 + $0x138] sm:$0xff]
    %v1436 = vld [vmem:[%s5 + $0x140] sm:$0xf]
    %v1437 = vld [vmem:[%s5 + $0x144] sm:$0xff]
    %v1438 = vld [vmem:[%s5 + $0x14c] sm:$0xf]
    %v1439 = vld [vmem:[%s5 + $0x150] sm:$0xff]
    %v1440 = vld [vmem:[%s5 + $0x158] sm:$0xf]
    %v1441 = vld [vmem:[%s5 + $0x15c] sm:$0xff]
    %v1442 = vld [vmem:[%s5 + $0x164] sm:$0xf]
    %v1443 = vld [vmem:[%s5 + $0x168] sm:$0xff]
    %v1444 = vld [vmem:[%s5 + $0x170] sm:$0xf]
    %v1445 = vld [vmem:[%s5 + $0x174] sm:$0xff]
    %v1446 = vld [vmem:[%s5 + $0x17c] sm:$0xf]
    %v1511 = vunpack.c.l.b16 %v1383
    %v1512 = vunpack.c.h.b16 %v1383
    %v1513 = vunpack.c.l.b16 %v1384
    %v1514 = vunpack.c.l.b16 %v1385
    %v1515 = vunpack.c.h.b16 %v1385
    %v1516 = vunpack.c.l.b16 %v1386
    %v1517 = vunpack.c.l.b16 %v1387
    %v1518 = vunpack.c.h.b16 %v1387
    %v1519 = vunpack.c.l.b16 %v1388
    %v1520 = vunpack.c.l.b16 %v1389
    %v1521 = vunpack.c.h.b16 %v1389
    %v1522 = vunpack.c.l.b16 %v1390
    %v1523 = vunpack.c.l.b16 %v1391
    %v1524 = vunpack.c.h.b16 %v1391
    %v1525 = vunpack.c.l.b16 %v1392
    %v1526 = vunpack.c.l.b16 %v1393
    %v1527 = vunpack.c.h.b16 %v1393
    %v1528 = vunpack.c.l.b16 %v1394
    %v1529 = vunpack.c.l.b16 %v1395
    %v1530 = vunpack.c.h.b16 %v1395
    %v1531 = vunpack.c.l.b16 %v1396
    %v1532 = vunpack.c.l.b16 %v1397
    %v1533 = vunpack.c.h.b16 %v1397
    %v1534 = vunpack.c.l.b16 %v1398
    %v1535 = vunpack.c.l.b16 %v1399
    %v1536 = vunpack.c.h.b16 %v1399
    %v1537 = vunpack.c.l.b16 %v1400
    %v1538 = vunpack.c.l.b16 %v1401
    %v1539 = vunpack.c.h.b16 %v1401
    %v1540 = vunpack.c.l.b16 %v1402
    %v1541 = vunpack.c.l.b16 %v1403
    %v1542 = vunpack.c.h.b16 %v1403
    %v1543 = vunpack.c.l.b16 %v1404
    %v1544 = vunpack.c.l.b16 %v1405
    %v1545 = vunpack.c.h.b16 %v1405
    %v1546 = vunpack.c.l.b16 %v1406
    %v1547 = vunpack.c.l.b16 %v1407
    %v1548 = vunpack.c.h.b16 %v1407
    %v1549 = vunpack.c.l.b16 %v1408
    %v1550 = vunpack.c.l.b16 %v1409
    %v1551 = vunpack.c.h.b16 %v1409
    %v1552 = vunpack.c.l.b16 %v1410
    %v1553 = vunpack.c.l.b16 %v1411
    %v1554 = vunpack.c.h.b16 %v1411
    %v1555 = vunpack.c.l.b16 %v1412
    %v1556 = vunpack.c.l.b16 %v1413
    %v1557 = vunpack.c.h.b16 %v1413
    %v1558 = vunpack.c.l.b16 %v1414
    %v1559 = vunpack.c.l.b16 %v1415
    %v1560 = vunpack.c.h.b16 %v1415
    %v1561 = vunpack.c.l.b16 %v1416
    %v1562 = vunpack.c.l.b16 %v1417
    %v1563 = vunpack.c.h.b16 %v1417
    %v1564 = vunpack.c.l.b16 %v1418
    %v1565 = vunpack.c.l.b16 %v1419
    %v1566 = vunpack.c.h.b16 %v1419
    %v1567 = vunpack.c.l.b16 %v1420
    %v1568 = vunpack.c.l.b16 %v1421
    %v1569 = vunpack.c.h.b16 %v1421
    %v1570 = vunpack.c.l.b16 %v1422
    %v1571 = vunpack.c.l.b16 %v1423
    %v1572 = vunpack.c.h.b16 %v1423
    %v1573 = vunpack.c.l.b16 %v1424
    %v1574 = vunpack.c.l.b16 %v1425
    %v1575 = vunpack.c.h.b16 %v1425
    %v1576 = vunpack.c.l.b16 %v1426
    %v1577 = vunpack.c.l.b16 %v1427
    %v1578 = vunpack.c.h.b16 %v1427
    %v1579 = vunpack.c.l.b16 %v1428
    %v1580 = vunpack.c.l.b16 %v1429
    %v1581 = vunpack.c.h.b16 %v1429
    %v1582 = vunpack.c.l.b16 %v1430
    %v1583 = vunpack.c.l.b16 %v1431
    %v1584 = vunpack.c.h.b16 %v1431
    %v1585 = vunpack.c.l.b16 %v1432
    %v1586 = vunpack.c.l.b16 %v1433
    %v1587 = vunpack.c.h.b16 %v1433
    %v1588 = vunpack.c.l.b16 %v1434
    %v1589 = vunpack.c.l.b16 %v1435
    %v1590 = vunpack.c.h.b16 %v1435
    %v1591 = vunpack.c.l.b16 %v1436
    %v1592 = vunpack.c.l.b16 %v1437
    %v1593 = vunpack.c.h.b16 %v1437
    %v1594 = vunpack.c.l.b16 %v1438
    %v1595 = vunpack.c.l.b16 %v1439
    %v1596 = vunpack.c.h.b16 %v1439
    %v1597 = vunpack.c.l.b16 %v1440
    %v1598 = vunpack.c.l.b16 %v1441
    %v1599 = vunpack.c.h.b16 %v1441
    %v1600 = vunpack.c.l.b16 %v1442
    %v1601 = vunpack.c.l.b16 %v1443
    %v1602 = vunpack.c.h.b16 %v1443
    %v1603 = vunpack.c.l.b16 %v1444
    %v1604 = vunpack.c.l.b16 %v1445
    %v1605 = vunpack.c.h.b16 %v1445
    %v1606 = vunpack.c.l.b16 %v1446
    %v1607 = vpack.c.b16 %v1514, %v1511
    %v1608 = vpack.c.b16 %v1515, %v1512
    %v1609 = vpack.c.b16 %v1516, %v1513
    %v1610 = vpack.c.b16 %v1520, %v1517
    %v1611 = vpack.c.b16 %v1521, %v1518
    %v1612 = vpack.c.b16 %v1522, %v1519
    %v1613 = vpack.c.b16 %v1526, %v1523
    %v1614 = vpack.c.b16 %v1527, %v1524
    %v1615 = vpack.c.b16 %v1528, %v1525
    %v1616 = vpack.c.b16 %v1532, %v1529
    %v1617 = vpack.c.b16 %v1533, %v1530
    %v1618 = vpack.c.b16 %v1534, %v1531
    %v1619 = vpack.c.b16 %v1538, %v1535
    %v1620 = vpack.c.b16 %v1539, %v1536
    %v1621 = vpack.c.b16 %v1540, %v1537
    %v1622 = vpack.c.b16 %v1544, %v1541
    %v1623 = vpack.c.b16 %v1545, %v1542
    %v1624 = vpack.c.b16 %v1546, %v1543
    %v1625 = vpack.c.b16 %v1550, %v1547
    %v1626 = vpack.c.b16 %v1551, %v1548
    %v1627 = vpack.c.b16 %v1552, %v1549
    %v1628 = vpack.c.b16 %v1556, %v1553
    %v1629 = vpack.c.b16 %v1557, %v1554
    %v1630 = vpack.c.b16 %v1558, %v1555
    %v1631 = vpack.c.b16 %v1562, %v1559
    %v1632 = vpack.c.b16 %v1563, %v1560
    %v1633 = vpack.c.b16 %v1564, %v1561
    %v1634 = vpack.c.b16 %v1568, %v1565
    %v1635 = vpack.c.b16 %v1569, %v1566
    %v1636 = vpack.c.b16 %v1570, %v1567
    %v1637 = vpack.c.b16 %v1574, %v1571
    %v1638 = vpack.c.b16 %v1575, %v1572
    %v1639 = vpack.c.b16 %v1576, %v1573
    %v1640 = vpack.c.b16 %v1580, %v1577
    %v1641 = vpack.c.b16 %v1581, %v1578
    %v1642 = vpack.c.b16 %v1582, %v1579
    %v1643 = vpack.c.b16 %v1586, %v1583
    %v1644 = vpack.c.b16 %v1587, %v1584
    %v1645 = vpack.c.b16 %v1588, %v1585
    %v1646 = vpack.c.b16 %v1592, %v1589
    %v1647 = vpack.c.b16 %v1593, %v1590
    %v1648 = vpack.c.b16 %v1594, %v1591
    %v1649 = vpack.c.b16 %v1598, %v1595
    %v1650 = vpack.c.b16 %v1599, %v1596
    %v1651 = vpack.c.b16 %v1600, %v1597
    %v1652 = vpack.c.b16 %v1604, %v1601
    %v1653 = vpack.c.b16 %v1605, %v1602
    %v1654 = vpack.c.b16 %v1606, %v1603
    %1703 = vmatprep.subr.bf16.mxu0 %v1608
    %1704 = vmatpush1.bf16.msra.mxu0 %v1607
    %1705 = vmatprep.subr.bf16.mxu0 %v1611
    %1706 = vmatpush1.bf16.msra.mxu0 %v1610
    %1707 = vmatprep.subr.bf16.mxu0 %v1614
    %1708 = vmatpush1.bf16.msra.mxu0 %v1613
    %1709 = vmatprep.subr.bf16.mxu0 %v1617
    %1710 = vmatpush1.bf16.msra.mxu0 %v1616
    %1711 = vmatprep.subr.bf16.mxu0 %v1620
    %1712 = vmatpush1.bf16.msra.mxu0 %v1619
    %1713 = vmatprep.subr.bf16.mxu0 %v1623
    %1714 = vmatpush1.bf16.msra.mxu0 %v1622
    %1715 = vmatprep.subr.bf16.mxu0 %v1626
    %1716 = vmatpush1.bf16.msra.mxu0 %v1625
    %1717 = vmatprep.subr.bf16.mxu0 %v1629
    %1718 = vmatpush1.bf16.msra.mxu0 %v1628
    %1719 = vmatprep.subr.bf16.mxu0 %v1632
    %1720 = vmatpush1.bf16.msra.mxu0 %v1631
    %1721 = vmatprep.subr.bf16.mxu0 %v1635
    %1722 = vmatpush1.bf16.msra.mxu0 %v1634
    %1723 = vmatprep.subr.bf16.mxu0 %v1638
    %1724 = vmatpush1.bf16.msra.mxu0 %v1637
    %1725 = vmatprep.subr.bf16.mxu0 %v1641
    %1726 = vmatpush1.bf16.msra.mxu0 %v1640
    %1727 = vmatprep.subr.bf16.mxu0 %v1644
    %1728 = vmatpush1.bf16.msra.mxu0 %v1643
    %1729 = vmatprep.subr.bf16.mxu0 %v1647
    %1730 = vmatpush1.bf16.msra.mxu0 %v1646
    %1731 = vmatprep.subr.bf16.mxu0 %v1650
    %1732 = vmatpush1.bf16.msra.mxu0 %v1649
    %1733 = vmatprep.subr.bf16.mxu0 %v1653
    %1734 = vmatpush1.bf16.msra.mxu0 %v1652
    %1735 = vmatprep.mubr.bf16.mxu0 %v1382
    %1736 = vmatmul.mubr.bf16.gmra.mrb[0].mxu0 %v1381
    %v1737 = vpop.f32.mrb[0].mxu0
    %v1738 = vadd.f32 0.0, %v1737
    %v1739 = vpop.f32.mrb[0].mxu0
    %v1740 = vadd.f32 0.0, %v1739
    %v1741 = vpop.f32.mrb[0].mxu0
    %v1742 = vadd.f32 0.0, %v1741
    %v1743 = vpop.f32.mrb[0].mxu0
    %v1744 = vadd.f32 0.0, %v1743
    %1745 = vdwg.mxu0
    %1746 = vmatprep.subr.bf16.mxu0 0
    %1747 = vmatpush1.bf16.msra.mxu0 %v1609
    %1748 = vmatprep.subr.bf16.mxu0 0
    %1749 = vmatpush1.bf16.msra.mxu0 %v1612
    %1750 = vmatprep.subr.bf16.mxu0 0
    %1751 = vmatpush1.bf16.msra.mxu0 %v1615
    %1752 = vmatprep.subr.bf16.mxu0 0
    %1753 = vmatpush1.bf16.msra.mxu0 %v1618
    %1754 = vmatprep.subr.bf16.mxu0 0
    %1755 = vmatpush1.bf16.msra.mxu0 %v1621
    %1756 = vmatprep.subr.bf16.mxu0 0
    %1757 = vmatpush1.bf16.msra.mxu0 %v1624
    %1758 = vmatprep.subr.bf16.mxu0 0
    %1759 = vmatpush1.bf16.msra.mxu0 %v1627
    %1760 = vmatprep.subr.bf16.mxu0 0
    %1761 = vmatpush1.bf16.msra.mxu0 %v1630
    %1762 = vmatprep.subr.bf16.mxu0 0
    %1763 = vmatpush1.bf16.msra.mxu0 %v1633
    %1764 = vmatprep.subr.bf16.mxu0 0
    %1765 = vmatpush1.bf16.msra.mxu0 %v1636
    %1766 = vmatprep.subr.bf16.mxu0 0
    %1767 = vmatpush1.bf16.msra.mxu0 %v1639
    %1768 = vmatprep.subr.bf16.mxu0 0
    %1769 = vmatpush1.bf16.msra.mxu0 %v1642
    %1770 = vmatprep.subr.bf16.mxu0 0
    %1771 = vmatpush1.bf16.msra.mxu0 %v1645
    %1772 = vmatprep.subr.bf16.mxu0 0
    %1773 = vmatpush1.bf16.msra.mxu0 %v1648
    %1774 = vmatprep.subr.bf16.mxu0 0
    %1775 = vmatpush1.bf16.msra.mxu0 %v1651
    %1776 = vmatprep.subr.bf16.mxu0 0
    %1777 = vmatpush1.bf16.msra.mxu0 %v1654
    %1778 = vmatprep.mubr.bf16.mxu0 %v1382
    %1779 = vmatmul.mubr.bf16.gmra.mrb[0].mxu0 %v1381
    %v1780 = vpop.f32.mrb[0].mxu0
    %v1781 = vadd.f32 0.0, %v1780
    %v1782 = vpop.f32.mrb[0].mxu0
    %v1783 = vpop.f32.mrb[0].mxu0
    %v1784 = vadd.f32 0.0, %v1783
    %v1785 = vpop.f32.mrb[0].mxu0
    %1786 = vdwg.mxu0
    %1787 = vmatprep.subr.mxu0 %v1740
    %1788 = vmatpush1.msra.mxu0 %v1738
    %1789 = vmatprep.subr.mxu0 %v1744
    %1790 = vmatpush1.msra.mxu0 %v1742
    %1791 = vmatprep.subr.mxu0 0.0
    %1792 = vmatpush1.msra.mxu0 0.0
    %1793 = vmatprep.subr.mxu0 0.0
    %1794 = vmatpush1.msra.mxu0 0.0
    %1795 = vmatprep.subr.mxu0 0.0
    %1796 = vmatpush1.msra.mxu0 0.0
    %1797 = vmatprep.subr.mxu0 0.0
    %1798 = vmatpush1.msra.mxu0 0.0
    %1799 = vmatprep.subr.mxu0 0.0
    %1800 = vmatpush1.msra.mxu0 0.0
    %1801 = vmatprep.subr.mxu0 0.0
    %1802 = vmatpush1.msra.mxu0 0.0
    %1803 = vmatprep.subr.mxu0 0.0
    %1804 = vmatpush1.msra.mxu0 0.0
    %1805 = vmatprep.subr.mxu0 0.0
    %1806 = vmatpush1.msra.mxu0 0.0
    %1807 = vmatprep.subr.mxu0 0.0
    %1808 = vmatpush1.msra.mxu0 0.0
    %1809 = vmatprep.subr.mxu0 0.0
    %1810 = vmatpush1.msra.mxu0 0.0
    %1811 = vmatprep.subr.mxu0 0.0
    %1812 = vmatpush1.msra.mxu0 0.0
    %1813 = vmatprep.subr.mxu0 0.0
    %1814 = vmatpush1.msra.mxu0 0.0
    %1815 = vmatprep.subr.mxu0 0.0
    %1816 = vmatpush1.msra.mxu0 0.0
    %1817 = vmatprep.subr.mxu0 0.0
    %1818 = vmatpush1.msra.mxu0 0.0
    %1819 = vmatprep.subr.mxu0 0.0
    %1820 = vmatpush1.msra.mxu0 0.0
    %1821 = vmatprep.subr.mxu0 0.0
    %1822 = vmatpush1.msra.mxu0 0.0
    %1823 = vmatprep.subr.mxu0 0.0
    %1824 = vmatpush1.msra.mxu0 0.0
    %1825 = vmatprep.subr.mxu0 0.0
    %1826 = vmatpush1.msra.mxu0 0.0
    %1827 = vmatprep.subr.mxu0 0.0
    %1828 = vmatpush1.msra.mxu0 0.0
    %1829 = vmatprep.subr.mxu0 0.0
    %1830 = vmatpush1.msra.mxu0 0.0
    %1831 = vmatprep.subr.mxu0 0.0
    %1832 = vmatpush1.msra.mxu0 0.0
    %1833 = vmatprep.subr.mxu0 0.0
    %1834 = vmatpush1.msra.mxu0 0.0
    %1835 = vmatprep.subr.mxu0 0.0
    %1836 = vmatpush1.msra.mxu0 0.0
    %1837 = vmatprep.subr.mxu0 0.0
    %1838 = vmatpush1.msra.mxu0 0.0
    %1839 = vmatprep.subr.mxu0 0.0
    %1840 = vmatpush1.msra.mxu0 0.0
    %1841 = vmatprep.subr.mxu0 0.0
    %1842 = vmatpush1.msra.mxu0 0.0
    %1843 = vmatprep.subr.mxu0 0.0
    %1844 = vmatpush1.msra.mxu0 0.0
    %1845 = vmatprep.subr.mxu0 0.0
    %1846 = vmatpush1.msra.mxu0 0.0
    %1847 = vmatprep.subr.mxu0 0.0
    %1848 = vmatpush1.msra.mxu0 0.0
    %1849 = vmatprep.subr.mxu0 0.0
    %1850 = vmatpush1.msra.mxu0 0.0
    %1851 = vmatprep.mubr.f32.mxu0 0.0
    %1852 = vmatmul.mubr.f32.gmra.mrb[0].mxu0 %v201
    %v1853 = vpop.f32.mrb[0].mxu0
    %v1854 = vadd.f32 0.0, %v1853
    %v1855 = vpop.f32.mrb[0].mxu0
    %v1856 = vadd.f32 0.0, %v1855
    %1857 = vdwg.mxu0
    %1858 = vmatprep.subr.mxu0 0.0
    %1859 = vmatpush1.msra.mxu0 %v1781
    %1860 = vmatprep.subr.mxu0 0.0
    %1861 = vmatpush1.msra.mxu0 %v1784
    %1862 = vmatprep.subr.mxu0 0.0
    %1863 = vmatpush1.msra.mxu0 0.0
    %1864 = vmatprep.subr.mxu0 0.0
    %1865 = vmatpush1.msra.mxu0 0.0
    %1866 = vmatprep.subr.mxu0 0.0
    %1867 = vmatpush1.msra.mxu0 0.0
    %1868 = vmatprep.subr.mxu0 0.0
    %1869 = vmatpush1.msra.mxu0 0.0
    %1870 = vmatprep.subr.mxu0 0.0
    %1871 = vmatpush1.msra.mxu0 0.0
    %1872 = vmatprep.subr.mxu0 0.0
    %1873 = vmatpush1.msra.mxu0 0.0
    %1874 = vmatprep.subr.mxu0 0.0
    %1875 = vmatpush1.msra.mxu0 0.0
    %1876 = vmatprep.subr.mxu0 0.0
    %1877 = vmatpush1.msra.mxu0 0.0
    %1878 = vmatprep.subr.mxu0 0.0
    %1879 = vmatpush1.msra.mxu0 0.0
    %1880 = vmatprep.subr.mxu0 0.0
    %1881 = vmatpush1.msra.mxu0 0.0
    %1882 = vmatprep.subr.mxu0 0.0
    %1883 = vmatpush1.msra.mxu0 0.0
    %1884 = vmatprep.subr.mxu0 0.0
    %1885 = vmatpush1.msra.mxu0 0.0
    %1886 = vmatprep.subr.mxu0 0.0
    %1887 = vmatpush1.msra.mxu0 0.0
    %1888 = vmatprep.subr.mxu0 0.0
    %1889 = vmatpush1.msra.mxu0 0.0
    %1890 = vmatprep.subr.mxu0 0.0
    %1891 = vmatpush1.msra.mxu0 0.0
    %1892 = vmatprep.subr.mxu0 0.0
    %1893 = vmatpush1.msra.mxu0 0.0
    %1894 = vmatprep.subr.mxu0 0.0
    %1895 = vmatpush1.msra.mxu0 0.0
    %1896 = vmatprep.subr.mxu0 0.0
    %1897 = vmatpush1.msra.mxu0 0.0
    %1898 = vmatprep.subr.mxu0 0.0
    %1899 = vmatpush1.msra.mxu0 0.0
    %1900 = vmatprep.subr.mxu0 0.0
    %1901 = vmatpush1.msra.mxu0 0.0
    %1902 = vmatprep.subr.mxu0 0.0
    %1903 = vmatpush1.msra.mxu0 0.0
    %1904 = vmatprep.subr.mxu0 0.0
    %1905 = vmatpush1.msra.mxu0 0.0
    %1906 = vmatprep.subr.mxu0 0.0
    %1907 = vmatpush1.msra.mxu0 0.0
    %1908 = vmatprep.subr.mxu0 0.0
    %1909 = vmatpush1.msra.mxu0 0.0
    %1910 = vmatprep.subr.mxu0 0.0
    %1911 = vmatpush1.msra.mxu0 0.0
    %1912 = vmatprep.subr.mxu0 0.0
    %1913 = vmatpush1.msra.mxu0 0.0
    %1914 = vmatprep.subr.mxu0 0.0
    %1915 = vmatpush1.msra.mxu0 0.0
    %1916 = vmatprep.subr.mxu0 0.0
    %1917 = vmatpush1.msra.mxu0 0.0
    %1918 = vmatprep.subr.mxu0 0.0
    %1919 = vmatpush1.msra.mxu0 0.0
    %1920 = vmatprep.subr.mxu0 0.0
    %1921 = vmatpush1.msra.mxu0 0.0
    %1922 = vmatprep.mubr.f32.mxu0 0.0
    %1923 = vmatmul.mubr.f32.gmra.mrb[0].mxu0 %v201
    %v1924 = vpop.f32.mrb[0].mxu0
    %v1925 = vadd.f32 0.0, %v1924
    %v1926 = vpop.f32.mrb[0].mxu0
    %1927 = vdwg.mxu0
    %v1928 = vmul.f32 %v1738, %v1738
    %v1929 = vmul.f32 %v1740, %v1740
    %v1930 = vmul.f32 %v1781, %v1781
    %v1931 = vmul.f32 %v1742, %v1742
    %v1932 = vmul.f32 %v1744, %v1744
    %v1933 = vmul.f32 %v1784, %v1784
    %1934 = vmatprep.subr.mxu0 %v1929
    %1935 = vmatpush1.msra.mxu0 %v1928
    %1936 = vmatprep.subr.mxu0 %v1932
    %1937 = vmatpush1.msra.mxu0 %v1931
    %1938 = vmatprep.subr.mxu0 0.0
    %1939 = vmatpush1.msra.mxu0 0.0
    %1940 = vmatprep.subr.mxu0 0.0
    %1941 = vmatpush1.msra.mxu0 0.0
    %1942 = vmatprep.subr.mxu0 0.0
    %1943 = vmatpush1.msra.mxu0 0.0
    %1944 = vmatprep.subr.mxu0 0.0
    %1945 = vmatpush1.msra.mxu0 0.0
    %1946 = vmatprep.subr.mxu0 0.0
    %1947 = vmatpush1.msra.mxu0 0.0
    %1948 = vmatprep.subr.mxu0 0.0
    %1949 = vmatpush1.msra.mxu0 0.0
    %1950 = vmatprep.subr.mxu0 0.0
    %1951 = vmatpush1.msra.mxu0 0.0
    %1952 = vmatprep.subr.mxu0 0.0
    %1953 = vmatpush1.msra.mxu0 0.0
    %1954 = vmatprep.subr.mxu0 0.0
    %1955 = vmatpush1.msra.mxu0 0.0
    %1956 = vmatprep.subr.mxu0 0.0
    %1957 = vmatpush1.msra.mxu0 0.0
    %1958 = vmatprep.subr.mxu0 0.0
    %1959 = vmatpush1.msra.mxu0 0.0
    %1960 = vmatprep.subr.mxu0 0.0
    %1961 = vmatpush1.msra.mxu0 0.0
    %1962 = vmatprep.subr.mxu0 0.0
    %1963 = vmatpush1.msra.mxu0 0.0
    %1964 = vmatprep.subr.mxu0 0.0
    %1965 = vmatpush1.msra.mxu0 0.0
    %1966 = vmatprep.subr.mxu0 0.0
    %1967 = vmatpush1.msra.mxu0 0.0
    %1968 = vmatprep.subr.mxu0 0.0
    %1969 = vmatpush1.msra.mxu0 0.0
    %1970 = vmatprep.subr.mxu0 0.0
    %1971 = vmatpush1.msra.mxu0 0.0
    %1972 = vmatprep.subr.mxu0 0.0
    %1973 = vmatpush1.msra.mxu0 0.0
    %1974 = vmatprep.subr.mxu0 0.0
    %1975 = vmatpush1.msra.mxu0 0.0
    %1976 = vmatprep.subr.mxu0 0.0
    %1977 = vmatpush1.msra.mxu0 0.0
    %1978 = vmatprep.subr.mxu0 0.0
    %1979 = vmatpush1.msra.mxu0 0.0
    %1980 = vmatprep.subr.mxu0 0.0
    %1981 = vmatpush1.msra.mxu0 0.0
    %1982 = vmatprep.subr.mxu0 0.0
    %1983 = vmatpush1.msra.mxu0 0.0
    %1984 = vmatprep.subr.mxu0 0.0
    %1985 = vmatpush1.msra.mxu0 0.0
    %1986 = vmatprep.subr.mxu0 0.0
    %1987 = vmatpush1.msra.mxu0 0.0
    %1988 = vmatprep.subr.mxu0 0.0
    %1989 = vmatpush1.msra.mxu0 0.0
    %1990 = vmatprep.subr.mxu0 0.0
    %1991 = vmatpush1.msra.mxu0 0.0
    %1992 = vmatprep.subr.mxu0 0.0
    %1993 = vmatpush1.msra.mxu0 0.0
    %1994 = vmatprep.subr.mxu0 0.0
    %1995 = vmatpush1.msra.mxu0 0.0
    %1996 = vmatprep.subr.mxu0 0.0
    %1997 = vmatpush1.msra.mxu0 0.0
    %1998 = vmatprep.mubr.f32.mxu0 0.0
    %1999 = vmatmul.mubr.f32.gmra.mrb[0].mxu0 %v201
    %v2000 = vpop.f32.mrb[0].mxu0
    %v2001 = vadd.f32 0.0, %v2000
    %v2002 = vpop.f32.mrb[0].mxu0
    %v2003 = vadd.f32 0.0, %v2002
    %2004 = vdwg.mxu0
    %2005 = vmatprep.subr.mxu0 0.0
    %2006 = vmatpush1.msra.mxu0 %v1930
    %2007 = vmatprep.subr.mxu0 0.0
    %2008 = vmatpush1.msra.mxu0 %v1933
    %2009 = vmatprep.subr.mxu0 0.0
    %2010 = vmatpush1.msra.mxu0 0.0
    %2011 = vmatprep.subr.mxu0 0.0
    %2012 = vmatpush1.msra.mxu0 0.0
    %2013 = vmatprep.subr.mxu0 0.0
    %2014 = vmatpush1.msra.mxu0 0.0
    %2015 = vmatprep.subr.mxu0 0.0
    %2016 = vmatpush1.msra.mxu0 0.0
    %2017 = vmatprep.subr.mxu0 0.0
    %2018 = vmatpush1.msra.mxu0 0.0
    %2019 = vmatprep.subr.mxu0 0.0
    %2020 = vmatpush1.msra.mxu0 0.0
    %2021 = vmatprep.subr.mxu0 0.0
    %2022 = vmatpush1.msra.mxu0 0.0
    %2023 = vmatprep.subr.mxu0 0.0
    %2024 = vmatpush1.msra.mxu0 0.0
    %2025 = vmatprep.subr.mxu0 0.0
    %2026 = vmatpush1.msra.mxu0 0.0
    %2027 = vmatprep.subr.mxu0 0.0
    %2028 = vmatpush1.msra.mxu0 0.0
    %2029 = vmatprep.subr.mxu0 0.0
    %2030 = vmatpush1.msra.mxu0 0.0
    %2031 = vmatprep.subr.mxu0 0.0
    %2032 = vmatpush1.msra.mxu0 0.0
    %2033 = vmatprep.subr.mxu0 0.0
    %2034 = vmatpush1.msra.mxu0 0.0
    %2035 = vmatprep.subr.mxu0 0.0
    %2036 = vmatpush1.msra.mxu0 0.0
    %2037 = vmatprep.subr.mxu0 0.0
    %2038 = vmatpush1.msra.mxu0 0.0
    %2039 = vmatprep.subr.mxu0 0.0
    %2040 = vmatpush1.msra.mxu0 0.0
    %2041 = vmatprep.subr.mxu0 0.0
    %2042 = vmatpush1.msra.mxu0 0.0
    %2043 = vmatprep.subr.mxu0 0.0
    %2044 = vmatpush1.msra.mxu0 0.0
    %2045 = vmatprep.subr.mxu0 0.0
    %2046 = vmatpush1.msra.mxu0 0.0
    %2047 = vmatprep.subr.mxu0 0.0
    %2048 = vmatpush1.msra.mxu0 0.0
    %2049 = vmatprep.subr.mxu0 0.0
    %2050 = vmatpush1.msra.mxu0 0.0
    %2051 = vmatprep.subr.mxu0 0.0
    %2052 = vmatpush1.msra.mxu0 0.0
    %2053 = vmatprep.subr.mxu0 0.0
    %2054 = vmatpush1.msra.mxu0 0.0
    %2055 = vmatprep.subr.mxu0 0.0
    %2056 = vmatpush1.msra.mxu0 0.0
    %2057 = vmatprep.subr.mxu0 0.0
    %2058 = vmatpush1.msra.mxu0 0.0
    %2059 = vmatprep.subr.mxu0 0.0
    %2060 = vmatpush1.msra.mxu0 0.0
    %2061 = vmatprep.subr.mxu0 0.0
    %2062 = vmatpush1.msra.mxu0 0.0
    %2063 = vmatprep.subr.mxu0 0.0
    %2064 = vmatpush1.msra.mxu0 0.0
    %2065 = vmatprep.subr.mxu0 0.0
    %2066 = vmatpush1.msra.mxu0 0.0
    %2067 = vmatprep.subr.mxu0 0.0
    %2068 = vmatpush1.msra.mxu0 0.0
    %2069 = vmatprep.mubr.f32.mxu0 0.0
    %2070 = vmatmul.mubr.f32.gmra.mrb[0].mxu0 %v201
    %v2071 = vpop.f32.mrb[0].mxu0
    %v2072 = vadd.f32 0.0, %v2071
    %v2073 = vpop.f32.mrb[0].mxu0
    %2074 = vdwg.mxu0
    %v2075 = vld [vmem:[%s11] sm:$0xff]
    %v2076 = vld [vmem:[%s11 + $0x8] sm:$0xff]
    %v2077 = vld [vmem:[%s11 + $0x10] sm:$0xff]
    %v2078 = vld [vmem:[%s11 + $0x18] sm:$0xff]
    %v2079 = vld [vmem:[%s11 + $0x20] sm:$0xff]
    %v2080 = vld [vmem:[%s11 + $0x28] sm:$0xff]
    %v2081 = vld [vmem:[%s11 + $0x30] sm:$0xff]
    %v2082 = vld [vmem:[%s11 + $0x38] sm:$0xff]
    %v2083 = vld [vmem:[%s11 + $0x40] sm:$0xff]
    %v2084 = vld [vmem:[%s11 + $0x48] sm:$0xff]
    %v2085 = vld [vmem:[%s11 + $0x50] sm:$0xff]
    %v2086 = vld [vmem:[%s11 + $0x58] sm:$0xff]
    %v2087 = vld [vmem:[%s11 + $0x60] sm:$0xff]
    %v2088 = vld [vmem:[%s11 + $0x68] sm:$0xff]
    %v2089 = vld [vmem:[%s11 + $0x70] sm:$0xff]
    %v2090 = vld [vmem:[%s11 + $0x78] sm:$0xff]
    %v2091 = vld [vmem:[%s11 + $0x80] sm:$0xff]
    %v2092 = vld [vmem:[%s11 + $0x88] sm:$0xff]
    %v2093 = vld [vmem:[%s11 + $0x90] sm:$0xff]
    %v2094 = vld [vmem:[%s11 + $0x98] sm:$0xff]
    %v2095 = vld [vmem:[%s11 + $0xa0] sm:$0xff]
    %v2096 = vld [vmem:[%s11 + $0xa8] sm:$0xff]
    %v2097 = vld [vmem:[%s11 + $0xb0] sm:$0xff]
    %v2098 = vld [vmem:[%s11 + $0xb8] sm:$0xff]
    %v2099 = vld [vmem:[%s11 + $0xc0] sm:$0xff]
    %v2100 = vld [vmem:[%s11 + $0xc8] sm:$0xff]
    %v2101 = vld [vmem:[%s11 + $0xd0] sm:$0xff]
    %v2102 = vld [vmem:[%s11 + $0xd8] sm:$0xff]
    %v2103 = vld [vmem:[%s11 + $0xe0] sm:$0xff]
    %v2104 = vld [vmem:[%s11 + $0xe8] sm:$0xff]
    %v2105 = vld [vmem:[%s11 + $0xf0] sm:$0xff]
    %v2106 = vld [vmem:[%s11 + $0xf8] sm:$0xff]
    %v2107 = vld [vmem:[%s11 + $0x100] sm:$0xff]
    %v2108 = vld [vmem:[%s11 + $0x108] sm:$0xff]
    %v2109 = vld [vmem:[%s11 + $0x110] sm:$0xff]
    %v2110 = vld [vmem:[%s11 + $0x118] sm:$0xff]
    %v2111 = vld [vmem:[%s11 + $0x120] sm:$0xff]
    %v2112 = vld [vmem:[%s11 + $0x128] sm:$0xff]
    %v2113 = vld [vmem:[%s11 + $0x130] sm:$0xff]
    %v2114 = vld [vmem:[%s11 + $0x138] sm:$0xff]
    %v2115 = vld [vmem:[%s11 + $0x140] sm:$0xff]
    %v2116 = vld [vmem:[%s11 + $0x148] sm:$0xff]
    %v2117 = vld [vmem:[%s11 + $0x150] sm:$0xff]
    %v2118 = vld [vmem:[%s11 + $0x158] sm:$0xff]
    %v2119 = vld [vmem:[%s11 + $0x160] sm:$0xff]
    %v2120 = vld [vmem:[%s11 + $0x168] sm:$0xff]
    %v2121 = vld [vmem:[%s11 + $0x170] sm:$0xff]
    %v2122 = vld [vmem:[%s11 + $0x178] sm:$0xff]
    %2123 = vmatprep.subr.mxu0 0.0
    %2124 = vmatpush1.msra.mxu0 %v2075
    %2125 = vmatprep.subr.mxu0 0.0
    %2126 = vmatpush1.msra.mxu0 %v2076
    %2127 = vmatprep.subr.mxu0 0.0
    %2128 = vmatpush1.msra.mxu0 %v2077
    %2129 = vmatprep.subr.mxu0 0.0
    %2130 = vmatpush1.msra.mxu0 %v2078
    %2131 = vmatprep.subr.mxu0 0.0
    %2132 = vmatpush1.msra.mxu0 %v2079
    %2133 = vmatprep.subr.mxu0 0.0
    %2134 = vmatpush1.msra.mxu0 %v2080
    %2135 = vmatprep.subr.mxu0 0.0
    %2136 = vmatpush1.msra.mxu0 %v2081
    %2137 = vmatprep.subr.mxu0 0.0
    %2138 = vmatpush1.msra.mxu0 %v2082
    %2139 = vmatprep.subr.mxu0 0.0
    %2140 = vmatpush1.msra.mxu0 %v2083
    %2141 = vmatprep.subr.mxu0 0.0
    %2142 = vmatpush1.msra.mxu0 %v2084
    %2143 = vmatprep.subr.mxu0 0.0
    %2144 = vmatpush1.msra.mxu0 %v2085
    %2145 = vmatprep.subr.mxu0 0.0
    %2146 = vmatpush1.msra.mxu0 %v2086
    %2147 = vmatprep.subr.mxu0 0.0
    %2148 = vmatpush1.msra.mxu0 %v2087
    %2149 = vmatprep.subr.mxu0 0.0
    %2150 = vmatpush1.msra.mxu0 %v2088
    %2151 = vmatprep.subr.mxu0 0.0
    %2152 = vmatpush1.msra.mxu0 %v2089
    %2153 = vmatprep.subr.mxu0 0.0
    %2154 = vmatpush1.msra.mxu0 %v2090
    %2155 = vmatprep.subr.mxu0 0.0
    %2156 = vmatpush1.msra.mxu0 %v2091
    %2157 = vmatprep.subr.mxu0 0.0
    %2158 = vmatpush1.msra.mxu0 %v2092
    %2159 = vmatprep.subr.mxu0 0.0
    %2160 = vmatpush1.msra.mxu0 %v2093
    %2161 = vmatprep.subr.mxu0 0.0
    %2162 = vmatpush1.msra.mxu0 %v2094
    %2163 = vmatprep.subr.mxu0 0.0
    %2164 = vmatpush1.msra.mxu0 %v2095
    %2165 = vmatprep.subr.mxu0 0.0
    %2166 = vmatpush1.msra.mxu0 %v2096
    %2167 = vmatprep.subr.mxu0 0.0
    %2168 = vmatpush1.msra.mxu0 %v2097
    %2169 = vmatprep.subr.mxu0 0.0
    %2170 = vmatpush1.msra.mxu0 %v2098
    %2171 = vmatprep.subr.mxu0 0.0
    %2172 = vmatpush1.msra.mxu0 %v2099
    %2173 = vmatprep.subr.mxu0 0.0
    %2174 = vmatpush1.msra.mxu0 %v2100
    %2175 = vmatprep.subr.mxu0 0.0
    %2176 = vmatpush1.msra.mxu0 %v2101
    %2177 = vmatprep.subr.mxu0 0.0
    %2178 = vmatpush1.msra.mxu0 %v2102
    %2179 = vmatprep.subr.mxu0 0.0
    %2180 = vmatpush1.msra.mxu0 %v2103
    %2181 = vmatprep.subr.mxu0 0.0
    %2182 = vmatpush1.msra.mxu0 %v2104
    %2183 = vmatprep.subr.mxu0 0.0
    %2184 = vmatpush1.msra.mxu0 %v2105
    %2185 = vmatprep.subr.mxu0 0.0
    %2186 = vmatpush1.msra.mxu0 %v2106
    %2187 = vmatprep.mubr.f32.mxu0 %v1856
    %2188 = vmatmul.mubr.f32.gmra.mrb[0].mxu0 %v1854
    %v2189 = vpop.f32.mrb[0].mxu0
    %v2190 = vadd.f32 0.0, %v2189
    %v2191 = vpop.f32.mrb[0].mxu0
    %2192 = vdwg.mxu0
    %2193 = vmatprep.subr.mxu0 0.0
    %2194 = vmatpush1.msra.mxu0 %v2107
    %2195 = vmatprep.subr.mxu0 0.0
    %2196 = vmatpush1.msra.mxu0 %v2108
    %2197 = vmatprep.subr.mxu0 0.0
    %2198 = vmatpush1.msra.mxu0 %v2109
    %2199 = vmatprep.subr.mxu0 0.0
    %2200 = vmatpush1.msra.mxu0 %v2110
    %2201 = vmatprep.subr.mxu0 0.0
    %2202 = vmatpush1.msra.mxu0 %v2111
    %2203 = vmatprep.subr.mxu0 0.0
    %2204 = vmatpush1.msra.mxu0 %v2112
    %2205 = vmatprep.subr.mxu0 0.0
    %2206 = vmatpush1.msra.mxu0 %v2113
    %2207 = vmatprep.subr.mxu0 0.0
    %2208 = vmatpush1.msra.mxu0 %v2114
    %2209 = vmatprep.subr.mxu0 0.0
    %2210 = vmatpush1.msra.mxu0 %v2115
    %2211 = vmatprep.subr.mxu0 0.0
    %2212 = vmatpush1.msra.mxu0 %v2116
    %2213 = vmatprep.subr.mxu0 0.0
    %2214 = vmatpush1.msra.mxu0 %v2117
    %2215 = vmatprep.subr.mxu0 0.0
    %2216 = vmatpush1.msra.mxu0 %v2118
    %2217 = vmatprep.subr.mxu0 0.0
    %2218 = vmatpush1.msra.mxu0 %v2119
    %2219 = vmatprep.subr.mxu0 0.0
    %2220 = vmatpush1.msra.mxu0 %v2120
    %2221 = vmatprep.subr.mxu0 0.0
    %2222 = vmatpush1.msra.mxu0 %v2121
    %2223 = vmatprep.subr.mxu0 0.0
    %2224 = vmatpush1.msra.mxu0 %v2122
    %2225 = vmatprep.subr.mxu0 0.0
    %2226 = vmatpush1.msra.mxu0 0.0
    %2227 = vmatprep.subr.mxu0 0.0
    %2228 = vmatpush1.msra.mxu0 0.0
    %2229 = vmatprep.subr.mxu0 0.0
    %2230 = vmatpush1.msra.mxu0 0.0
    %2231 = vmatprep.subr.mxu0 0.0
    %2232 = vmatpush1.msra.mxu0 0.0
    %2233 = vmatprep.subr.mxu0 0.0
    %2234 = vmatpush1.msra.mxu0 0.0
    %2235 = vmatprep.subr.mxu0 0.0
    %2236 = vmatpush1.msra.mxu0 0.0
    %2237 = vmatprep.subr.mxu0 0.0
    %2238 = vmatpush1.msra.mxu0 0.0
    %2239 = vmatprep.subr.mxu0 0.0
    %2240 = vmatpush1.msra.mxu0 0.0
    %2241 = vmatprep.subr.mxu0 0.0
    %2242 = vmatpush1.msra.mxu0 0.0
    %2243 = vmatprep.subr.mxu0 0.0
    %2244 = vmatpush1.msra.mxu0 0.0
    %2245 = vmatprep.subr.mxu0 0.0
    %2246 = vmatpush1.msra.mxu0 0.0
    %2247 = vmatprep.subr.mxu0 0.0
    %2248 = vmatpush1.msra.mxu0 0.0
    %2249 = vmatprep.subr.mxu0 0.0
    %2250 = vmatpush1.msra.mxu0 0.0
    %2251 = vmatprep.subr.mxu0 0.0
    %2252 = vmatpush1.msra.mxu0 0.0
    %2253 = vmatprep.subr.mxu0 0.0
    %2254 = vmatpush1.msra.mxu0 0.0
    %2255 = vmatprep.subr.mxu0 0.0
    %2256 = vmatpush1.msra.mxu0 0.0
    %2257 = vmatprep.mubr.f32.mxu0 0.0
    %2258 = vmatmul.mubr.f32.gmra.mrb[0].mxu0 %v1925
    %v2259 = vpop.f32.mrb[0].mxu0
    %v2260 = vadd.f32 %v2190, %v2259
    %v2261 = vpop.f32.mrb[0].mxu0
    %2262 = vdwg.mxu0
    %2263 = vmatprep.subr.mxu0 0.0
    %2264 = vmatpush1.msra.mxu0 %v2075
    %2265 = vmatprep.subr.mxu0 0.0
    %2266 = vmatpush1.msra.mxu0 %v2076
    %2267 = vmatprep.subr.mxu0 0.0
    %2268 = vmatpush1.msra.mxu0 %v2077
    %2269 = vmatprep.subr.mxu0 0.0
    %2270 = vmatpush1.msra.mxu0 %v2078
    %2271 = vmatprep.subr.mxu0 0.0
    %2272 = vmatpush1.msra.mxu0 %v2079
    %2273 = vmatprep.subr.mxu0 0.0
    %2274 = vmatpush1.msra.mxu0 %v2080
    %2275 = vmatprep.subr.mxu0 0.0
    %2276 = vmatpush1.msra.mxu0 %v2081
    %2277 = vmatprep.subr.mxu0 0.0
    %2278 = vmatpush1.msra.mxu0 %v2082
    %2279 = vmatprep.subr.mxu0 0.0
    %2280 = vmatpush1.msra.mxu0 %v2083
    %2281 = vmatprep.subr.mxu0 0.0
    %2282 = vmatpush1.msra.mxu0 %v2084
    %2283 = vmatprep.subr.mxu0 0.0
    %2284 = vmatpush1.msra.mxu0 %v2085
    %2285 = vmatprep.subr.mxu0 0.0
    %2286 = vmatpush1.msra.mxu0 %v2086
    %2287 = vmatprep.subr.mxu0 0.0
    %2288 = vmatpush1.msra.mxu0 %v2087
    %2289 = vmatprep.subr.mxu0 0.0
    %2290 = vmatpush1.msra.mxu0 %v2088
    %2291 = vmatprep.subr.mxu0 0.0
    %2292 = vmatpush1.msra.mxu0 %v2089
    %2293 = vmatprep.subr.mxu0 0.0
    %2294 = vmatpush1.msra.mxu0 %v2090
    %2295 = vmatprep.subr.mxu0 0.0
    %2296 = vmatpush1.msra.mxu0 %v2091
    %2297 = vmatprep.subr.mxu0 0.0
    %2298 = vmatpush1.msra.mxu0 %v2092
    %2299 = vmatprep.subr.mxu0 0.0
    %2300 = vmatpush1.msra.mxu0 %v2093
    %2301 = vmatprep.subr.mxu0 0.0
    %2302 = vmatpush1.msra.mxu0 %v2094
    %2303 = vmatprep.subr.mxu0 0.0
    %2304 = vmatpush1.msra.mxu0 %v2095
    %2305 = vmatprep.subr.mxu0 0.0
    %2306 = vmatpush1.msra.mxu0 %v2096
    %2307 = vmatprep.subr.mxu0 0.0
    %2308 = vmatpush1.msra.mxu0 %v2097
    %2309 = vmatprep.subr.mxu0 0.0
    %2310 = vmatpush1.msra.mxu0 %v2098
    %2311 = vmatprep.subr.mxu0 0.0
    %2312 = vmatpush1.msra.mxu0 %v2099
    %2313 = vmatprep.subr.mxu0 0.0
    %2314 = vmatpush1.msra.mxu0 %v2100
    %2315 = vmatprep.subr.mxu0 0.0
    %2316 = vmatpush1.msra.mxu0 %v2101
    %2317 = vmatprep.subr.mxu0 0.0
    %2318 = vmatpush1.msra.mxu0 %v2102
    %2319 = vmatprep.subr.mxu0 0.0
    %2320 = vmatpush1.msra.mxu0 %v2103
    %2321 = vmatprep.subr.mxu0 0.0
    %2322 = vmatpush1.msra.mxu0 %v2104
    %2323 = vmatprep.subr.mxu0 0.0
    %2324 = vmatpush1.msra.mxu0 %v2105
    %2325 = vmatprep.subr.mxu0 0.0
    %2326 = vmatpush1.msra.mxu0 %v2106
    %2327 = vmatprep.mubr.f32.mxu0 %v2003
    %2328 = vmatmul.mubr.f32.gmra.mrb[0].mxu0 %v2001
    %v2329 = vpop.f32.mrb[0].mxu0
    %v2330 = vadd.f32 0.0, %v2329
    %v2331 = vpop.f32.mrb[0].mxu0
    %2332 = vdwg.mxu0
    %2333 = vmatprep.subr.mxu0 0.0
    %2334 = vmatpush1.msra.mxu0 %v2107
    %2335 = vmatprep.subr.mxu0 0.0
    %2336 = vmatpush1.msra.mxu0 %v2108
    %2337 = vmatprep.subr.mxu0 0.0
    %2338 = vmatpush1.msra.mxu0 %v2109
    %2339 = vmatprep.subr.mxu0 0.0
    %2340 = vmatpush1.msra.mxu0 %v2110
    %2341 = vmatprep.subr.mxu0 0.0
    %2342 = vmatpush1.msra.mxu0 %v2111
    %2343 = vmatprep.subr.mxu0 0.0
    %2344 = vmatpush1.msra.mxu0 %v2112
    %2345 = vmatprep.subr.mxu0 0.0
    %2346 = vmatpush1.msra.mxu0 %v2113
    %2347 = vmatprep.subr.mxu0 0.0
    %2348 = vmatpush1.msra.mxu0 %v2114
    %2349 = vmatprep.subr.mxu0 0.0
    %2350 = vmatpush1.msra.mxu0 %v2115
    %2351 = vmatprep.subr.mxu0 0.0
    %2352 = vmatpush1.msra.mxu0 %v2116
    %2353 = vmatprep.subr.mxu0 0.0
    %2354 = vmatpush1.msra.mxu0 %v2117
    %2355 = vmatprep.subr.mxu0 0.0
    %2356 = vmatpush1.msra.mxu0 %v2118
    %2357 = vmatprep.subr.mxu0 0.0
    %2358 = vmatpush1.msra.mxu0 %v2119
    %2359 = vmatprep.subr.mxu0 0.0
    %2360 = vmatpush1.msra.mxu0 %v2120
    %2361 = vmatprep.subr.mxu0 0.0
    %2362 = vmatpush1.msra.mxu0 %v2121
    %2363 = vmatprep.subr.mxu0 0.0
    %2364 = vmatpush1.msra.mxu0 %v2122
    %2365 = vmatprep.subr.mxu0 0.0
    %2366 = vmatpush1.msra.mxu0 0.0
    %2367 = vmatprep.subr.mxu0 0.0
    %2368 = vmatpush1.msra.mxu0 0.0
    %2369 = vmatprep.subr.mxu0 0.0
    %2370 = vmatpush1.msra.mxu0 0.0
    %2371 = vmatprep.subr.mxu0 0.0
    %2372 = vmatpush1.msra.mxu0 0.0
    %2373 = vmatprep.subr.mxu0 0.0
    %2374 = vmatpush1.msra.mxu0 0.0
    %2375 = vmatprep.subr.mxu0 0.0
    %2376 = vmatpush1.msra.mxu0 0.0
    %2377 = vmatprep.subr.mxu0 0.0
    %2378 = vmatpush1.msra.mxu0 0.0
    %2379 = vmatprep.subr.mxu0 0.0
    %2380 = vmatpush1.msra.mxu0 0.0
    %2381 = vmatprep.subr.mxu0 0.0
    %2382 = vmatpush1.msra.mxu0 0.0
    %2383 = vmatprep.subr.mxu0 0.0
    %2384 = vmatpush1.msra.mxu0 0.0
    %2385 = vmatprep.subr.mxu0 0.0
    %2386 = vmatpush1.msra.mxu0 0.0
    %2387 = vmatprep.subr.mxu0 0.0
    %2388 = vmatpush1.msra.mxu0 0.0
    %2389 = vmatprep.subr.mxu0 0.0
    %2390 = vmatpush1.msra.mxu0 0.0
    %2391 = vmatprep.subr.mxu0 0.0
    %2392 = vmatpush1.msra.mxu0 0.0
    %2393 = vmatprep.subr.mxu0 0.0
    %2394 = vmatpush1.msra.mxu0 0.0
    %2395 = vmatprep.subr.mxu0 0.0
    %2396 = vmatpush1.msra.mxu0 0.0
    %2397 = vmatprep.mubr.f32.mxu0 0.0
    %2398 = vmatmul.mubr.f32.gmra.mrb[0].mxu0 %v2072
    %v2399 = vpop.f32.mrb[0].mxu0
    %v2400 = vadd.f32 %v2330, %v2399
    %v2401 = vpop.f32.mrb[0].mxu0
    %2402 = vdwg.mxu0
    %v2403 = vmul.f32 %v2260, 0.020833334
    %v2404 = vmul.f32 %v2400, 0.020833334
    %v2405 = vmul.f32 %v2403, %v2403
    %v2406 = vsub.f32 %v2404, %v2405
    %v2407 = vmax.f32 %v2406, 0.0
    %v2408 = vadd.f32 %v2407, 1e-05
    %v2409 = vrsqrt.pop %v2408
    %v2411 = vrot.slane %v2409, 4
    %v2413 = vmul.f32 %v90, %v2411
    %v2415 = vrot.slane %v2413, 4
    %v2417 = vmul.f32 %v2403, %v2415
    %v2419 = vrot.slane %v2417, 3
    %v2421 = vsub.f32 %v90, %v2419
    %v2422 = vld [vmem:[%s12] sm:$0xff]
    %v2423 = vld [vmem:[%s12 + $0x8] sm:$0xff]
    %v2424 = vld [vmem:[%s12 + $0x10] sm:$0xff]
    %v2425 = vld [vmem:[%s12 + $0x18] sm:$0xff]
    %v2426 = vld [vmem:[%s12 + $0x20] sm:$0xff]
    %v2427 = vld [vmem:[%s12 + $0x28] sm:$0xff]
    %v2428 = vld [vmem:[%s12 + $0x30] sm:$0xff]
    %v2429 = vld [vmem:[%s12 + $0x38] sm:$0xff]
    %v2430 = vld [vmem:[%s12 + $0x40] sm:$0xff]
    %v2431 = vld [vmem:[%s12 + $0x48] sm:$0xff]
    %v2432 = vld [vmem:[%s12 + $0x50] sm:$0xff]
    %v2433 = vld [vmem:[%s12 + $0x58] sm:$0xff]
    %v2434 = vld [vmem:[%s12 + $0x60] sm:$0xff]
    %v2435 = vld [vmem:[%s12 + $0x68] sm:$0xff]
    %v2436 = vld [vmem:[%s12 + $0x70] sm:$0xff]
    %v2437 = vld [vmem:[%s12 + $0x78] sm:$0xff]
    %v2438 = vld [vmem:[%s12 + $0x80] sm:$0xff]
    %v2439 = vld [vmem:[%s12 + $0x88] sm:$0xff]
    %v2440 = vld [vmem:[%s12 + $0x90] sm:$0xff]
    %v2441 = vld [vmem:[%s12 + $0x98] sm:$0xff]
    %v2442 = vld [vmem:[%s12 + $0xa0] sm:$0xff]
    %v2443 = vld [vmem:[%s12 + $0xa8] sm:$0xff]
    %v2444 = vld [vmem:[%s12 + $0xb0] sm:$0xff]
    %v2445 = vld [vmem:[%s12 + $0xb8] sm:$0xff]
    %v2446 = vld [vmem:[%s12 + $0xc0] sm:$0xff]
    %v2447 = vld [vmem:[%s12 + $0xc8] sm:$0xff]
    %v2448 = vld [vmem:[%s12 + $0xd0] sm:$0xff]
    %v2449 = vld [vmem:[%s12 + $0xd8] sm:$0xff]
    %v2450 = vld [vmem:[%s12 + $0xe0] sm:$0xff]
    %v2451 = vld [vmem:[%s12 + $0xe8] sm:$0xff]
    %v2452 = vld [vmem:[%s12 + $0xf0] sm:$0xff]
    %v2453 = vld [vmem:[%s12 + $0xf8] sm:$0xff]
    %v2454 = vld [vmem:[%s12 + $0x100] sm:$0xff]
    %v2455 = vld [vmem:[%s12 + $0x108] sm:$0xff]
    %v2456 = vld [vmem:[%s12 + $0x110] sm:$0xff]
    %v2457 = vld [vmem:[%s12 + $0x118] sm:$0xff]
    %v2458 = vld [vmem:[%s12 + $0x120] sm:$0xff]
    %v2459 = vld [vmem:[%s12 + $0x128] sm:$0xff]
    %v2460 = vld [vmem:[%s12 + $0x130] sm:$0xff]
    %v2461 = vld [vmem:[%s12 + $0x138] sm:$0xff]
    %v2462 = vld [vmem:[%s12 + $0x140] sm:$0xff]
    %v2463 = vld [vmem:[%s12 + $0x148] sm:$0xff]
    %v2464 = vld [vmem:[%s12 + $0x150] sm:$0xff]
    %v2465 = vld [vmem:[%s12 + $0x158] sm:$0xff]
    %v2466 = vld [vmem:[%s12 + $0x160] sm:$0xff]
    %v2467 = vld [vmem:[%s12 + $0x168] sm:$0xff]
    %v2468 = vld [vmem:[%s12 + $0x170] sm:$0xff]
    %v2469 = vld [vmem:[%s12 + $0x178] sm:$0xff]
    %2470 = vmatprep.subr.mxu0 %v2423
    %2471 = vmatpush1.msra.mxu0 %v2422
    %2472 = vmatprep.subr.mxu0 %v2426
    %2473 = vmatpush1.msra.mxu0 %v2425
    %2474 = vmatprep.subr.mxu0 %v2429
    %2475 = vmatpush1.msra.mxu0 %v2428
    %2476 = vmatprep.subr.mxu0 %v2432
    %2477 = vmatpush1.msra.mxu0 %v2431
    %2478 = vmatprep.subr.mxu0 %v2435
    %2479 = vmatpush1.msra.mxu0 %v2434
    %2480 = vmatprep.subr.mxu0 %v2438
    %2481 = vmatpush1.msra.mxu0 %v2437
    %2482 = vmatprep.subr.mxu0 %v2441
    %2483 = vmatpush1.msra.mxu0 %v2440
    %2484 = vmatprep.subr.mxu0 %v2444
    %2485 = vmatpush1.msra.mxu0 %v2443
    %2486 = vmatprep.subr.mxu0 %v2447
    %2487 = vmatpush1.msra.mxu0 %v2446
    %2488 = vmatprep.subr.mxu0 %v2450
    %2489 = vmatpush1.msra.mxu0 %v2449
    %2490 = vmatprep.subr.mxu0 %v2453
    %2491 = vmatpush1.msra.mxu0 %v2452
    %2492 = vmatprep.subr.mxu0 %v2456
    %2493 = vmatpush1.msra.mxu0 %v2455
    %2494 = vmatprep.subr.mxu0 %v2459
    %2495 = vmatpush1.msra.mxu0 %v2458
    %2496 = vmatprep.subr.mxu0 %v2462
    %2497 = vmatpush1.msra.mxu0 %v2461
    %2498 = vmatprep.subr.mxu0 %v2465
    %2499 = vmatpush1.msra.mxu0 %v2464
    %2500 = vmatprep.subr.mxu0 %v2468
    %2501 = vmatpush1.msra.mxu0 %v2467
    %2502 = vmatprep.subr.mxu0 0.0
    %2503 = vmatpush1.msra.mxu0 0.0
    %2504 = vmatprep.subr.mxu0 0.0
    %2505 = vmatpush1.msra.mxu0 0.0
    %2506 = vmatprep.subr.mxu0 0.0
    %2507 = vmatpush1.msra.mxu0 0.0
    %2508 = vmatprep.subr.mxu0 0.0
    %2509 = vmatpush1.msra.mxu0 0.0
    %2510 = vmatprep.subr.mxu0 0.0
    %2511 = vmatpush1.msra.mxu0 0.0
    %2512 = vmatprep.subr.mxu0 0.0
    %2513 = vmatpush1.msra.mxu0 0.0
    %2514 = vmatprep.subr.mxu0 0.0
    %2515 = vmatpush1.msra.mxu0 0.0
    %2516 = vmatprep.subr.mxu0 0.0
    %2517 = vmatpush1.msra.mxu0 0.0
    %2518 = vmatprep.subr.mxu0 0.0
    %2519 = vmatpush1.msra.mxu0 0.0
    %2520 = vmatprep.subr.mxu0 0.0
    %2521 = vmatpush1.msra.mxu0 0.0
    %2522 = vmatprep.subr.mxu0 0.0
    %2523 = vmatpush1.msra.mxu0 0.0
    %2524 = vmatprep.subr.mxu0 0.0
    %2525 = vmatpush1.msra.mxu0 0.0
    %2526 = vmatprep.subr.mxu0 0.0
    %2527 = vmatpush1.msra.mxu0 0.0
    %2528 = vmatprep.subr.mxu0 0.0
    %2529 = vmatpush1.msra.mxu0 0.0
    %2530 = vmatprep.subr.mxu0 0.0
    %2531 = vmatpush1.msra.mxu0 0.0
    %2532 = vmatprep.subr.mxu0 0.0
    %2533 = vmatpush1.msra.mxu0 0.0
    %2534 = vmatprep.mubr.f32.mxu0 0.0
    %2535 = vmatmul.mubr.f32.gmra.mrb[0].mxu0 %v2415
    %v2536 = vpop.f32.mrb[0].mxu0
    %v2537 = vadd.f32 0.0, %v2536
    %v2538 = vpop.f32.mrb[0].mxu0
    %v2539 = vadd.f32 0.0, %v2538
    %2540 = vdwg.mxu0
    %2541 = vmatprep.subr.mxu0 0.0
    %2542 = vmatpush1.msra.mxu0 %v2424
    %2543 = vmatprep.subr.mxu0 0.0
    %2544 = vmatpush1.msra.mxu0 %v2427
    %2545 = vmatprep.subr.mxu0 0.0
    %2546 = vmatpush1.msra.mxu0 %v2430
    %2547 = vmatprep.subr.mxu0 0.0
    %2548 = vmatpush1.msra.mxu0 %v2433
    %2549 = vmatprep.subr.mxu0 0.0
    %2550 = vmatpush1.msra.mxu0 %v2436
    %2551 = vmatprep.subr.mxu0 0.0
    %2552 = vmatpush1.msra.mxu0 %v2439
    %2553 = vmatprep.subr.mxu0 0.0
    %2554 = vmatpush1.msra.mxu0 %v2442
    %2555 = vmatprep.subr.mxu0 0.0
    %2556 = vmatpush1.msra.mxu0 %v2445
    %2557 = vmatprep.subr.mxu0 0.0
    %2558 = vmatpush1.msra.mxu0 %v2448
    %2559 = vmatprep.subr.mxu0 0.0
    %2560 = vmatpush1.msra.mxu0 %v2451
    %2561 = vmatprep.subr.mxu0 0.0
    %2562 = vmatpush1.msra.mxu0 %v2454
    %2563 = vmatprep.subr.mxu0 0.0
    %2564 = vmatpush1.msra.mxu0 %v2457
    %2565 = vmatprep.subr.mxu0 0.0
    %2566 = vmatpush1.msra.mxu0 %v2460
    %2567 = vmatprep.subr.mxu0 0.0
    %2568 = vmatpush1.msra.mxu0 %v2463
    %2569 = vmatprep.subr.mxu0 0.0
    %2570 = vmatpush1.msra.mxu0 %v2466
    %2571 = vmatprep.subr.mxu0 0.0
    %2572 = vmatpush1.msra.mxu0 %v2469
    %2573 = vmatprep.subr.mxu0 0.0
    %2574 = vmatpush1.msra.mxu0 0.0
    %2575 = vmatprep.subr.mxu0 0.0
    %2576 = vmatpush1.msra.mxu0 0.0
    %2577 = vmatprep.subr.mxu0 0.0
    %2578 = vmatpush1.msra.mxu0 0.0
    %2579 = vmatprep.subr.mxu0 0.0
    %2580 = vmatpush1.msra.mxu0 0.0
    %2581 = vmatprep.subr.mxu0 0.0
    %2582 = vmatpush1.msra.mxu0 0.0
    %2583 = vmatprep.subr.mxu0 0.0
    %2584 = vmatpush1.msra.mxu0 0.0
    %2585 = vmatprep.subr.mxu0 0.0
    %2586 = vmatpush1.msra.mxu0 0.0
    %2587 = vmatprep.subr.mxu0 0.0
    %2588 = vmatpush1.msra.mxu0 0.0
    %2589 = vmatprep.subr.mxu0 0.0
    %2590 = vmatpush1.msra.mxu0 0.0
    %2591 = vmatprep.subr.mxu0 0.0
    %2592 = vmatpush1.msra.mxu0 0.0
    %2593 = vmatprep.subr.mxu0 0.0
    %2594 = vmatpush1.msra.mxu0 0.0
    %2595 = vmatprep.subr.mxu0 0.0
    %2596 = vmatpush1.msra.mxu0 0.0
    %2597 = vmatprep.subr.mxu0 0.0
    %2598 = vmatpush1.msra.mxu0 0.0
    %2599 = vmatprep.subr.mxu0 0.0
    %2600 = vmatpush1.msra.mxu0 0.0
    %2601 = vmatprep.subr.mxu0 0.0
    %2602 = vmatpush1.msra.mxu0 0.0
    %2603 = vmatprep.subr.mxu0 0.0
    %2604 = vmatpush1.msra.mxu0 0.0
    %2605 = vmatprep.mubr.f32.mxu0 0.0
    %2606 = vmatmul.mubr.f32.gmra.mrb[0].mxu0 %v2415
    %v2607 = vpop.f32.mrb[0].mxu0
    %v2608 = vadd.f32 0.0, %v2607
    %v2609 = vpop.f32.mrb[0].mxu0
    %2610 = vdwg.mxu0
    %v2612 = vrot.slane %v2421, 5
    %2614 = vmatprep.subr.mxu0 %v2423
    %2615 = vmatpush1.msra.mxu0 %v2422
    %2616 = vmatprep.subr.mxu0 %v2426
    %2617 = vmatpush1.msra.mxu0 %v2425
    %2618 = vmatprep.subr.mxu0 %v2429
    %2619 = vmatpush1.msra.mxu0 %v2428
    %2620 = vmatprep.subr.mxu0 %v2432
    %2621 = vmatpush1.msra.mxu0 %v2431
    %2622 = vmatprep.subr.mxu0 %v2435
    %2623 = vmatpush1.msra.mxu0 %v2434
    %2624 = vmatprep.subr.mxu0 %v2438
    %2625 = vmatpush1.msra.mxu0 %v2437
    %2626 = vmatprep.subr.mxu0 %v2441
    %2627 = vmatpush1.msra.mxu0 %v2440
    %2628 = vmatprep.subr.mxu0 %v2444
    %2629 = vmatpush1.msra.mxu0 %v2443
    %2630 = vmatprep.subr.mxu0 %v2447
    %2631 = vmatpush1.msra.mxu0 %v2446
    %2632 = vmatprep.subr.mxu0 %v2450
    %2633 = vmatpush1.msra.mxu0 %v2449
    %2634 = vmatprep.subr.mxu0 %v2453
    %2635 = vmatpush1.msra.mxu0 %v2452
    %2636 = vmatprep.subr.mxu0 %v2456
    %2637 = vmatpush1.msra.mxu0 %v2455
    %2638 = vmatprep.subr.mxu0 %v2459
    %2639 = vmatpush1.msra.mxu0 %v2458
    %2640 = vmatprep.subr.mxu0 %v2462
    %2641 = vmatpush1.msra.mxu0 %v2461
    %2642 = vmatprep.subr.mxu0 %v2465
    %2643 = vmatpush1.msra.mxu0 %v2464
    %2644 = vmatprep.subr.mxu0 %v2468
    %2645 = vmatpush1.msra.mxu0 %v2467
    %2646 = vmatprep.subr.mxu0 0.0
    %2647 = vmatpush1.msra.mxu0 0.0
    %2648 = vmatprep.subr.mxu0 0.0
    %2649 = vmatpush1.msra.mxu0 0.0
    %2650 = vmatprep.subr.mxu0 0.0
    %2651 = vmatpush1.msra.mxu0 0.0
    %2652 = vmatprep.subr.mxu0 0.0
    %2653 = vmatpush1.msra.mxu0 0.0
    %2654 = vmatprep.subr.mxu0 0.0
    %2655 = vmatpush1.msra.mxu0 0.0
    %2656 = vmatprep.subr.mxu0 0.0
    %2657 = vmatpush1.msra.mxu0 0.0
    %2658 = vmatprep.subr.mxu0 0.0
    %2659 = vmatpush1.msra.mxu0 0.0
    %2660 = vmatprep.subr.mxu0 0.0
    %2661 = vmatpush1.msra.mxu0 0.0
    %2662 = vmatprep.subr.mxu0 0.0
    %2663 = vmatpush1.msra.mxu0 0.0
    %2664 = vmatprep.subr.mxu0 0.0
    %2665 = vmatpush1.msra.mxu0 0.0
    %2666 = vmatprep.subr.mxu0 0.0
    %2667 = vmatpush1.msra.mxu0 0.0
    %2668 = vmatprep.subr.mxu0 0.0
    %2669 = vmatpush1.msra.mxu0 0.0
    %2670 = vmatprep.subr.mxu0 0.0
    %2671 = vmatpush1.msra.mxu0 0.0
    %2672 = vmatprep.subr.mxu0 0.0
    %2673 = vmatpush1.msra.mxu0 0.0
    %2674 = vmatprep.subr.mxu0 0.0
    %2675 = vmatpush1.msra.mxu0 0.0
    %2676 = vmatprep.subr.mxu0 0.0
    %2677 = vmatpush1.msra.mxu0 0.0
    %2678 = vmatprep.mubr.f32.mxu0 0.0
    %2679 = vmatmul.mubr.f32.gmra.mrb[0].mxu0 %v2612
    %v2680 = vpop.f32.mrb[0].mxu0
    %v2681 = vadd.f32 0.0, %v2680
    %v2682 = vpop.f32.mrb[0].mxu0
    %v2683 = vadd.f32 0.0, %v2682
    %2684 = vdwg.mxu0
    %2685 = vmatprep.subr.mxu0 0.0
    %2686 = vmatpush1.msra.mxu0 %v2424
    %2687 = vmatprep.subr.mxu0 0.0
    %2688 = vmatpush1.msra.mxu0 %v2427
    %2689 = vmatprep.subr.mxu0 0.0
    %2690 = vmatpush1.msra.mxu0 %v2430
    %2691 = vmatprep.subr.mxu0 0.0
    %2692 = vmatpush1.msra.mxu0 %v2433
    %2693 = vmatprep.subr.mxu0 0.0
    %2694 = vmatpush1.msra.mxu0 %v2436
    %2695 = vmatprep.subr.mxu0 0.0
    %2696 = vmatpush1.msra.mxu0 %v2439
    %2697 = vmatprep.subr.mxu0 0.0
    %2698 = vmatpush1.msra.mxu0 %v2442
    %2699 = vmatprep.subr.mxu0 0.0
    %2700 = vmatpush1.msra.mxu0 %v2445
    %2701 = vmatprep.subr.mxu0 0.0
    %2702 = vmatpush1.msra.mxu0 %v2448
    %2703 = vmatprep.subr.mxu0 0.0
    %2704 = vmatpush1.msra.mxu0 %v2451
    %2705 = vmatprep.subr.mxu0 0.0
    %2706 = vmatpush1.msra.mxu0 %v2454
    %2707 = vmatprep.subr.mxu0 0.0
    %2708 = vmatpush1.msra.mxu0 %v2457
    %2709 = vmatprep.subr.mxu0 0.0
    %2710 = vmatpush1.msra.mxu0 %v2460
    %2711 = vmatprep.subr.mxu0 0.0
    %2712 = vmatpush1.msra.mxu0 %v2463
    %2713 = vmatprep.subr.mxu0 0.0
    %2714 = vmatpush1.msra.mxu0 %v2466
    %2715 = vmatprep.subr.mxu0 0.0
    %2716 = vmatpush1.msra.mxu0 %v2469
    %2717 = vmatprep.subr.mxu0 0.0
    %2718 = vmatpush1.msra.mxu0 0.0
    %2719 = vmatprep.subr.mxu0 0.0
    %2720 = vmatpush1.msra.mxu0 0.0
    %2721 = vmatprep.subr.mxu0 0.0
    %2722 = vmatpush1.msra.mxu0 0.0
    %2723 = vmatprep.subr.mxu0 0.0
    %2724 = vmatpush1.msra.mxu0 0.0
    %2725 = vmatprep.subr.mxu0 0.0
    %2726 = vmatpush1.msra.mxu0 0.0
    %2727 = vmatprep.subr.mxu0 0.0
    %2728 = vmatpush1.msra.mxu0 0.0
    %2729 = vmatprep.subr.mxu0 0.0
    %2730 = vmatpush1.msra.mxu0 0.0
    %2731 = vmatprep.subr.mxu0 0.0
    %2732 = vmatpush1.msra.mxu0 0.0
    %2733 = vmatprep.subr.mxu0 0.0
    %2734 = vmatpush1.msra.mxu0 0.0
    %2735 = vmatprep.subr.mxu0 0.0
    %2736 = vmatpush1.msra.mxu0 0.0
    %2737 = vmatprep.subr.mxu0 0.0
    %2738 = vmatpush1.msra.mxu0 0.0
    %2739 = vmatprep.subr.mxu0 0.0
    %2740 = vmatpush1.msra.mxu0 0.0
    %2741 = vmatprep.subr.mxu0 0.0
    %2742 = vmatpush1.msra.mxu0 0.0
    %2743 = vmatprep.subr.mxu0 0.0
    %2744 = vmatpush1.msra.mxu0 0.0
    %2745 = vmatprep.subr.mxu0 0.0
    %2746 = vmatpush1.msra.mxu0 0.0
    %2747 = vmatprep.subr.mxu0 0.0
    %2748 = vmatpush1.msra.mxu0 0.0
    %2749 = vmatprep.mubr.f32.mxu0 0.0
    %2750 = vmatmul.mubr.f32.gmra.mrb[0].mxu0 %v2612
    %v2751 = vpop.f32.mrb[0].mxu0
    %v2752 = vadd.f32 0.0, %v2751
    %v2753 = vpop.f32.mrb[0].mxu0
    %2754 = vdwg.mxu0
    %v2755 = vlaneseq
    %v2756 = vshrl.u32 %v2755, 7
    %v2757 = vsub.s32 0, %v2756
    %v2758 = vrot.slane %v2537, %v2757
    %v2759 = vlaneseq
    %v2760 = vshrl.u32 %v2759, 7
    %v2761 = vsub.s32 0, %v2760
    %v2762 = vrot.slane %v2539, %v2761
    %v2763 = vlaneseq
    %v2764 = vshrl.u32 %v2763, 7
    %v2765 = vsub.s32 0, %v2764
    %v2766 = vrot.slane %v2608, %v2765
    %v2767 = vmul.f32 %v1738, %v2758
    %v2768 = vmul.f32 %v1740, %v2762
    %v2769 = vmul.f32 %v1781, %v2766
    %v2770 = vmul.f32 %v1742, %v2758
    %v2771 = vmul.f32 %v1744, %v2762
    %v2772 = vmul.f32 %v1784, %v2766
    %v2773 = vlaneseq
    %v2774 = vshrl.u32 %v2773, 7
    %v2775 = vsub.s32 0, %v2774
    %v2776 = vrot.slane %v2681, %v2775
    %v2777 = vlaneseq
    %v2778 = vshrl.u32 %v2777, 7
    %v2779 = vsub.s32 0, %v2778
    %v2780 = vrot.slane %v2683, %v2779
    %v2781 = vlaneseq
    %v2782 = vshrl.u32 %v2781, 7
    %v2783 = vsub.s32 0, %v2782
    %v2784 = vrot.slane %v2752, %v2783
    %v2785 = vadd.f32 %v2767, %v2776
    %v2786 = vadd.f32 %v2768, %v2780
    %v2787 = vadd.f32 %v2769, %v2784
    %v2788 = vadd.f32 %v2770, %v2776
    %v2789 = vadd.f32 %v2771, %v2780
    %v2790 = vadd.f32 %v2772, %v2784
    %vm2791 = vcmp.gt.f32.partialorder %v2785, 0.0
    %vm2792 = vcmp.gt.f32.partialorder %v2786, 0.0
    %vm2793 = vcmp.gt.f32.partialorder %v2787, 0.0
    %vm2794 = vcmp.gt.f32.partialorder %v2788, 0.0
    %vm2795 = vcmp.gt.f32.partialorder %v2789, 0.0
    %vm2796 = vcmp.gt.f32.partialorder %v2790, 0.0
    %v2797 = vmul.f32 %v2785, 0.2
    %v2798 = vmul.f32 %v2786, 0.2
    %v2799 = vmul.f32 %v2787, 0.2
    %v2800 = vmul.f32 %v2788, 0.2
    %v2801 = vmul.f32 %v2789, 0.2
    %v2802 = vmul.f32 %v2790, 0.2
    %v2803 = vsel %vm2791, %v2785, %v2797
    %v2804 = vsel %vm2792, %v2786, %v2798
    %v2805 = vsel %vm2793, %v2787, %v2799
    %v2806 = vsel %vm2794, %v2788, %v2800
    %v2807 = vsel %vm2795, %v2789, %v2801
    %v2808 = vsel %vm2796, %v2790, %v2802
    %v2809 = vpack.c.bf16 %v2806, %v2803
    %v2810 = vpack.c.bf16 %v2807, %v2804
    %v2811 = vpack.c.bf16 %v2808, %v2805
    %v2812 = vld [vmem:[%s6] sm:$0xff]
    %v2813 = vld [vmem:[%s6 + $0x8] sm:$0xff]
    %v2814 = vld [vmem:[%s6 + $0x10] sm:$0xff]
    %v2815 = vld [vmem:[%s6 + $0x18] sm:$0xff]
    %v2816 = vld [vmem:[%s6 + $0x20] sm:$0xff]
    %v2817 = vld [vmem:[%s6 + $0x28] sm:$0xff]
    %v2818 = vld [vmem:[%s6 + $0x30] sm:$0xff]
    %v2819 = vld [vmem:[%s6 + $0x38] sm:$0xff]
    %v2820 = vld [vmem:[%s6 + $0x40] sm:$0xff]
    %v2821 = vld [vmem:[%s6 + $0x48] sm:$0xff]
    %v2822 = vld [vmem:[%s6 + $0x50] sm:$0xff]
    %v2823 = vld [vmem:[%s6 + $0x58] sm:$0xff]
    %v2824 = vld [vmem:[%s6 + $0x60] sm:$0xff]
    %v2825 = vld [vmem:[%s6 + $0x68] sm:$0xff]
    %v2826 = vld [vmem:[%s6 + $0x70] sm:$0xff]
    %v2827 = vld [vmem:[%s6 + $0x78] sm:$0xff]
    %v2828 = vld [vmem:[%s6 + $0x80] sm:$0xff]
    %v2829 = vld [vmem:[%s6 + $0x88] sm:$0xff]
    %v2830 = vld [vmem:[%s6 + $0x90] sm:$0xff]
    %v2831 = vld [vmem:[%s6 + $0x98] sm:$0xff]
    %v2832 = vld [vmem:[%s6 + $0xa0] sm:$0xff]
    %v2833 = vld [vmem:[%s6 + $0xa8] sm:$0xff]
    %v2834 = vld [vmem:[%s6 + $0xb0] sm:$0xff]
    %v2835 = vld [vmem:[%s6 + $0xb8] sm:$0xff]
    %v2836 = vld [vmem:[%s6 + $0xc0] sm:$0xff]
    %v2837 = vld [vmem:[%s6 + $0xc8] sm:$0xff]
    %v2838 = vld [vmem:[%s6 + $0xd0] sm:$0xff]
    %v2839 = vld [vmem:[%s6 + $0xd8] sm:$0xff]
    %v2840 = vld [vmem:[%s6 + $0xe0] sm:$0xff]
    %v2841 = vld [vmem:[%s6 + $0xe8] sm:$0xff]
    %v2842 = vld [vmem:[%s6 + $0xf0] sm:$0xff]
    %v2843 = vld [vmem:[%s6 + $0xf8] sm:$0xff]
    %v2844 = vld [vmem:[%s6 + $0x100] sm:$0xff]
    %v2845 = vld [vmem:[%s6 + $0x108] sm:$0xff]
    %v2846 = vld [vmem:[%s6 + $0x110] sm:$0xff]
    %v2847 = vld [vmem:[%s6 + $0x118] sm:$0xff]
    %v2848 = vld [vmem:[%s6 + $0x120] sm:$0xff]
    %v2849 = vld [vmem:[%s6 + $0x128] sm:$0xff]
    %v2850 = vld [vmem:[%s6 + $0x130] sm:$0xff]
    %v2851 = vld [vmem:[%s6 + $0x138] sm:$0xff]
    %v2852 = vld [vmem:[%s6 + $0x140] sm:$0xff]
    %v2853 = vld [vmem:[%s6 + $0x148] sm:$0xff]
    %v2854 = vld [vmem:[%s6 + $0x150] sm:$0xff]
    %v2855 = vld [vmem:[%s6 + $0x158] sm:$0xff]
    %v2856 = vld [vmem:[%s6 + $0x160] sm:$0xff]
    %v2857 = vld [vmem:[%s6 + $0x168] sm:$0xff]
    %v2858 = vld [vmem:[%s6 + $0x170] sm:$0xff]
    %v2859 = vld [vmem:[%s6 + $0x178] sm:$0xff]
    %v2908 = vunpack.c.l.b16 %v2812
    %v2909 = vunpack.c.h.b16 %v2812
    %v2910 = vunpack.c.l.b16 %v2813
    %v2911 = vunpack.c.h.b16 %v2813
    %v2912 = vunpack.c.l.b16 %v2814
    %v2913 = vunpack.c.h.b16 %v2814
    %v2914 = vunpack.c.l.b16 %v2815
    %v2915 = vunpack.c.h.b16 %v2815
    %v2916 = vunpack.c.l.b16 %v2816
    %v2917 = vunpack.c.h.b16 %v2816
    %v2918 = vunpack.c.l.b16 %v2817
    %v2919 = vunpack.c.h.b16 %v2817
    %v2920 = vunpack.c.l.b16 %v2818
    %v2921 = vunpack.c.h.b16 %v2818
    %v2922 = vunpack.c.l.b16 %v2819
    %v2923 = vunpack.c.h.b16 %v2819
    %v2924 = vunpack.c.l.b16 %v2820
    %v2925 = vunpack.c.h.b16 %v2820
    %v2926 = vunpack.c.l.b16 %v2821
    %v2927 = vunpack.c.h.b16 %v2821
    %v2928 = vunpack.c.l.b16 %v2822
    %v2929 = vunpack.c.h.b16 %v2822
    %v2930 = vunpack.c.l.b16 %v2823
    %v2931 = vunpack.c.h.b16 %v2823
    %v2932 = vunpack.c.l.b16 %v2824
    %v2933 = vunpack.c.h.b16 %v2824
    %v2934 = vunpack.c.l.b16 %v2825
    %v2935 = vunpack.c.h.b16 %v2825
    %v2936 = vunpack.c.l.b16 %v2826
    %v2937 = vunpack.c.h.b16 %v2826
    %v2938 = vunpack.c.l.b16 %v2827
    %v2939 = vunpack.c.h.b16 %v2827
    %v2940 = vunpack.c.l.b16 %v2828
    %v2941 = vunpack.c.h.b16 %v2828
    %v2942 = vunpack.c.l.b16 %v2829
    %v2943 = vunpack.c.h.b16 %v2829
    %v2944 = vunpack.c.l.b16 %v2830
    %v2945 = vunpack.c.h.b16 %v2830
    %v2946 = vunpack.c.l.b16 %v2831
    %v2947 = vunpack.c.h.b16 %v2831
    %v2948 = vunpack.c.l.b16 %v2832
    %v2949 = vunpack.c.h.b16 %v2832
    %v2950 = vunpack.c.l.b16 %v2833
    %v2951 = vunpack.c.h.b16 %v2833
    %v2952 = vunpack.c.l.b16 %v2834
    %v2953 = vunpack.c.h.b16 %v2834
    %v2954 = vunpack.c.l.b16 %v2835
    %v2955 = vunpack.c.h.b16 %v2835
    %v2956 = vunpack.c.l.b16 %v2836
    %v2957 = vunpack.c.h.b16 %v2836
    %v2958 = vunpack.c.l.b16 %v2837
    %v2959 = vunpack.c.h.b16 %v2837
    %v2960 = vunpack.c.l.b16 %v2838
    %v2961 = vunpack.c.h.b16 %v2838
    %v2962 = vunpack.c.l.b16 %v2839
    %v2963 = vunpack.c.h.b16 %v2839
    %v2964 = vunpack.c.l.b16 %v2840
    %v2965 = vunpack.c.h.b16 %v2840
    %v2966 = vunpack.c.l.b16 %v2841
    %v2967 = vunpack.c.h.b16 %v2841
    %v2968 = vunpack.c.l.b16 %v2842
    %v2969 = vunpack.c.h.b16 %v2842
    %v2970 = vunpack.c.l.b16 %v2843
    %v2971 = vunpack.c.h.b16 %v2843
    %v2972 = vunpack.c.l.b16 %v2844
    %v2973 = vunpack.c.h.b16 %v2844
    %v2974 = vunpack.c.l.b16 %v2845
    %v2975 = vunpack.c.h.b16 %v2845
    %v2976 = vunpack.c.l.b16 %v2846
    %v2977 = vunpack.c.h.b16 %v2846
    %v2978 = vunpack.c.l.b16 %v2847
    %v2979 = vunpack.c.h.b16 %v2847
    %v2980 = vunpack.c.l.b16 %v2848
    %v2981 = vunpack.c.h.b16 %v2848
    %v2982 = vunpack.c.l.b16 %v2849
    %v2983 = vunpack.c.h.b16 %v2849
    %v2984 = vunpack.c.l.b16 %v2850
    %v2985 = vunpack.c.h.b16 %v2850
    %v2986 = vunpack.c.l.b16 %v2851
    %v2987 = vunpack.c.h.b16 %v2851
    %v2988 = vunpack.c.l.b16 %v2852
    %v2989 = vunpack.c.h.b16 %v2852
    %v2990 = vunpack.c.l.b16 %v2853
    %v2991 = vunpack.c.h.b16 %v2853
    %v2992 = vunpack.c.l.b16 %v2854
    %v2993 = vunpack.c.h.b16 %v2854
    %v2994 = vunpack.c.l.b16 %v2855
    %v2995 = vunpack.c.h.b16 %v2855
    %v2996 = vunpack.c.l.b16 %v2856
    %v2997 = vunpack.c.h.b16 %v2856
    %v2998 = vunpack.c.l.b16 %v2857
    %v2999 = vunpack.c.h.b16 %v2857
    %v3000 = vunpack.c.l.b16 %v2858
    %v3001 = vunpack.c.h.b16 %v2858
    %v3002 = vunpack.c.l.b16 %v2859
    %v3003 = vunpack.c.h.b16 %v2859
    %v3004 = vpack.c.b16 %v2910, %v2908
    %v3005 = vpack.c.b16 %v2911, %v2909
    %v3006 = vpack.c.b16 %v2914, %v2912
    %v3007 = vpack.c.b16 %v2915, %v2913
    %v3008 = vpack.c.b16 %v2918, %v2916
    %v3009 = vpack.c.b16 %v2919, %v2917
    %v3010 = vpack.c.b16 %v2922, %v2920
    %v3011 = vpack.c.b16 %v2923, %v2921
    %v3012 = vpack.c.b16 %v2926, %v2924
    %v3013 = vpack.c.b16 %v2927, %v2925
    %v3014 = vpack.c.b16 %v2930, %v2928
    %v3015 = vpack.c.b16 %v2931, %v2929
    %v3016 = vpack.c.b16 %v2934, %v2932
    %v3017 = vpack.c.b16 %v2935, %v2933
    %v3018 = vpack.c.b16 %v2938, %v2936
    %v3019 = vpack.c.b16 %v2939, %v2937
    %v3020 = vpack.c.b16 %v2942, %v2940
    %v3021 = vpack.c.b16 %v2943, %v2941
    %v3022 = vpack.c.b16 %v2946, %v2944
    %v3023 = vpack.c.b16 %v2947, %v2945
    %v3024 = vpack.c.b16 %v2950, %v2948
    %v3025 = vpack.c.b16 %v2951, %v2949
    %v3026 = vpack.c.b16 %v2954, %v2952
    %v3027 = vpack.c.b16 %v2955, %v2953
    %v3028 = vpack.c.b16 %v2958, %v2956
    %v3029 = vpack.c.b16 %v2959, %v2957
    %v3030 = vpack.c.b16 %v2962, %v2960
    %v3031 = vpack.c.b16 %v2963, %v2961
    %v3032 = vpack.c.b16 %v2966, %v2964
    %v3033 = vpack.c.b16 %v2967, %v2965
    %v3034 = vpack.c.b16 %v2970, %v2968
    %v3035 = vpack.c.b16 %v2971, %v2969
    %v3036 = vpack.c.b16 %v2974, %v2972
    %v3037 = vpack.c.b16 %v2975, %v2973
    %v3038 = vpack.c.b16 %v2978, %v2976
    %v3039 = vpack.c.b16 %v2979, %v2977
    %v3040 = vpack.c.b16 %v2982, %v2980
    %v3041 = vpack.c.b16 %v2983, %v2981
    %v3042 = vpack.c.b16 %v2986, %v2984
    %v3043 = vpack.c.b16 %v2987, %v2985
    %v3044 = vpack.c.b16 %v2990, %v2988
    %v3045 = vpack.c.b16 %v2991, %v2989
    %v3046 = vpack.c.b16 %v2994, %v2992
    %v3047 = vpack.c.b16 %v2995, %v2993
    %v3048 = vpack.c.b16 %v2998, %v2996
    %v3049 = vpack.c.b16 %v2999, %v2997
    %v3050 = vpack.c.b16 %v3002, %v3000
    %v3051 = vpack.c.b16 %v3003, %v3001
    %3100 = vmatprep.subr.bf16.mxu0 %v3005
    %3101 = vmatpush1.bf16.msra.mxu0 %v3004
    %3102 = vmatprep.subr.bf16.mxu0 %v3007
    %3103 = vmatpush1.bf16.msra.mxu0 %v3006
    %3104 = vmatprep.subr.bf16.mxu0 %v3009
    %3105 = vmatpush1.bf16.msra.mxu0 %v3008
    %3106 = vmatprep.subr.bf16.mxu0 %v3011
    %3107 = vmatpush1.bf16.msra.mxu0 %v3010
    %3108 = vmatprep.subr.bf16.mxu0 %v3013
    %3109 = vmatpush1.bf16.msra.mxu0 %v3012
    %3110 = vmatprep.subr.bf16.mxu0 %v3015
    %3111 = vmatpush1.bf16.msra.mxu0 %v3014
    %3112 = vmatprep.subr.bf16.mxu0 %v3017
    %3113 = vmatpush1.bf16.msra.mxu0 %v3016
    %3114 = vmatprep.subr.bf16.mxu0 %v3019
    %3115 = vmatpush1.bf16.msra.mxu0 %v3018
    %3116 = vmatprep.subr.bf16.mxu0 %v3021
    %3117 = vmatpush1.bf16.msra.mxu0 %v3020
    %3118 = vmatprep.subr.bf16.mxu0 %v3023
    %3119 = vmatpush1.bf16.msra.mxu0 %v3022
    %3120 = vmatprep.subr.bf16.mxu0 %v3025
    %3121 = vmatpush1.bf16.msra.mxu0 %v3024
    %3122 = vmatprep.subr.bf16.mxu0 %v3027
    %3123 = vmatpush1.bf16.msra.mxu0 %v3026
    %3124 = vmatprep.subr.bf16.mxu0 %v3029
    %3125 = vmatpush1.bf16.msra.mxu0 %v3028
    %3126 = vmatprep.subr.bf16.mxu0 %v3031
    %3127 = vmatpush1.bf16.msra.mxu0 %v3030
    %3128 = vmatprep.subr.bf16.mxu0 %v3033
    %3129 = vmatpush1.bf16.msra.mxu0 %v3032
    %3130 = vmatprep.subr.bf16.mxu0 %v3035
    %3131 = vmatpush1.bf16.msra.mxu0 %v3034
    %3132 = vmatprep.mubr.bf16.mxu0 %v2810
    %3133 = vmatmul.mubr.bf16.gmra.mrb[0].mxu0 %v2809
    %v3134 = vpop.f32.mrb[0].mxu0
    %v3135 = vadd.f32 0.0, %v3134
    %v3136 = vpop.f32.mrb[0].mxu0
    %v3137 = vadd.f32 0.0, %v3136
    %v3138 = vpop.f32.mrb[0].mxu0
    %v3139 = vadd.f32 0.0, %v3138
    %v3140 = vpop.f32.mrb[0].mxu0
    %v3141 = vadd.f32 0.0, %v3140
    %3142 = vdwg.mxu0
    %3143 = vmatprep.subr.bf16.mxu0 %v3037
    %3144 = vmatpush1.bf16.msra.mxu0 %v3036
    %3145 = vmatprep.subr.bf16.mxu0 %v3039
    %3146 = vmatpush1.bf16.msra.mxu0 %v3038
    %3147 = vmatprep.subr.bf16.mxu0 %v3041
    %3148 = vmatpush1.bf16.msra.mxu0 %v3040
    %3149 = vmatprep.subr.bf16.mxu0 %v3043
    %3150 = vmatpush1.bf16.msra.mxu0 %v3042
    %3151 = vmatprep.subr.bf16.mxu0 %v3045
    %3152 = vmatpush1.bf16.msra.mxu0 %v3044
    %3153 = vmatprep.subr.bf16.mxu0 %v3047
    %3154 = vmatpush1.bf16.msra.mxu0 %v3046
    %3155 = vmatprep.subr.bf16.mxu0 %v3049
    %3156 = vmatpush1.bf16.msra.mxu0 %v3048
    %3157 = vmatprep.subr.bf16.mxu0 %v3051
    %3158 = vmatpush1.bf16.msra.mxu0 %v3050
    %3159 = vmatprep.subr.bf16.mxu0 0
    %3160 = vmatpush1.bf16.msra.mxu0 0
    %3161 = vmatprep.subr.bf16.mxu0 0
    %3162 = vmatpush1.bf16.msra.mxu0 0
    %3163 = vmatprep.subr.bf16.mxu0 0
    %3164 = vmatpush1.bf16.msra.mxu0 0
    %3165 = vmatprep.subr.bf16.mxu0 0
    %3166 = vmatpush1.bf16.msra.mxu0 0
    %3167 = vmatprep.subr.bf16.mxu0 0
    %3168 = vmatpush1.bf16.msra.mxu0 0
    %3169 = vmatprep.subr.bf16.mxu0 0
    %3170 = vmatpush1.bf16.msra.mxu0 0
    %3171 = vmatprep.subr.bf16.mxu0 0
    %3172 = vmatpush1.bf16.msra.mxu0 0
    %3173 = vmatprep.subr.bf16.mxu0 0
    %3174 = vmatpush1.bf16.msra.mxu0 0
    %3175 = vmatprep.mubr.bf16.mxu0 0
    %3176 = vmatmul.mubr.bf16.gmra.mrb[0].mxu0 %v2811
    %v3177 = vpop.f32.mrb[0].mxu0
    %v3178 = vadd.f32 %v3135, %v3177
    %v3179 = vpop.f32.mrb[0].mxu0
    %v3180 = vadd.f32 %v3137, %v3179
    %v3181 = vpop.f32.mrb[0].mxu0
    %v3182 = vadd.f32 %v3139, %v3181
    %v3183 = vpop.f32.mrb[0].mxu0
    %v3184 = vadd.f32 %v3141, %v3183
    %3185 = vdwg.mxu0
    %v3186 = vld [vmem:[%s2] sm:$0xff]
    %v3187 = vld [vmem:[%s2 + $0x8] sm:$0xff]
    %v3188 = vmul.f32 %v3180, 0.5
    %v3189 = vmul.f32 %v3184, 0.5
    %v3190 = vmul.f32 %v3188, 1.442695
    %v3191 = vpow.pop %v3190
    %v3192 = vmul.f32 %v3189, 1.442695
    %v3193 = vpow.pop %v3192
    %v3194 = vmul.f32 %v3186, %v3191
    %v3195 = vmul.f32 %v3187, %v3193
    %v3196 = vadd.f32 %v3178, %v3194
    %v3197 = vadd.f32 %v3182, %v3195
    %3198 = vst [vmem:[%s14] sm:$0xff] %v3196
    %3199 = vst [vmem:[%s14 + $0x8] sm:$0xff] %v3197
    // Predicated region
    $region70: #{forward.1} parent=1 // pred_check
      _
    $region71: #{forward.1} parent=1 // pred_check_branch
      %3201 = sbr.rel (0) target = $region73
    $region72: #{forward.1} parent=1 // pred_region
      _
    $region73: #{forward.1} parent=1 // pred_fallthru
      _
    // Predicated region
    $region74: #{forward.1} parent=1 // pred_check
      _
    $region75: #{forward.1} parent=1 // pred_check_branch
      %3203 = sbr.rel (0) target = $region77
    $region76: #{forward.1} parent=1 // pred_region
      _
    $region77: #{forward.1} parent=1 // pred_fallthru
      _
    %3204 = vsyncpa [#allocation3], 1
    %3205 = vsyncpa [#allocation5], 1

</llo_original>
